<compile_context>
chip_gen: v7x
topology: tpu7x:2x2x1
jax: 0.10.0
libtpu: 0.0.40
codegen_flags: <defaults>
</compile_context>

<pallas_src>
import jax
import jax.numpy as jnp
from jax.experimental import pallas as pl
from jax.experimental.pallas import tpu as pltpu

C_IN = 96        # conv2d301 in channels
C_MID = 2304     # conv2d301 out channels / conv2d302 in channels
C_OUT = 384      # conv2d302 out channels
H = W = 7
N = 1
HW = N * H * W   # 49
BN_EPS = 1e-3
TILE_M = 128     # output-channel tile (384 = 3 * 128)


def _fused_kernel(xv_ref, w1_ref, b1_ref, x_ref, w2_ref, gamma_ref, beta_ref,
                  out_ref):
    # --- conv2d301 (1x1 conv on a 1x1 spatial input == vec x W1^T) + bias ---
    # Contract dim 1 of both operands: no transposed copy of w1 is materialized.
    z = jax.lax.dot_general(
        xv_ref[...], w1_ref[...],
        dimension_numbers=(((1,), (1,)), ((), ())),
        preferred_element_type=jnp.float32)                 # [1, C_MID]
    # --- sigmoid53 ---
    s = jax.nn.sigmoid(z + b1_ref[...])                     # [1, C_MID]

    # --- SE excitation folded into this step's w2 row tile ---
    w2s = w2_ref[...] * s                                   # [TILE_M, C_MID]

    # --- conv2d302 (1x1 conv == matmul over channels), no bias ---
    y = jnp.dot(w2s, x_ref[...],
                preferred_element_type=jnp.float32)         # [TILE_M, HW]

    # --- batchnorm2d194, training mode: per-channel stats over N*H*W ---
    # Channels are rows here -> stats are a lane reduction; one-pass variance.
    inv_hw = 1.0 / HW
    sum_y = jnp.sum(y, axis=1, keepdims=True)               # [TILE_M, 1]
    sum_y2 = jnp.sum(y * y, axis=1, keepdims=True)          # [TILE_M, 1]
    mean = sum_y * inv_hw
    var = sum_y2 * inv_hw - mean * mean                     # biased variance
    scale = jax.lax.rsqrt(var + BN_EPS) * gamma_ref[...]    # [TILE_M, 1]
    bias = beta_ref[...] - mean * scale                     # [TILE_M, 1]
    out_ref[...] = (y * scale + bias).astype(out_ref.dtype)


def fused_forward(x968, x965, w1, b1, w2, gamma, beta):
    """x968: [1,96,1,1], x965: [1,2304,7,7]  ->  [1,384,7,7] (NCHW)."""
    # All host-side prep is free reshapes (no transposes, no broadcasts).
    xv = x968.reshape(1, C_IN)                 # [1, 96]
    x_cw = x965.reshape(C_MID, HW)             # [2304, 49]
    w1m = w1.reshape(C_MID, C_IN)              # [2304, 96]
    b1r = b1.reshape(1, C_MID)                 # [1, 2304]
    w2m = w2.reshape(C_OUT, C_MID)             # [384, 2304]
    g = gamma.reshape(C_OUT, 1)                # [384, 1]
    b = beta.reshape(C_OUT, 1)                 # [384, 1]

    n_tiles = C_OUT // TILE_M                  # 3

    cost = pl.CostEstimate(
        flops=2 * C_IN * C_MID                     # conv1 mat-vec
              + C_OUT * C_MID                      # excitation scale of w2
              + 2 * C_OUT * C_MID * HW             # conv2 matmul
              + 8 * C_OUT * HW,                    # batchnorm
        transcendentals=C_MID * n_tiles,
        bytes_accessed=4 * (C_OUT * C_MID + C_MID * C_IN + C_MID * HW
                            + C_MID + C_IN + 2 * C_OUT + C_OUT * HW))

    out = pl.pallas_call(
        _fused_kernel,
        out_shape=jax.ShapeDtypeStruct((C_OUT, HW), jnp.float32),
        grid=(n_tiles,),
        in_specs=[
            pl.BlockSpec((1, C_IN), lambda i: (0, 0)),        # xv   (resident)
            pl.BlockSpec((C_MID, C_IN), lambda i: (0, 0)),    # w1   (resident)
            pl.BlockSpec((1, C_MID), lambda i: (0, 0)),       # b1   (resident)
            pl.BlockSpec((C_MID, HW), lambda i: (0, 0)),      # x_cw (resident)
            pl.BlockSpec((TILE_M, C_MID), lambda i: (i, 0)),  # w2   (streamed)
            pl.BlockSpec((TILE_M, 1), lambda i: (i, 0)),      # gamma
            pl.BlockSpec((TILE_M, 1), lambda i: (i, 0)),      # beta
        ],
        out_specs=pl.BlockSpec((TILE_M, HW), lambda i: (i, 0)),
        compiler_params=pltpu.CompilerParams(
            dimension_semantics=("parallel",)),
        cost_estimate=cost,
    )(xv, w1m, b1r, x_cw, w2m, g, b)

    # [384, 49] -> [1, 384, 7, 7] is a free reshape (no transpose).
    return out.reshape(N, C_OUT, H, W)


def _reference(x968, x965, w1, b1, w2, gamma, beta):
    """Pure-JAX reference mirroring the PyTorch forward (training-mode BN)."""
    hp = jax.lax.Precision.HIGHEST
    z = jnp.einsum('oc,nchw->nohw', w1.reshape(C_MID, C_IN), x968,
                   precision=hp) + b1.reshape(1, C_MID, 1, 1)
    s = jax.nn.sigmoid(z)
    x971 = s * x965
    y = jnp.einsum('oc,nchw->nohw', w2.reshape(C_OUT, C_MID), x971,
                   precision=hp)
    mean = jnp.mean(y, axis=(0, 2, 3), keepdims=True)
    var = jnp.mean((y - mean) ** 2, axis=(0, 2, 3), keepdims=True)
    return (y - mean) * jax.lax.rsqrt(var + BN_EPS) \
        * gamma.reshape(1, C_OUT, 1, 1) + beta.reshape(1, C_OUT, 1, 1)


if __name__ == "__main__":
    key = jax.random.PRNGKey(0)
    k_x1, k_x2, k_w1, k_b1, k_w2, k_g, k_b = jax.random.split(key, 7)

    # Inputs (shapes implied by the module)
    x968 = jax.random.normal(k_x1, (N, C_IN, 1, 1), dtype=jnp.float32)
    x965 = jax.random.normal(k_x2, (N, C_MID, H, W), dtype=jnp.float32)

    # Deterministic synthetic parameters
    w1 = jax.random.normal(k_w1, (C_MID, C_IN, 1, 1), jnp.float32) * 0.05
    b1 = jax.random.normal(k_b1, (C_MID,), jnp.float32) * 0.05
    w2 = jax.random.normal(k_w2, (C_OUT, C_MID, 1, 1), jnp.float32) * 0.02
    gamma = 1.0 + 0.1 * jax.random.normal(k_g, (C_OUT,), jnp.float32)
    beta = 0.1 * jax.random.normal(k_b, (C_OUT,), jnp.float32)

    fwd = jax.jit(fused_forward)
    out = jax.block_until_ready(fwd(x968, x965, w1, b1, w2, gamma, beta))
    ref = jax.block_until_ready(
        _reference(x968, x965, w1, b1, w2, gamma, beta))

    assert out.shape == (N, C_OUT, H, W)
    assert jnp.allclose(out, ref, atol=5e-3, rtol=5e-3)
    print("KERNEL_OK")
</pallas_src>

<mosaic_0001>
module attributes {stable_mosaic.version = 11 : i64} {
  func.func @_fused_kernel(%arg0: i32, %arg1: memref<1x96xf32, #tpu.memory_space<vmem>>, %arg2: memref<2304x96xf32, #tpu.memory_space<vmem>>, %arg3: memref<1x2304xf32, #tpu.memory_space<vmem>>, %arg4: memref<2304x49xf32, #tpu.memory_space<vmem>>, %arg5: memref<128x2304xf32, #tpu.memory_space<vmem>>, %arg6: memref<128x1xf32, #tpu.memory_space<vmem>>, %arg7: memref<128x1xf32, #tpu.memory_space<vmem>>, %arg8: memref<128x49xf32, #tpu.memory_space<vmem>>) attributes {dimension_semantics = [#tpu.dimension_semantics<parallel>], iteration_bounds = array<i64: 3>, scalar_prefetch = 0 : i64, scratch_operands = 0 : i64, tpu.core_type = #tpu.core_type<tc>, window_params = [{pipeline_mode = #tpu.pipeline_mode<synchronous>, transform_indices = @transform_0, window_bounds = array<i64: 1, 96>}, {pipeline_mode = #tpu.pipeline_mode<synchronous>, transform_indices = @transform_1, window_bounds = array<i64: 2304, 96>}, {pipeline_mode = #tpu.pipeline_mode<synchronous>, transform_indices = @transform_2, window_bounds = array<i64: 1, 2304>}, {pipeline_mode = #tpu.pipeline_mode<synchronous>, transform_indices = @transform_3, window_bounds = array<i64: 2304, 49>}, {transform_indices = @transform_4, window_bounds = array<i64: 128, 2304>}, {transform_indices = @transform_5, window_bounds = array<i64: 128, 1>}, {transform_indices = @transform_6, window_bounds = array<i64: 128, 1>}, {transform_indices = @transform_7, window_bounds = array<i64: 128, 49>}]} {
    %c0 = arith.constant 0 : index
    %c0_0 = arith.constant 0 : index
    %0 = vector.load %arg1[%c0, %c0_0] : memref<1x96xf32, #tpu.memory_space<vmem>>, vector<1x96xf32>
    %c0_1 = arith.constant 0 : index
    %c0_2 = arith.constant 0 : index
    %1 = vector.load %arg2[%c0_1, %c0_2] : memref<2304x96xf32, #tpu.memory_space<vmem>>, vector<2304x96xf32>
    %cst = arith.constant dense<0.000000e+00> : vector<1x2304xf32>
    %2 = tpu.matmul %0, %1, %cst {dimension_numbers = #tpu.dot_dimension_numbers<[1], [1], [0], [0], [0, 0, 1, 0], [], []>} : vector<1x96xf32>, vector<2304x96xf32>, vector<1x2304xf32> -> vector<1x2304xf32>
    %c0_3 = arith.constant 0 : index
    %c0_4 = arith.constant 0 : index
    %3 = vector.load %arg3[%c0_3, %c0_4] : memref<1x2304xf32, #tpu.memory_space<vmem>>, vector<1x2304xf32>
    %4 = arith.addf %2, %3 : vector<1x2304xf32>
    %5 = arith.negf %4 : vector<1x2304xf32>
    %6 = math.exp %5 : vector<1x2304xf32>
    %cst_5 = arith.constant 1.000000e+00 : f32
    %7 = vector.broadcast %cst_5 : f32 to vector<1x2304xf32>
    %8 = arith.addf %7, %6 : vector<1x2304xf32>
    %9 = arith.divf %7, %8 : vector<1x2304xf32>
    %c0_6 = arith.constant 0 : index
    %c0_7 = arith.constant 0 : index
    %10 = vector.load %arg5[%c0_6, %c0_7] : memref<128x2304xf32, #tpu.memory_space<vmem>>, vector<128x2304xf32>
    %11 = vector.broadcast %9 : vector<1x2304xf32> to vector<128x2304xf32>
    %12 = arith.mulf %10, %11 : vector<128x2304xf32>
    %c0_8 = arith.constant 0 : index
    %c0_9 = arith.constant 0 : index
    %13 = vector.load %arg4[%c0_8, %c0_9] : memref<2304x49xf32, #tpu.memory_space<vmem>>, vector<2304x49xf32>
    %cst_10 = arith.constant dense<0.000000e+00> : vector<128x49xf32>
    %14 = tpu.matmul %12, %13, %cst_10 {dimension_numbers = #tpu.dot_dimension_numbers<[1], [0], [0], [1], [0, 0, 1, 1], [], []>} : vector<128x2304xf32>, vector<2304x49xf32>, vector<128x49xf32> -> vector<128x49xf32>
    %cst_11 = arith.constant dense<0.000000e+00> : vector<128xf32>
    %15 = vector.multi_reduction <add>, %14, %cst_11 [1] : vector<128x49xf32> to vector<128xf32>
    %16 = vector.shape_cast %15 : vector<128xf32> to vector<128x1xf32>
    %17 = arith.mulf %14, %14 : vector<128x49xf32>
    %cst_12 = arith.constant dense<0.000000e+00> : vector<128xf32>
    %18 = vector.multi_reduction <add>, %17, %cst_12 [1] : vector<128x49xf32> to vector<128xf32>
    %19 = vector.shape_cast %18 : vector<128xf32> to vector<128x1xf32>
    %cst_13 = arith.constant 0.0204081628 : f32
    %20 = vector.broadcast %cst_13 : f32 to vector<128x1xf32>
    %21 = arith.mulf %16, %20 : vector<128x1xf32>
    %cst_14 = arith.constant 0.0204081628 : f32
    %22 = vector.broadcast %cst_14 : f32 to vector<128x1xf32>
    %23 = arith.mulf %19, %22 : vector<128x1xf32>
    %24 = arith.mulf %21, %21 : vector<128x1xf32>
    %25 = arith.subf %23, %24 : vector<128x1xf32>
    %cst_15 = arith.constant 1.000000e-03 : f32
    %26 = vector.broadcast %cst_15 : f32 to vector<128x1xf32>
    %27 = arith.addf %25, %26 : vector<128x1xf32>
    %28 = math.rsqrt %27 : vector<128x1xf32>
    %c0_16 = arith.constant 0 : index
    %c0_17 = arith.constant 0 : index
    %29 = vector.load %arg6[%c0_16, %c0_17] : memref<128x1xf32, #tpu.memory_space<vmem>>, vector<128x1xf32>
    %30 = arith.mulf %28, %29 : vector<128x1xf32>
    %c0_18 = arith.constant 0 : index
    %c0_19 = arith.constant 0 : index
    %31 = vector.load %arg7[%c0_18, %c0_19] : memref<128x1xf32, #tpu.memory_space<vmem>>, vector<128x1xf32>
    %32 = arith.mulf %21, %30 : vector<128x1xf32>
    %33 = arith.subf %31, %32 : vector<128x1xf32>
    %34 = vector.broadcast %30 : vector<128x1xf32> to vector<128x49xf32>
    %35 = arith.mulf %14, %34 : vector<128x49xf32>
    %36 = vector.broadcast %33 : vector<128x1xf32> to vector<128x49xf32>
    %37 = arith.addf %35, %36 : vector<128x49xf32>
    %c0_20 = arith.constant 0 : index
    %c0_21 = arith.constant 0 : index
    %38 = vector.load %arg8[%c0_20, %c0_21] : memref<128x49xf32, #tpu.memory_space<vmem>>, vector<128x49xf32>
    tpu.vector_store %arg8[%c0_20, %c0_21], %37 {strides = array<i32>} : memref<128x49xf32, #tpu.memory_space<vmem>>, vector<128x49xf32>,
    return
  }
  func.func @transform_0(%arg0: i32) -> (i32, i32) {
    %c0_i32 = arith.constant 0 : i32
    %c0_i32_0 = arith.constant 0 : i32
    %c0_i32_1 = arith.constant 0 : i32
    return %c0_i32, %c0_i32_0 : i32, i32
  }
  func.func @transform_1(%arg0: i32) -> (i32, i32) {
    %c0_i32 = arith.constant 0 : i32
    %c0_i32_0 = arith.constant 0 : i32
    %c0_i32_1 = arith.constant 0 : i32
    return %c0_i32, %c0_i32_0 : i32, i32
  }
  func.func @transform_2(%arg0: i32) -> (i32, i32) {
    %c0_i32 = arith.constant 0 : i32
    %c0_i32_0 = arith.constant 0 : i32
    %c0_i32_1 = arith.constant 0 : i32
    return %c0_i32, %c0_i32_0 : i32, i32
  }
  func.func @transform_3(%arg0: i32) -> (i32, i32) {
    %c0_i32 = arith.constant 0 : i32
    %c0_i32_0 = arith.constant 0 : i32
    %c0_i32_1 = arith.constant 0 : i32
    return %c0_i32, %c0_i32_0 : i32, i32
  }
  func.func @transform_4(%arg0: i32) -> (i32, i32) {
    %c0_i32 = arith.constant 0 : i32
    %c0_i32_0 = arith.constant 0 : i32
    return %arg0, %c0_i32 : i32, i32
  }
  func.func @transform_5(%arg0: i32) -> (i32, i32) {
    %c0_i32 = arith.constant 0 : i32
    %c0_i32_0 = arith.constant 0 : i32
    return %arg0, %c0_i32 : i32, i32
  }
  func.func @transform_6(%arg0: i32) -> (i32, i32) {
    %c0_i32 = arith.constant 0 : i32
    %c0_i32_0 = arith.constant 0 : i32
    return %arg0, %c0_i32 : i32, i32
  }
  func.func @transform_7(%arg0: i32) -> (i32, i32) {
    %c0_i32 = arith.constant 0 : i32
    %c0_i32_0 = arith.constant 0 : i32
    return %arg0, %c0_i32 : i32, i32
  }
}

</mosaic_0001>

<llo_original>
// kernel: fused_forward.1
$region0: #{fused_forward.1}
  #allocation0 [shape = 'u32[]', space=smem, size = 0x4, offset = 0x4, fixed_abs, tag = 'smem constant byte address 0x4 - core index']
  #allocation1 [shape = 'u32[144,128]{1,0:T(1,128)}', space=vmem, size = 0x12000, scoped, tag = 'internal scratch']
  %s0 = inlined_call_operand.vmem [shape: f32[1,96], index: 0, kind: input, shape index: {}]
  %s1 = inlined_call_operand.vmem [shape: f32[2304,96], index: 1, kind: input, shape index: {}]
  %s2 = inlined_call_operand.vmem [shape: f32[1,2304], index: 2, kind: input, shape index: {}]
  %s3 = inlined_call_operand.vmem [shape: f32[2304,49], index: 3, kind: input, shape index: {}]
  %s4 = inlined_call_operand.vmem [shape: f32[384,2304], index: 4, kind: input, shape index: {}]
  %s5 = inlined_call_operand.vmem [shape: f32[384,1], index: 5, kind: input, shape index: {}]
  %s6 = inlined_call_operand.vmem [shape: f32[384,1], index: 6, kind: input, shape index: {}]
  %s7 = inlined_call_operand.vmem [shape: f32[384,49], index: 7, kind: output, shape index: {}]
  %s8 = sld [smem:[#allocation0]]
  $region61: #{fused_forward.1} parent=0
    _
  %s10 = ssub.s32 1, %s8
  %s11 = scalar_select 0, %s10, %s8
  loop: start=0, step=1, limit=5
  $region2: #{fused_forward.1} parent=0 // loop_pre_header
    _
  $region3: #{fused_forward.1} parent=0 // loop_header
    %s13 = sphi 0, %s17
    %p14 = scmp.ge.s32.totalorder %s13, 5
    %s21 = sphi 0, %s21
    %s23 = sphi 0, %s21
    %s24 = sphi 0, %s23
    %s38 = sphi 0, %s24
    %s42 = sphi 0, %s42
    %s44 = sphi 0, %s42
    %s45 = sphi 0, %s44
    %s59 = sphi 0, %s45
    %s63 = sphi 0, %s63
    %s65 = sphi 0, %s63
    %s66 = sphi 0, %s65
    %s80 = sphi 0, %s66
    %s84 = sphi 0, %s84
    %s86 = sphi 0, %s84
    %s87 = sphi 0, %s86
    %s101 = sphi 0, %s87
    %s107 = sphi 0, %s109
    %s110 = sphi 0, %s107
    %s111 = sphi 0, %s110
    %s127 = sphi 0, %s111
    %s133 = sphi 0, %s135
    %s136 = sphi 0, %s133
    %s137 = sphi 0, %s136
    %s153 = sphi 0, %s137
    %s159 = sphi 0, %s161
    %s162 = sphi 0, %s159
    %s163 = sphi 0, %s162
    %s179 = sphi 0, %s163
    %s185 = sphi 0, %s187
    %s188 = sphi 0, %s185
    %s189 = sphi 0, %s188
    %s205 = sphi 0, %s189
  $region4: #{fused_forward.1} parent=0 // loop_header_branch
    %16 = sbr.rel (%p14) target = $region8
  $region5: #{fused_forward.1} parent=0 // loop_body
    %s18 = ssub.s32 %s13, 1
    %s19 = ssub.s32 %s13, 2
    %s20 = sadd.s32 %s13, 1
    %s22 = sadd.s32 %s21, 1
    %p25 = scmp.eq.s32.totalorder %s13, 2
    %p26 = scmp.ne.s32.totalorder %s21, %s23
    %p27 = scmp.eq.s32.totalorder %s13, 0
    %p28 = por %p26, %p27
    %p29 = scmp.ne.s32.totalorder %s21, %s23
    %p30 = scmp.eq.s32.totalorder %s18, 2
    %p31 = por %p29, %p30
    %p32 = scmp.ne.s32.totalorder %s23, %s24
    %p33 = scmp.eq.s32.totalorder %s18, 0
    %p34 = por %p32, %p33
    %p35 = scmp.ne.s32.totalorder %s23, %s24
    %p36 = scmp.eq.s32.totalorder %s19, 2
    %p37 = por %p35, %p36
    %p39 = scmp.ne.s32.totalorder %s24, %s38
    %p40 = scmp.eq.s32.totalorder %s19, 0
    %p41 = por %p39, %p40
    %s43 = sadd.s32 %s42, 1
    %p46 = scmp.eq.s32.totalorder %s13, 2
    %p47 = scmp.ne.s32.totalorder %s42, %s44
    %p48 = scmp.eq.s32.totalorder %s13, 0
    %p49 = por %p47, %p48
    %p50 = scmp.ne.s32.totalorder %s42, %s44
    %p51 = scmp.eq.s32.totalorder %s18, 2
    %p52 = por %p50, %p51
    %p53 = scmp.ne.s32.totalorder %s44, %s45
    %p54 = scmp.eq.s32.totalorder %s18, 0
    %p55 = por %p53, %p54
    %p56 = scmp.ne.s32.totalorder %s44, %s45
    %p57 = scmp.eq.s32.totalorder %s19, 2
    %p58 = por %p56, %p57
    %p60 = scmp.ne.s32.totalorder %s45, %s59
    %p61 = scmp.eq.s32.totalorder %s19, 0
    %p62 = por %p60, %p61
    %s64 = sadd.s32 %s63, 1
    %p67 = scmp.eq.s32.totalorder %s13, 2
    %p68 = scmp.ne.s32.totalorder %s63, %s65
    %p69 = scmp.eq.s32.totalorder %s13, 0
    %p70 = por %p68, %p69
    %p71 = scmp.ne.s32.totalorder %s63, %s65
    %p72 = scmp.eq.s32.totalorder %s18, 2
    %p73 = por %p71, %p72
    %p74 = scmp.ne.s32.totalorder %s65, %s66
    %p75 = scmp.eq.s32.totalorder %s18, 0
    %p76 = por %p74, %p75
    %p77 = scmp.ne.s32.totalorder %s65, %s66
    %p78 = scmp.eq.s32.totalorder %s19, 2
    %p79 = por %p77, %p78
    %p81 = scmp.ne.s32.totalorder %s66, %s80
    %p82 = scmp.eq.s32.totalorder %s19, 0
    %p83 = por %p81, %p82
    %s85 = sadd.s32 %s84, 1
    %p88 = scmp.eq.s32.totalorder %s13, 2
    %p89 = scmp.ne.s32.totalorder %s84, %s86
    %p90 = scmp.eq.s32.totalorder %s13, 0
    %p91 = por %p89, %p90
    %p92 = scmp.ne.s32.totalorder %s84, %s86
    %p93 = scmp.eq.s32.totalorder %s18, 2
    %p94 = por %p92, %p93
    %p95 = scmp.ne.s32.totalorder %s86, %s87
    %p96 = scmp.eq.s32.totalorder %s18, 0
    %p97 = por %p95, %p96
    %p98 = scmp.ne.s32.totalorder %s86, %s87
    %p99 = scmp.eq.s32.totalorder %s19, 2
    %p100 = por %p98, %p99
    %p102 = scmp.ne.s32.totalorder %s87, %s101
    %p103 = scmp.eq.s32.totalorder %s19, 0
    %p104 = por %p102, %p103
    %s105 = ssub.s32 %s13, %s20
    %p106 = scmp.eq.s32.totalorder %s105, 0
    %s108 = sadd.s32 %s107, 1
    %s109 = scalar_select %p106, %s107, %s108
    %p112 = pneg %p106
    %p113 = scmp.eq.s32.totalorder %s13, 2
    %p114 = por %p112, %p113
    %p115 = scmp.ne.s32.totalorder %s107, %s110
    %p116 = scmp.eq.s32.totalorder %s13, 0
    %p117 = por %p115, %p116
    %p118 = scmp.ne.s32.totalorder %s107, %s110
    %p119 = scmp.eq.s32.totalorder %s18, 2
    %p120 = por %p118, %p119
    %p121 = scmp.ne.s32.totalorder %s110, %s111
    %p122 = scmp.eq.s32.totalorder %s18, 0
    %p123 = por %p121, %p122
    %p124 = scmp.ne.s32.totalorder %s110, %s111
    %p125 = scmp.eq.s32.totalorder %s19, 2
    %p126 = por %p124, %p125
    %p128 = scmp.ne.s32.totalorder %s111, %s127
    %p129 = scmp.eq.s32.totalorder %s19, 0
    %p130 = por %p128, %p129
    %s131 = ssub.s32 %s13, %s20
    %p132 = scmp.eq.s32.totalorder %s131, 0
    %s134 = sadd.s32 %s133, 1
    %s135 = scalar_select %p132, %s133, %s134
    %p138 = pneg %p132
    %p139 = scmp.eq.s32.totalorder %s13, 2
    %p140 = por %p138, %p139
    %p141 = scmp.ne.s32.totalorder %s133, %s136
    %p142 = scmp.eq.s32.totalorder %s13, 0
    %p143 = por %p141, %p142
    %p144 = scmp.ne.s32.totalorder %s133, %s136
    %p145 = scmp.eq.s32.totalorder %s18, 2
    %p146 = por %p144, %p145
    %p147 = scmp.ne.s32.totalorder %s136, %s137
    %p148 = scmp.eq.s32.totalorder %s18, 0
    %p149 = por %p147, %p148
    %p150 = scmp.ne.s32.totalorder %s136, %s137
    %p151 = scmp.eq.s32.totalorder %s19, 2
    %p152 = por %p150, %p151
    %p154 = scmp.ne.s32.totalorder %s137, %s153
    %p155 = scmp.eq.s32.totalorder %s19, 0
    %p156 = por %p154, %p155
    %s157 = ssub.s32 %s13, %s20
    %p158 = scmp.eq.s32.totalorder %s157, 0
    %s160 = sadd.s32 %s159, 1
    %s161 = scalar_select %p158, %s159, %s160
    %p164 = pneg %p158
    %p165 = scmp.eq.s32.totalorder %s13, 2
    %p166 = por %p164, %p165
    %p167 = scmp.ne.s32.totalorder %s159, %s162
    %p168 = scmp.eq.s32.totalorder %s13, 0
    %p169 = por %p167, %p168
    %p170 = scmp.ne.s32.totalorder %s159, %s162
    %p171 = scmp.eq.s32.totalorder %s18, 2
    %p172 = por %p170, %p171
    %p173 = scmp.ne.s32.totalorder %s162, %s163
    %p174 = scmp.eq.s32.totalorder %s18, 0
    %p175 = por %p173, %p174
    %p176 = scmp.ne.s32.totalorder %s162, %s163
    %p177 = scmp.eq.s32.totalorder %s19, 2
    %p178 = por %p176, %p177
    %p180 = scmp.ne.s32.totalorder %s163, %s179
    %p181 = scmp.eq.s32.totalorder %s19, 0
    %p182 = por %p180, %p181
    %s183 = ssub.s32 %s13, %s20
    %p184 = scmp.eq.s32.totalorder %s183, 0
    %s186 = sadd.s32 %s185, 1
    %s187 = scalar_select %p184, %s185, %s186
    %p190 = pneg %p184
    %p191 = scmp.eq.s32.totalorder %s13, 2
    %p192 = por %p190, %p191
    %p193 = scmp.ne.s32.totalorder %s185, %s188
    %p194 = scmp.eq.s32.totalorder %s13, 0
    %p195 = por %p193, %p194
    %p196 = scmp.ne.s32.totalorder %s185, %s188
    %p197 = scmp.eq.s32.totalorder %s18, 2
    %p198 = por %p196, %p197
    %p199 = scmp.ne.s32.totalorder %s188, %s189
    %p200 = scmp.eq.s32.totalorder %s18, 0
    %p201 = por %p199, %p200
    %p202 = scmp.ne.s32.totalorder %s188, %s189
    %p203 = scmp.eq.s32.totalorder %s19, 2
    %p204 = por %p202, %p203
    %p206 = scmp.ne.s32.totalorder %s189, %s205
    %p207 = scmp.eq.s32.totalorder %s19, 0
    %p208 = por %p206, %p207
    %p209 = scmp.le.s32.totalorder 1, %s13
    %p210 = scmp.lt.s32.totalorder %s13, 4
    %p211 = pnand %p209, %p210
    %p212 = pneg %p211
    // Predicated region
    $region9: #{fused_forward.1} parent=5 // pred_check
      _
    $region10: #{fused_forward.1} parent=5 // pred_check_branch
      %214 = sbr.rel (%p211) target = $region12
    $region11: #{fused_forward.1} parent=5 // pred_region
      %s215 = ssub.s32 %s13, 1
      // Predicated region
      $region13: #{fused_forward.1} parent=11 // pred_check
        %p216 = pneg %p34
      $region14: #{fused_forward.1} parent=11 // pred_check_branch
        %218 = sbr.rel (%p216) target = $region16
      $region15: #{fused_forward.1} parent=11 // pred_region
        _
      $region16: #{fused_forward.1} parent=11 // pred_fallthru
        _
      // Predicated region
      $region17: #{fused_forward.1} parent=11 // pred_check
        %p219 = pneg %p55
      $region18: #{fused_forward.1} parent=11 // pred_check_branch
        %221 = sbr.rel (%p219) target = $region20
      $region19: #{fused_forward.1} parent=11 // pred_region
        _
      $region20: #{fused_forward.1} parent=11 // pred_fallthru
        _
      // Predicated region
      $region21: #{fused_forward.1} parent=11 // pred_check
        %p222 = pneg %p76
      $region22: #{fused_forward.1} parent=11 // pred_check_branch
        %224 = sbr.rel (%p222) target = $region24
      $region23: #{fused_forward.1} parent=11 // pred_region
        _
      $region24: #{fused_forward.1} parent=11 // pred_fallthru
        _
      // Predicated region
      $region25: #{fused_forward.1} parent=11 // pred_check
        %p225 = pneg %p97
      $region26: #{fused_forward.1} parent=11 // pred_check_branch
        %227 = sbr.rel (%p225) target = $region28
      $region27: #{fused_forward.1} parent=11 // pred_region
        _
      $region28: #{fused_forward.1} parent=11 // pred_fallthru
        _
    $region12: #{fused_forward.1} parent=5 // pred_fallthru
      _
    %p228 = scmp.lt.s32.totalorder %s13, 3
    // Predicated region
    $region29: #{fused_forward.1} parent=5 // pred_check
      %p229 = pneg %p228
    $region30: #{fused_forward.1} parent=5 // pred_check_branch
      %231 = sbr.rel (%p229) target = $region32
    $region31: #{fused_forward.1} parent=5 // pred_region
      // Predicated region
      $region33: #{fused_forward.1} parent=31 // pred_check
        %p232 = pneg %p117
      $region34: #{fused_forward.1} parent=31 // pred_check_branch
        %234 = sbr.rel (%p232) target = $region36
      $region35: #{fused_forward.1} parent=31 // pred_region
        %s235 = smul.u32 16, %s13
        %p236 = scmp.lt.s32.totalorder %s235, 47
        %s237 = scalar_select %p236, %s235, 47
        %s238 = smul.addr %s237, 18
        %s239 = smul.addr %s238, 8
        %s240 = scalar_lea.vmem %s4, %s239
        %s241 = smul.u32 16, %s13
      $region36: #{fused_forward.1} parent=31 // pred_fallthru
        _
      // Predicated region
      $region37: #{fused_forward.1} parent=31 // pred_check
        %p242 = pneg %p143
      $region38: #{fused_forward.1} parent=31 // pred_check_branch
        %244 = sbr.rel (%p242) target = $region40
      $region39: #{fused_forward.1} parent=31 // pred_region
        %s245 = smul.u32 16, %s13
        %p246 = scmp.lt.s32.totalorder %s245, 47
        %s247 = scalar_select %p246, %s245, 47
        %s248 = smul.addr %s247, 8
        %s249 = scalar_lea.vmem %s5, %s248
        %s250 = smul.u32 16, %s13
      $region40: #{fused_forward.1} parent=31 // pred_fallthru
        _
      // Predicated region
      $region41: #{fused_forward.1} parent=31 // pred_check
        %p251 = pneg %p169
      $region42: #{fused_forward.1} parent=31 // pred_check_branch
        %253 = sbr.rel (%p251) target = $region44
      $region43: #{fused_forward.1} parent=31 // pred_region
        %s254 = smul.u32 16, %s13
        %p255 = scmp.lt.s32.totalorder %s254, 47
        %s256 = scalar_select %p255, %s254, 47
        %s257 = smul.addr %s256, 8
        %s258 = scalar_lea.vmem %s6, %s257
        %s259 = smul.u32 16, %s13
      $region44: #{fused_forward.1} parent=31 // pred_fallthru
        _
    $region32: #{fused_forward.1} parent=5 // pred_fallthru
      _
    %p260 = scmp.le.s32.totalorder 1, %s13
    %p261 = scmp.lt.s32.totalorder %s13, 4
    %p262 = pnand %p260, %p261
    %p263 = pneg %p262
    // Predicated region
    $region45: #{fused_forward.1} parent=5 // pred_check
      _
    $region46: #{fused_forward.1} parent=5 // pred_check_branch
      %265 = sbr.rel (%p262) target = $region48
    $region47: #{fused_forward.1} parent=5 // pred_region
      %s266 = ssub.s32 %s13, 1
      %p267 = pneg %p34
      %p268 = pneg %p31
      %p269 = pneg %p55
      %p270 = pneg %p52
      %p271 = pneg %p76
      %p272 = pneg %p73
      %p273 = pneg %p97
      %p274 = pneg %p94
      %s275 = smul.u32 16, %s18
      %p276 = scmp.lt.s32.totalorder %s275, 47
      %s277 = scalar_select %p276, %s275, 47
      %s278 = smul.addr %s277, 18
      %s279 = smul.addr %s278, 8
      %s280 = scalar_lea.vmem %s4, %s279
      %p281 = pneg %p123
      %p282 = pneg %p120
      %s283 = smul.u32 16, %s18
      %p284 = scmp.lt.s32.totalorder %s283, 47
      %s285 = scalar_select %p284, %s283, 47
      %s286 = smul.addr %s285, 8
      %s287 = scalar_lea.vmem %s5, %s286
      %p288 = pneg %p149
      %p289 = pneg %p146
      %s290 = smul.u32 16, %s18
      %p291 = scmp.lt.s32.totalorder %s290, 47
      %s292 = scalar_select %p291, %s290, 47
      %s293 = smul.addr %s292, 8
      %s294 = scalar_lea.vmem %s6, %s293
      %p295 = pneg %p175
      %p296 = pneg %p172
      %p297 = pneg %p201
      %p298 = pneg %p198
      %s299 = smul.u32 16, %s18
      %p300 = scmp.lt.s32.totalorder %s299, 47
      %s301 = scalar_select %p300, %s299, 47
      %s302 = smul.addr %s301, 8
      %s303 = scalar_lea.vmem %s7, %s302
      %s304 = smul.u32 16, %s18
      %p305 = scmp.lt.s32.totalorder %s304, 47
      %s306 = scalar_select %p305, %s304, 47
      %s307 = smul.addr %s306, 18
      %s308 = smul.addr %s307, 8
      %s309 = scalar_lea.vmem %s4, %s308
      %s310 = smul.u32 16, %s18
      %s311 = smul.u32 16, %s18
      %p312 = scmp.lt.s32.totalorder %s311, 47
      %s313 = scalar_select %p312, %s311, 47
      %s314 = smul.addr %s313, 8
      %s315 = scalar_lea.vmem %s5, %s314
      %s316 = smul.u32 16, %s18
      %s317 = smul.u32 16, %s18
      %p318 = scmp.lt.s32.totalorder %s317, 47
      %s319 = scalar_select %p318, %s317, 47
      %s320 = smul.addr %s319, 8
      %s321 = scalar_lea.vmem %s6, %s320
      %s322 = smul.u32 16, %s18
      %s323 = smul.u32 16, %s18
      %p324 = scmp.lt.s32.totalorder %s323, 47
      %s325 = scalar_select %p324, %s323, 47
      %s326 = smul.addr %s325, 8
      %s327 = scalar_lea.vmem %s7, %s326
      %s328 = smul.u32 16, %s18
      %v329 = vld [vmem:[%s0] sm:$0x1]
      %v330 = vld [vmem:[%s1] sm:$0xff]
      %v331 = vld [vmem:[%s1 + $0x8] sm:$0xff]
      %v332 = vld [vmem:[%s1 + $0x10] sm:$0xff]
      %v333 = vld [vmem:[%s1 + $0x18] sm:$0xff]
      %v334 = vld [vmem:[%s1 + $0x20] sm:$0xff]
      %v335 = vld [vmem:[%s1 + $0x28] sm:$0xff]
      %v336 = vld [vmem:[%s1 + $0x30] sm:$0xff]
      %v337 = vld [vmem:[%s1 + $0x38] sm:$0xff]
      %v338 = vld [vmem:[%s1 + $0x40] sm:$0xff]
      %v339 = vld [vmem:[%s1 + $0x48] sm:$0xff]
      %v340 = vld [vmem:[%s1 + $0x50] sm:$0xff]
      %v341 = vld [vmem:[%s1 + $0x58] sm:$0xff]
      %v342 = vld [vmem:[%s1 + $0x60] sm:$0xff]
      %v343 = vld [vmem:[%s1 + $0x68] sm:$0xff]
      %v344 = vld [vmem:[%s1 + $0x70] sm:$0xff]
      %v345 = vld [vmem:[%s1 + $0x78] sm:$0xff]
      %v346 = vld [vmem:[%s1 + $0x80] sm:$0xff]
      %v347 = vld [vmem:[%s1 + $0x88] sm:$0xff]
      %v348 = vld [vmem:[%s1 + $0x90] sm:$0xff]
      %v349 = vld [vmem:[%s1 + $0x98] sm:$0xff]
      %v350 = vld [vmem:[%s1 + $0xa0] sm:$0xff]
      %v351 = vld [vmem:[%s1 + $0xa8] sm:$0xff]
      %v352 = vld [vmem:[%s1 + $0xb0] sm:$0xff]
      %v353 = vld [vmem:[%s1 + $0xb8] sm:$0xff]
      %v354 = vld [vmem:[%s1 + $0xc0] sm:$0xff]
      %v355 = vld [vmem:[%s1 + $0xc8] sm:$0xff]
      %v356 = vld [vmem:[%s1 + $0xd0] sm:$0xff]
      %v357 = vld [vmem:[%s1 + $0xd8] sm:$0xff]
      %v358 = vld [vmem:[%s1 + $0xe0] sm:$0xff]
      %v359 = vld [vmem:[%s1 + $0xe8] sm:$0xff]
      %v360 = vld [vmem:[%s1 + $0xf0] sm:$0xff]
      %v361 = vld [vmem:[%s1 + $0xf8] sm:$0xff]
      %v362 = vld [vmem:[%s1 + $0x100] sm:$0xff]
      %v363 = vld [vmem:[%s1 + $0x108] sm:$0xff]
      %v364 = vld [vmem:[%s1 + $0x110] sm:$0xff]
      %v365 = vld [vmem:[%s1 + $0x118] sm:$0xff]
      %v366 = vld [vmem:[%s1 + $0x120] sm:$0xff]
      %v367 = vld [vmem:[%s1 + $0x128] sm:$0xff]
      %v368 = vld [vmem:[%s1 + $0x130] sm:$0xff]
      %v369 = vld [vmem:[%s1 + $0x138] sm:$0xff]
      %v370 = vld [vmem:[%s1 + $0x140] sm:$0xff]
      %v371 = vld [vmem:[%s1 + $0x148] sm:$0xff]
      %v372 = vld [vmem:[%s1 + $0x150] sm:$0xff]
      %v373 = vld [vmem:[%s1 + $0x158] sm:$0xff]
      %v374 = vld [vmem:[%s1 + $0x160] sm:$0xff]
      %v375 = vld [vmem:[%s1 + $0x168] sm:$0xff]
      %v376 = vld [vmem:[%s1 + $0x170] sm:$0xff]
      %v377 = vld [vmem:[%s1 + $0x178] sm:$0xff]
      %v378 = vld [vmem:[%s1 + $0x180] sm:$0xff]
      %v379 = vld [vmem:[%s1 + $0x188] sm:$0xff]
      %v380 = vld [vmem:[%s1 + $0x190] sm:$0xff]
      %v381 = vld [vmem:[%s1 + $0x198] sm:$0xff]
      %v382 = vld [vmem:[%s1 + $0x1a0] sm:$0xff]
      %v383 = vld [vmem:[%s1 + $0x1a8] sm:$0xff]
      %v384 = vld [vmem:[%s1 + $0x1b0] sm:$0xff]
      %v385 = vld [vmem:[%s1 + $0x1b8] sm:$0xff]
      %v386 = vld [vmem:[%s1 + $0x1c0] sm:$0xff]
      %v387 = vld [vmem:[%s1 + $0x1c8] sm:$0xff]
      %v388 = vld [vmem:[%s1 + $0x1d0] sm:$0xff]
      %v389 = vld [vmem:[%s1 + $0x1d8] sm:$0xff]
      %v390 = vld [vmem:[%s1 + $0x1e0] sm:$0xff]
      %v391 = vld [vmem:[%s1 + $0x1e8] sm:$0xff]
      %v392 = vld [vmem:[%s1 + $0x1f0] sm:$0xff]
      %v393 = vld [vmem:[%s1 + $0x1f8] sm:$0xff]
      %v394 = vld [vmem:[%s1 + $0x200] sm:$0xff]
      %v395 = vld [vmem:[%s1 + $0x208] sm:$0xff]
      %v396 = vld [vmem:[%s1 + $0x210] sm:$0xff]
      %v397 = vld [vmem:[%s1 + $0x218] sm:$0xff]
      %v398 = vld [vmem:[%s1 + $0x220] sm:$0xff]
      %v399 = vld [vmem:[%s1 + $0x228] sm:$0xff]
      %v400 = vld [vmem:[%s1 + $0x230] sm:$0xff]
      %v401 = vld [vmem:[%s1 + $0x238] sm:$0xff]
      %v402 = vld [vmem:[%s1 + $0x240] sm:$0xff]
      %v403 = vld [vmem:[%s1 + $0x248] sm:$0xff]
      %v404 = vld [vmem:[%s1 + $0x250] sm:$0xff]
      %v405 = vld [vmem:[%s1 + $0x258] sm:$0xff]
      %v406 = vld [vmem:[%s1 + $0x260] sm:$0xff]
      %v407 = vld [vmem:[%s1 + $0x268] sm:$0xff]
      %v408 = vld [vmem:[%s1 + $0x270] sm:$0xff]
      %v409 = vld [vmem:[%s1 + $0x278] sm:$0xff]
      %v410 = vld [vmem:[%s1 + $0x280] sm:$0xff]
      %v411 = vld [vmem:[%s1 + $0x288] sm:$0xff]
      %v412 = vld [vmem:[%s1 + $0x290] sm:$0xff]
      %v413 = vld [vmem:[%s1 + $0x298] sm:$0xff]
      %v414 = vld [vmem:[%s1 + $0x2a0] sm:$0xff]
      %v415 = vld [vmem:[%s1 + $0x2a8] sm:$0xff]
      %v416 = vld [vmem:[%s1 + $0x2b0] sm:$0xff]
      %v417 = vld [vmem:[%s1 + $0x2b8] sm:$0xff]
      %v418 = vld [vmem:[%s1 + $0x2c0] sm:$0xff]
      %v419 = vld [vmem:[%s1 + $0x2c8] sm:$0xff]
      %v420 = vld [vmem:[%s1 + $0x2d0] sm:$0xff]
      %v421 = vld [vmem:[%s1 + $0x2d8] sm:$0xff]
      %v422 = vld [vmem:[%s1 + $0x2e0] sm:$0xff]
      %v423 = vld [vmem:[%s1 + $0x2e8] sm:$0xff]
      %v424 = vld [vmem:[%s1 + $0x2f0] sm:$0xff]
      %v425 = vld [vmem:[%s1 + $0x2f8] sm:$0xff]
      %v426 = vld [vmem:[%s1 + $0x300] sm:$0xff]
      %v427 = vld [vmem:[%s1 + $0x308] sm:$0xff]
      %v428 = vld [vmem:[%s1 + $0x310] sm:$0xff]
      %v429 = vld [vmem:[%s1 + $0x318] sm:$0xff]
      %v430 = vld [vmem:[%s1 + $0x320] sm:$0xff]
      %v431 = vld [vmem:[%s1 + $0x328] sm:$0xff]
      %v432 = vld [vmem:[%s1 + $0x330] sm:$0xff]
      %v433 = vld [vmem:[%s1 + $0x338] sm:$0xff]
      %v434 = vld [vmem:[%s1 + $0x340] sm:$0xff]
      %v435 = vld [vmem:[%s1 + $0x348] sm:$0xff]
      %v436 = vld [vmem:[%s1 + $0x350] sm:$0xff]
      %v437 = vld [vmem:[%s1 + $0x358] sm:$0xff]
      %v438 = vld [vmem:[%s1 + $0x360] sm:$0xff]
      %v439 = vld [vmem:[%s1 + $0x368] sm:$0xff]
      %v440 = vld [vmem:[%s1 + $0x370] sm:$0xff]
      %v441 = vld [vmem:[%s1 + $0x378] sm:$0xff]
      %v442 = vld [vmem:[%s1 + $0x380] sm:$0xff]
      %v443 = vld [vmem:[%s1 + $0x388] sm:$0xff]
      %v444 = vld [vmem:[%s1 + $0x390] sm:$0xff]
      %v445 = vld [vmem:[%s1 + $0x398] sm:$0xff]
      %v446 = vld [vmem:[%s1 + $0x3a0] sm:$0xff]
      %v447 = vld [vmem:[%s1 + $0x3a8] sm:$0xff]
      %v448 = vld [vmem:[%s1 + $0x3b0] sm:$0xff]
      %v449 = vld [vmem:[%s1 + $0x3b8] sm:$0xff]
      %v450 = vld [vmem:[%s1 + $0x3c0] sm:$0xff]
      %v451 = vld [vmem:[%s1 + $0x3c8] sm:$0xff]
      %v452 = vld [vmem:[%s1 + $0x3d0] sm:$0xff]
      %v453 = vld [vmem:[%s1 + $0x3d8] sm:$0xff]
      %v454 = vld [vmem:[%s1 + $0x3e0] sm:$0xff]
      %v455 = vld [vmem:[%s1 + $0x3e8] sm:$0xff]
      %v456 = vld [vmem:[%s1 + $0x3f0] sm:$0xff]
      %v457 = vld [vmem:[%s1 + $0x3f8] sm:$0xff]
      %v458 = vld [vmem:[%s1 + $0x400] sm:$0xff]
      %v459 = vld [vmem:[%s1 + $0x408] sm:$0xff]
      %v460 = vld [vmem:[%s1 + $0x410] sm:$0xff]
      %v461 = vld [vmem:[%s1 + $0x418] sm:$0xff]
      %v462 = vld [vmem:[%s1 + $0x420] sm:$0xff]
      %v463 = vld [vmem:[%s1 + $0x428] sm:$0xff]
      %v464 = vld [vmem:[%s1 + $0x430] sm:$0xff]
      %v465 = vld [vmem:[%s1 + $0x438] sm:$0xff]
      %v466 = vld [vmem:[%s1 + $0x440] sm:$0xff]
      %v467 = vld [vmem:[%s1 + $0x448] sm:$0xff]
      %v468 = vld [vmem:[%s1 + $0x450] sm:$0xff]
      %v469 = vld [vmem:[%s1 + $0x458] sm:$0xff]
      %v470 = vld [vmem:[%s1 + $0x460] sm:$0xff]
      %v471 = vld [vmem:[%s1 + $0x468] sm:$0xff]
      %v472 = vld [vmem:[%s1 + $0x470] sm:$0xff]
      %v473 = vld [vmem:[%s1 + $0x478] sm:$0xff]
      %v474 = vld [vmem:[%s1 + $0x480] sm:$0xff]
      %v475 = vld [vmem:[%s1 + $0x488] sm:$0xff]
      %v476 = vld [vmem:[%s1 + $0x490] sm:$0xff]
      %v477 = vld [vmem:[%s1 + $0x498] sm:$0xff]
      %v478 = vld [vmem:[%s1 + $0x4a0] sm:$0xff]
      %v479 = vld [vmem:[%s1 + $0x4a8] sm:$0xff]
      %v480 = vld [vmem:[%s1 + $0x4b0] sm:$0xff]
      %v481 = vld [vmem:[%s1 + $0x4b8] sm:$0xff]
      %v482 = vld [vmem:[%s1 + $0x4c0] sm:$0xff]
      %v483 = vld [vmem:[%s1 + $0x4c8] sm:$0xff]
      %v484 = vld [vmem:[%s1 + $0x4d0] sm:$0xff]
      %v485 = vld [vmem:[%s1 + $0x4d8] sm:$0xff]
      %v486 = vld [vmem:[%s1 + $0x4e0] sm:$0xff]
      %v487 = vld [vmem:[%s1 + $0x4e8] sm:$0xff]
      %v488 = vld [vmem:[%s1 + $0x4f0] sm:$0xff]
      %v489 = vld [vmem:[%s1 + $0x4f8] sm:$0xff]
      %v490 = vld [vmem:[%s1 + $0x500] sm:$0xff]
      %v491 = vld [vmem:[%s1 + $0x508] sm:$0xff]
      %v492 = vld [vmem:[%s1 + $0x510] sm:$0xff]
      %v493 = vld [vmem:[%s1 + $0x518] sm:$0xff]
      %v494 = vld [vmem:[%s1 + $0x520] sm:$0xff]
      %v495 = vld [vmem:[%s1 + $0x528] sm:$0xff]
      %v496 = vld [vmem:[%s1 + $0x530] sm:$0xff]
      %v497 = vld [vmem:[%s1 + $0x538] sm:$0xff]
      %v498 = vld [vmem:[%s1 + $0x540] sm:$0xff]
      %v499 = vld [vmem:[%s1 + $0x548] sm:$0xff]
      %v500 = vld [vmem:[%s1 + $0x550] sm:$0xff]
      %v501 = vld [vmem:[%s1 + $0x558] sm:$0xff]
      %v502 = vld [vmem:[%s1 + $0x560] sm:$0xff]
      %v503 = vld [vmem:[%s1 + $0x568] sm:$0xff]
      %v504 = vld [vmem:[%s1 + $0x570] sm:$0xff]
      %v505 = vld [vmem:[%s1 + $0x578] sm:$0xff]
      %v506 = vld [vmem:[%s1 + $0x580] sm:$0xff]
      %v507 = vld [vmem:[%s1 + $0x588] sm:$0xff]
      %v508 = vld [vmem:[%s1 + $0x590] sm:$0xff]
      %v509 = vld [vmem:[%s1 + $0x598] sm:$0xff]
      %v510 = vld [vmem:[%s1 + $0x5a0] sm:$0xff]
      %v511 = vld [vmem:[%s1 + $0x5a8] sm:$0xff]
      %v512 = vld [vmem:[%s1 + $0x5b0] sm:$0xff]
      %v513 = vld [vmem:[%s1 + $0x5b8] sm:$0xff]
      %v514 = vld [vmem:[%s1 + $0x5c0] sm:$0xff]
      %v515 = vld [vmem:[%s1 + $0x5c8] sm:$0xff]
      %v516 = vld [vmem:[%s1 + $0x5d0] sm:$0xff]
      %v517 = vld [vmem:[%s1 + $0x5d8] sm:$0xff]
      %v518 = vld [vmem:[%s1 + $0x5e0] sm:$0xff]
      %v519 = vld [vmem:[%s1 + $0x5e8] sm:$0xff]
      %v520 = vld [vmem:[%s1 + $0x5f0] sm:$0xff]
      %v521 = vld [vmem:[%s1 + $0x5f8] sm:$0xff]
      %v522 = vld [vmem:[%s1 + $0x600] sm:$0xff]
      %v523 = vld [vmem:[%s1 + $0x608] sm:$0xff]
      %v524 = vld [vmem:[%s1 + $0x610] sm:$0xff]
      %v525 = vld [vmem:[%s1 + $0x618] sm:$0xff]
      %v526 = vld [vmem:[%s1 + $0x620] sm:$0xff]
      %v527 = vld [vmem:[%s1 + $0x628] sm:$0xff]
      %v528 = vld [vmem:[%s1 + $0x630] sm:$0xff]
      %v529 = vld [vmem:[%s1 + $0x638] sm:$0xff]
      %v530 = vld [vmem:[%s1 + $0x640] sm:$0xff]
      %v531 = vld [vmem:[%s1 + $0x648] sm:$0xff]
      %v532 = vld [vmem:[%s1 + $0x650] sm:$0xff]
      %v533 = vld [vmem:[%s1 + $0x658] sm:$0xff]
      %v534 = vld [vmem:[%s1 + $0x660] sm:$0xff]
      %v535 = vld [vmem:[%s1 + $0x668] sm:$0xff]
      %v536 = vld [vmem:[%s1 + $0x670] sm:$0xff]
      %v537 = vld [vmem:[%s1 + $0x678] sm:$0xff]
      %v538 = vld [vmem:[%s1 + $0x680] sm:$0xff]
      %v539 = vld [vmem:[%s1 + $0x688] sm:$0xff]
      %v540 = vld [vmem:[%s1 + $0x690] sm:$0xff]
      %v541 = vld [vmem:[%s1 + $0x698] sm:$0xff]
      %v542 = vld [vmem:[%s1 + $0x6a0] sm:$0xff]
      %v543 = vld [vmem:[%s1 + $0x6a8] sm:$0xff]
      %v544 = vld [vmem:[%s1 + $0x6b0] sm:$0xff]
      %v545 = vld [vmem:[%s1 + $0x6b8] sm:$0xff]
      %v546 = vld [vmem:[%s1 + $0x6c0] sm:$0xff]
      %v547 = vld [vmem:[%s1 + $0x6c8] sm:$0xff]
      %v548 = vld [vmem:[%s1 + $0x6d0] sm:$0xff]
      %v549 = vld [vmem:[%s1 + $0x6d8] sm:$0xff]
      %v550 = vld [vmem:[%s1 + $0x6e0] sm:$0xff]
      %v551 = vld [vmem:[%s1 + $0x6e8] sm:$0xff]
      %v552 = vld [vmem:[%s1 + $0x6f0] sm:$0xff]
      %v553 = vld [vmem:[%s1 + $0x6f8] sm:$0xff]
      %v554 = vld [vmem:[%s1 + $0x700] sm:$0xff]
      %v555 = vld [vmem:[%s1 + $0x708] sm:$0xff]
      %v556 = vld [vmem:[%s1 + $0x710] sm:$0xff]
      %v557 = vld [vmem:[%s1 + $0x718] sm:$0xff]
      %v558 = vld [vmem:[%s1 + $0x720] sm:$0xff]
      %v559 = vld [vmem:[%s1 + $0x728] sm:$0xff]
      %v560 = vld [vmem:[%s1 + $0x730] sm:$0xff]
      %v561 = vld [vmem:[%s1 + $0x738] sm:$0xff]
      %v562 = vld [vmem:[%s1 + $0x740] sm:$0xff]
      %v563 = vld [vmem:[%s1 + $0x748] sm:$0xff]
      %v564 = vld [vmem:[%s1 + $0x750] sm:$0xff]
      %v565 = vld [vmem:[%s1 + $0x758] sm:$0xff]
      %v566 = vld [vmem:[%s1 + $0x760] sm:$0xff]
      %v567 = vld [vmem:[%s1 + $0x768] sm:$0xff]
      %v568 = vld [vmem:[%s1 + $0x770] sm:$0xff]
      %v569 = vld [vmem:[%s1 + $0x778] sm:$0xff]
      %v570 = vld [vmem:[%s1 + $0x780] sm:$0xff]
      %v571 = vld [vmem:[%s1 + $0x788] sm:$0xff]
      %v572 = vld [vmem:[%s1 + $0x790] sm:$0xff]
      %v573 = vld [vmem:[%s1 + $0x798] sm:$0xff]
      %v574 = vld [vmem:[%s1 + $0x7a0] sm:$0xff]
      %v575 = vld [vmem:[%s1 + $0x7a8] sm:$0xff]
      %v576 = vld [vmem:[%s1 + $0x7b0] sm:$0xff]
      %v577 = vld [vmem:[%s1 + $0x7b8] sm:$0xff]
      %v578 = vld [vmem:[%s1 + $0x7c0] sm:$0xff]
      %v579 = vld [vmem:[%s1 + $0x7c8] sm:$0xff]
      %v580 = vld [vmem:[%s1 + $0x7d0] sm:$0xff]
      %v581 = vld [vmem:[%s1 + $0x7d8] sm:$0xff]
      %v582 = vld [vmem:[%s1 + $0x7e0] sm:$0xff]
      %v583 = vld [vmem:[%s1 + $0x7e8] sm:$0xff]
      %v584 = vld [vmem:[%s1 + $0x7f0] sm:$0xff]
      %v585 = vld [vmem:[%s1 + $0x7f8] sm:$0xff]
      %v586 = vld [vmem:[%s1 + $0x800] sm:$0xff]
      %v587 = vld [vmem:[%s1 + $0x808] sm:$0xff]
      %v588 = vld [vmem:[%s1 + $0x810] sm:$0xff]
      %v589 = vld [vmem:[%s1 + $0x818] sm:$0xff]
      %v590 = vld [vmem:[%s1 + $0x820] sm:$0xff]
      %v591 = vld [vmem:[%s1 + $0x828] sm:$0xff]
      %v592 = vld [vmem:[%s1 + $0x830] sm:$0xff]
      %v593 = vld [vmem:[%s1 + $0x838] sm:$0xff]
      %v594 = vld [vmem:[%s1 + $0x840] sm:$0xff]
      %v595 = vld [vmem:[%s1 + $0x848] sm:$0xff]
      %v596 = vld [vmem:[%s1 + $0x850] sm:$0xff]
      %v597 = vld [vmem:[%s1 + $0x858] sm:$0xff]
      %v598 = vld [vmem:[%s1 + $0x860] sm:$0xff]
      %v599 = vld [vmem:[%s1 + $0x868] sm:$0xff]
      %v600 = vld [vmem:[%s1 + $0x870] sm:$0xff]
      %v601 = vld [vmem:[%s1 + $0x878] sm:$0xff]
      %v602 = vld [vmem:[%s1 + $0x880] sm:$0xff]
      %v603 = vld [vmem:[%s1 + $0x888] sm:$0xff]
      %v604 = vld [vmem:[%s1 + $0x890] sm:$0xff]
      %v605 = vld [vmem:[%s1 + $0x898] sm:$0xff]
      %v606 = vld [vmem:[%s1 + $0x8a0] sm:$0xff]
      %v607 = vld [vmem:[%s1 + $0x8a8] sm:$0xff]
      %v608 = vld [vmem:[%s1 + $0x8b0] sm:$0xff]
      %v609 = vld [vmem:[%s1 + $0x8b8] sm:$0xff]
      %v610 = vld [vmem:[%s1 + $0x8c0] sm:$0xff]
      %v611 = vld [vmem:[%s1 + $0x8c8] sm:$0xff]
      %v612 = vld [vmem:[%s1 + $0x8d0] sm:$0xff]
      %v613 = vld [vmem:[%s1 + $0x8d8] sm:$0xff]
      %v614 = vld [vmem:[%s1 + $0x8e0] sm:$0xff]
      %v615 = vld [vmem:[%s1 + $0x8e8] sm:$0xff]
      %v616 = vld [vmem:[%s1 + $0x8f0] sm:$0xff]
      %v617 = vld [vmem:[%s1 + $0x8f8] sm:$0xff]
      %v618 = vld [vmem:[%s2] sm:$0xff]
      %v619 = vld [vmem:[%s2 + $0x8] sm:$0xff]
      %v620 = vld [vmem:[%s2 + $0x10] sm:$0x3]
      %v624 = vlaneseq
      %v625 = vshrl.u32 %v624, 7
      %v626 = vsub.s32 0, %v625
      %v627 = vrot.slane %v618, %v626
      %v628 = vlaneseq
      %v629 = vshrl.u32 %v628, 7
      %v630 = vsub.s32 1, %v629
      %v631 = vrot.slane %v618, %v630
      %v632 = vlaneseq
      %v633 = vshrl.u32 %v632, 7
      %v634 = vsub.s32 2, %v633
      %v635 = vrot.slane %v618, %v634
      %v636 = vlaneseq
      %v637 = vshrl.u32 %v636, 7
      %v638 = vsub.s32 3, %v637
      %v639 = vrot.slane %v618, %v638
      %v640 = vlaneseq
      %v641 = vshrl.u32 %v640, 7
      %v642 = vsub.s32 4, %v641
      %v643 = vrot.slane %v618, %v642
      %v644 = vlaneseq
      %v645 = vshrl.u32 %v644, 7
      %v646 = vsub.s32 5, %v645
      %v647 = vrot.slane %v618, %v646
      %v648 = vlaneseq
      %v649 = vshrl.u32 %v648, 7
      %v650 = vsub.s32 6, %v649
      %v651 = vrot.slane %v618, %v650
      %v652 = vlaneseq
      %v653 = vshrl.u32 %v652, 7
      %v654 = vsub.s32 7, %v653
      %v655 = vrot.slane %v618, %v654
      %v656 = vlaneseq
      %v657 = vshrl.u32 %v656, 7
      %v658 = vsub.s32 0, %v657
      %v659 = vrot.slane %v619, %v658
      %v660 = vlaneseq
      %v661 = vshrl.u32 %v660, 7
      %v662 = vsub.s32 1, %v661
      %v663 = vrot.slane %v619, %v662
      %v664 = vlaneseq
      %v665 = vshrl.u32 %v664, 7
      %v666 = vsub.s32 2, %v665
      %v667 = vrot.slane %v619, %v666
      %v668 = vlaneseq
      %v669 = vshrl.u32 %v668, 7
      %v670 = vsub.s32 3, %v669
      %v671 = vrot.slane %v619, %v670
      %v672 = vlaneseq
      %v673 = vshrl.u32 %v672, 7
      %v674 = vsub.s32 4, %v673
      %v675 = vrot.slane %v619, %v674
      %v676 = vlaneseq
      %v677 = vshrl.u32 %v676, 7
      %v678 = vsub.s32 5, %v677
      %v679 = vrot.slane %v619, %v678
      %v680 = vlaneseq
      %v681 = vshrl.u32 %v680, 7
      %v682 = vsub.s32 6, %v681
      %v683 = vrot.slane %v619, %v682
      %v684 = vlaneseq
      %v685 = vshrl.u32 %v684, 7
      %v686 = vsub.s32 7, %v685
      %v687 = vrot.slane %v619, %v686
      %v688 = vlaneseq
      %v689 = vshrl.u32 %v688, 7
      %v690 = vsub.s32 0, %v689
      %v691 = vrot.slane %v620, %v690
      %v692 = vlaneseq
      %v693 = vshrl.u32 %v692, 7
      %v694 = vsub.s32 1, %v693
      %v695 = vrot.slane %v620, %v694
      %vm714 = vcmask 785408
      %v716 = vsel %vm714, %v329, 0
      %v719 = vsel %vm714, %v330, 0
      %v722 = vsel %vm714, %v331, 0
      %v725 = vsel %vm714, %v332, 0
      %v728 = vsel %vm714, %v333, 0
      %v731 = vsel %vm714, %v334, 0
      %v734 = vsel %vm714, %v335, 0
      %v737 = vsel %vm714, %v336, 0
      %v740 = vsel %vm714, %v337, 0
      %v743 = vsel %vm714, %v338, 0
      %v746 = vsel %vm714, %v339, 0
      %v749 = vsel %vm714, %v340, 0
      %v752 = vsel %vm714, %v341, 0
      %v755 = vsel %vm714, %v342, 0
      %v758 = vsel %vm714, %v343, 0
      %v761 = vsel %vm714, %v344, 0
      %v764 = vsel %vm714, %v345, 0
      %v767 = vsel %vm714, %v346, 0
      %v770 = vsel %vm714, %v347, 0
      %v773 = vsel %vm714, %v348, 0
      %v776 = vsel %vm714, %v349, 0
      %v779 = vsel %vm714, %v350, 0
      %v782 = vsel %vm714, %v351, 0
      %v785 = vsel %vm714, %v352, 0
      %v788 = vsel %vm714, %v353, 0
      %v791 = vsel %vm714, %v354, 0
      %v794 = vsel %vm714, %v355, 0
      %v797 = vsel %vm714, %v356, 0
      %v800 = vsel %vm714, %v357, 0
      %v803 = vsel %vm714, %v358, 0
      %v806 = vsel %vm714, %v359, 0
      %v809 = vsel %vm714, %v360, 0
      %v812 = vsel %vm714, %v361, 0
      %v815 = vsel %vm714, %v362, 0
      %v818 = vsel %vm714, %v363, 0
      %v821 = vsel %vm714, %v364, 0
      %v824 = vsel %vm714, %v365, 0
      %v827 = vsel %vm714, %v366, 0
      %v830 = vsel %vm714, %v367, 0
      %v833 = vsel %vm714, %v368, 0
      %v836 = vsel %vm714, %v369, 0
      %v839 = vsel %vm714, %v370, 0
      %v842 = vsel %vm714, %v371, 0
      %v845 = vsel %vm714, %v372, 0
      %v848 = vsel %vm714, %v373, 0
      %v851 = vsel %vm714, %v374, 0
      %v854 = vsel %vm714, %v375, 0
      %v857 = vsel %vm714, %v376, 0
      %v860 = vsel %vm714, %v377, 0
      %v863 = vsel %vm714, %v378, 0
      %v866 = vsel %vm714, %v379, 0
      %v869 = vsel %vm714, %v380, 0
      %v872 = vsel %vm714, %v381, 0
      %v875 = vsel %vm714, %v382, 0
      %v878 = vsel %vm714, %v383, 0
      %v881 = vsel %vm714, %v384, 0
      %v884 = vsel %vm714, %v385, 0
      %v887 = vsel %vm714, %v386, 0
      %v890 = vsel %vm714, %v387, 0
      %v893 = vsel %vm714, %v388, 0
      %v896 = vsel %vm714, %v389, 0
      %v899 = vsel %vm714, %v390, 0
      %v902 = vsel %vm714, %v391, 0
      %v905 = vsel %vm714, %v392, 0
      %v908 = vsel %vm714, %v393, 0
      %v911 = vsel %vm714, %v394, 0
      %v914 = vsel %vm714, %v395, 0
      %v917 = vsel %vm714, %v396, 0
      %v920 = vsel %vm714, %v397, 0
      %v923 = vsel %vm714, %v398, 0
      %v926 = vsel %vm714, %v399, 0
      %v929 = vsel %vm714, %v400, 0
      %v932 = vsel %vm714, %v401, 0
      %v935 = vsel %vm714, %v402, 0
      %v938 = vsel %vm714, %v403, 0
      %v941 = vsel %vm714, %v404, 0
      %v944 = vsel %vm714, %v405, 0
      %v947 = vsel %vm714, %v406, 0
      %v950 = vsel %vm714, %v407, 0
      %v953 = vsel %vm714, %v408, 0
      %v956 = vsel %vm714, %v409, 0
      %v959 = vsel %vm714, %v410, 0
      %v962 = vsel %vm714, %v411, 0
      %v965 = vsel %vm714, %v412, 0
      %v968 = vsel %vm714, %v413, 0
      %v971 = vsel %vm714, %v414, 0
      %v974 = vsel %vm714, %v415, 0
      %v977 = vsel %vm714, %v416, 0
      %v980 = vsel %vm714, %v417, 0
      %v983 = vsel %vm714, %v418, 0
      %v986 = vsel %vm714, %v419, 0
      %v989 = vsel %vm714, %v420, 0
      %v992 = vsel %vm714, %v421, 0
      %v995 = vsel %vm714, %v422, 0
      %v998 = vsel %vm714, %v423, 0
      %v1001 = vsel %vm714, %v424, 0
      %v1004 = vsel %vm714, %v425, 0
      %v1007 = vsel %vm714, %v426, 0
      %v1010 = vsel %vm714, %v427, 0
      %v1013 = vsel %vm714, %v428, 0
      %v1016 = vsel %vm714, %v429, 0
      %v1019 = vsel %vm714, %v430, 0
      %v1022 = vsel %vm714, %v431, 0
      %v1025 = vsel %vm714, %v432, 0
      %v1028 = vsel %vm714, %v433, 0
      %v1031 = vsel %vm714, %v434, 0
      %v1034 = vsel %vm714, %v435, 0
      %v1037 = vsel %vm714, %v436, 0
      %v1040 = vsel %vm714, %v437, 0
      %v1043 = vsel %vm714, %v438, 0
      %v1046 = vsel %vm714, %v439, 0
      %v1049 = vsel %vm714, %v440, 0
      %v1052 = vsel %vm714, %v441, 0
      %v1055 = vsel %vm714, %v442, 0
      %v1058 = vsel %vm714, %v443, 0
      %v1061 = vsel %vm714, %v444, 0
      %v1064 = vsel %vm714, %v445, 0
      %v1067 = vsel %vm714, %v446, 0
      %v1070 = vsel %vm714, %v447, 0
      %v1073 = vsel %vm714, %v448, 0
      %v1076 = vsel %vm714, %v449, 0
      %v1079 = vsel %vm714, %v450, 0
      %v1082 = vsel %vm714, %v451, 0
      %v1085 = vsel %vm714, %v452, 0
      %v1088 = vsel %vm714, %v453, 0
      %v1091 = vsel %vm714, %v454, 0
      %v1094 = vsel %vm714, %v455, 0
      %v1097 = vsel %vm714, %v456, 0
      %v1100 = vsel %vm714, %v457, 0
      %v1103 = vsel %vm714, %v458, 0
      %v1106 = vsel %vm714, %v459, 0
      %v1109 = vsel %vm714, %v460, 0
      %v1112 = vsel %vm714, %v461, 0
      %v1115 = vsel %vm714, %v462, 0
      %v1118 = vsel %vm714, %v463, 0
      %v1121 = vsel %vm714, %v464, 0
      %v1124 = vsel %vm714, %v465, 0
      %v1127 = vsel %vm714, %v466, 0
      %v1130 = vsel %vm714, %v467, 0
      %v1133 = vsel %vm714, %v468, 0
      %v1136 = vsel %vm714, %v469, 0
      %v1139 = vsel %vm714, %v470, 0
      %v1142 = vsel %vm714, %v471, 0
      %v1145 = vsel %vm714, %v472, 0
      %v1148 = vsel %vm714, %v473, 0
      %v1151 = vsel %vm714, %v474, 0
      %v1154 = vsel %vm714, %v475, 0
      %v1157 = vsel %vm714, %v476, 0
      %v1160 = vsel %vm714, %v477, 0
      %v1163 = vsel %vm714, %v478, 0
      %v1166 = vsel %vm714, %v479, 0
      %v1169 = vsel %vm714, %v480, 0
      %v1172 = vsel %vm714, %v481, 0
      %v1175 = vsel %vm714, %v482, 0
      %v1178 = vsel %vm714, %v483, 0
      %v1181 = vsel %vm714, %v484, 0
      %v1184 = vsel %vm714, %v485, 0
      %v1187 = vsel %vm714, %v486, 0
      %v1190 = vsel %vm714, %v487, 0
      %v1193 = vsel %vm714, %v488, 0
      %v1196 = vsel %vm714, %v489, 0
      %v1199 = vsel %vm714, %v490, 0
      %v1202 = vsel %vm714, %v491, 0
      %v1205 = vsel %vm714, %v492, 0
      %v1208 = vsel %vm714, %v493, 0
      %v1211 = vsel %vm714, %v494, 0
      %v1214 = vsel %vm714, %v495, 0
      %v1217 = vsel %vm714, %v496, 0
      %v1220 = vsel %vm714, %v497, 0
      %v1223 = vsel %vm714, %v498, 0
      %v1226 = vsel %vm714, %v499, 0
      %v1229 = vsel %vm714, %v500, 0
      %v1232 = vsel %vm714, %v501, 0
      %v1235 = vsel %vm714, %v502, 0
      %v1238 = vsel %vm714, %v503, 0
      %v1241 = vsel %vm714, %v504, 0
      %v1244 = vsel %vm714, %v505, 0
      %v1247 = vsel %vm714, %v506, 0
      %v1250 = vsel %vm714, %v507, 0
      %v1253 = vsel %vm714, %v508, 0
      %v1256 = vsel %vm714, %v509, 0
      %v1259 = vsel %vm714, %v510, 0
      %v1262 = vsel %vm714, %v511, 0
      %v1265 = vsel %vm714, %v512, 0
      %v1268 = vsel %vm714, %v513, 0
      %v1271 = vsel %vm714, %v514, 0
      %v1274 = vsel %vm714, %v515, 0
      %v1277 = vsel %vm714, %v516, 0
      %v1280 = vsel %vm714, %v517, 0
      %v1283 = vsel %vm714, %v518, 0
      %v1286 = vsel %vm714, %v519, 0
      %v1289 = vsel %vm714, %v520, 0
      %v1292 = vsel %vm714, %v521, 0
      %v1295 = vsel %vm714, %v522, 0
      %v1298 = vsel %vm714, %v523, 0
      %v1301 = vsel %vm714, %v524, 0
      %v1304 = vsel %vm714, %v525, 0
      %v1307 = vsel %vm714, %v526, 0
      %v1310 = vsel %vm714, %v527, 0
      %v1313 = vsel %vm714, %v528, 0
      %v1316 = vsel %vm714, %v529, 0
      %v1319 = vsel %vm714, %v530, 0
      %v1322 = vsel %vm714, %v531, 0
      %v1325 = vsel %vm714, %v532, 0
      %v1328 = vsel %vm714, %v533, 0
      %v1331 = vsel %vm714, %v534, 0
      %v1334 = vsel %vm714, %v535, 0
      %v1337 = vsel %vm714, %v536, 0
      %v1340 = vsel %vm714, %v537, 0
      %v1343 = vsel %vm714, %v538, 0
      %v1346 = vsel %vm714, %v539, 0
      %v1349 = vsel %vm714, %v540, 0
      %v1352 = vsel %vm714, %v541, 0
      %v1355 = vsel %vm714, %v542, 0
      %v1358 = vsel %vm714, %v543, 0
      %v1361 = vsel %vm714, %v544, 0
      %v1364 = vsel %vm714, %v545, 0
      %v1367 = vsel %vm714, %v546, 0
      %v1370 = vsel %vm714, %v547, 0
      %v1373 = vsel %vm714, %v548, 0
      %v1376 = vsel %vm714, %v549, 0
      %v1379 = vsel %vm714, %v550, 0
      %v1382 = vsel %vm714, %v551, 0
      %v1385 = vsel %vm714, %v552, 0
      %v1388 = vsel %vm714, %v553, 0
      %v1391 = vsel %vm714, %v554, 0
      %v1394 = vsel %vm714, %v555, 0
      %v1397 = vsel %vm714, %v556, 0
      %v1400 = vsel %vm714, %v557, 0
      %v1403 = vsel %vm714, %v558, 0
      %v1406 = vsel %vm714, %v559, 0
      %v1409 = vsel %vm714, %v560, 0
      %v1412 = vsel %vm714, %v561, 0
      %v1415 = vsel %vm714, %v562, 0
      %v1418 = vsel %vm714, %v563, 0
      %v1421 = vsel %vm714, %v564, 0
      %v1424 = vsel %vm714, %v565, 0
      %v1427 = vsel %vm714, %v566, 0
      %v1430 = vsel %vm714, %v567, 0
      %v1433 = vsel %vm714, %v568, 0
      %v1436 = vsel %vm714, %v569, 0
      %v1439 = vsel %vm714, %v570, 0
      %v1442 = vsel %vm714, %v571, 0
      %v1445 = vsel %vm714, %v572, 0
      %v1448 = vsel %vm714, %v573, 0
      %v1451 = vsel %vm714, %v574, 0
      %v1454 = vsel %vm714, %v575, 0
      %v1457 = vsel %vm714, %v576, 0
      %v1460 = vsel %vm714, %v577, 0
      %v1463 = vsel %vm714, %v578, 0
      %v1466 = vsel %vm714, %v579, 0
      %v1469 = vsel %vm714, %v580, 0
      %v1472 = vsel %vm714, %v581, 0
      %v1475 = vsel %vm714, %v582, 0
      %v1478 = vsel %vm714, %v583, 0
      %v1481 = vsel %vm714, %v584, 0
      %v1484 = vsel %vm714, %v585, 0
      %v1487 = vsel %vm714, %v586, 0
      %v1490 = vsel %vm714, %v587, 0
      %v1493 = vsel %vm714, %v588, 0
      %v1496 = vsel %vm714, %v589, 0
      %v1499 = vsel %vm714, %v590, 0
      %v1502 = vsel %vm714, %v591, 0
      %v1505 = vsel %vm714, %v592, 0
      %v1508 = vsel %vm714, %v593, 0
      %v1511 = vsel %vm714, %v594, 0
      %v1514 = vsel %vm714, %v595, 0
      %v1517 = vsel %vm714, %v596, 0
      %v1520 = vsel %vm714, %v597, 0
      %v1523 = vsel %vm714, %v598, 0
      %v1526 = vsel %vm714, %v599, 0
      %v1529 = vsel %vm714, %v600, 0
      %v1532 = vsel %vm714, %v601, 0
      %v1535 = vsel %vm714, %v602, 0
      %v1538 = vsel %vm714, %v603, 0
      %v1541 = vsel %vm714, %v604, 0
      %v1544 = vsel %vm714, %v605, 0
      %v1547 = vsel %vm714, %v606, 0
      %v1550 = vsel %vm714, %v607, 0
      %v1553 = vsel %vm714, %v608, 0
      %v1556 = vsel %vm714, %v609, 0
      %v1559 = vsel %vm714, %v610, 0
      %v1562 = vsel %vm714, %v611, 0
      %v1565 = vsel %vm714, %v612, 0
      %v1568 = vsel %vm714, %v613, 0
      %v1571 = vsel %vm714, %v614, 0
      %v1574 = vsel %vm714, %v615, 0
      %v1577 = vsel %vm714, %v616, 0
      %v1580 = vsel %vm714, %v617, 0
      %1582 = vmatprep.subr.mxu0 0.0
      %1583 = vmatpush1.xpose.msra.mxu0 %v719
      %1584 = vmatprep.subr.mxu0 0.0
      %1585 = vmatpush1.xpose.msra.mxu0 %v722
      %1586 = vmatprep.subr.mxu0 0.0
      %1587 = vmatpush1.xpose.msra.mxu0 %v725
      %1588 = vmatprep.subr.mxu0 0.0
      %1589 = vmatpush1.xpose.msra.mxu0 %v728
      %1590 = vmatprep.subr.mxu0 0.0
      %1591 = vmatpush1.xpose.msra.mxu0 %v731
      %1592 = vmatprep.subr.mxu0 0.0
      %1593 = vmatpush1.xpose.msra.mxu0 %v734
      %1594 = vmatprep.subr.mxu0 0.0
      %1595 = vmatpush1.xpose.msra.mxu0 %v737
      %1596 = vmatprep.subr.mxu0 0.0
      %1597 = vmatpush1.xpose.msra.mxu0 %v740
      %1598 = vmatprep.subr.mxu0 0.0
      %1599 = vmatpush1.xpose.msra.mxu0 %v743
      %1600 = vmatprep.subr.mxu0 0.0
      %1601 = vmatpush1.xpose.msra.mxu0 %v746
      %1602 = vmatprep.subr.mxu0 0.0
      %1603 = vmatpush1.xpose.msra.mxu0 %v749
      %1604 = vmatprep.subr.mxu0 0.0
      %1605 = vmatpush1.xpose.msra.mxu0 %v752
      %1606 = vmatprep.subr.mxu0 0.0
      %1607 = vmatpush1.xpose.msra.mxu0 %v755
      %1608 = vmatprep.subr.mxu0 0.0
      %1609 = vmatpush1.xpose.msra.mxu0 %v758
      %1610 = vmatprep.subr.mxu0 0.0
      %1611 = vmatpush1.xpose.msra.mxu0 %v761
      %1612 = vmatprep.subr.mxu0 0.0
      %1613 = vmatpush1.xpose.msra.mxu0 %v764
      %1614 = vmatprep.subr.mxu0 0.0
      %1615 = vmatpush1.xpose.msra.mxu0 %v767
      %1616 = vmatprep.subr.mxu0 0.0
      %1617 = vmatpush1.xpose.msra.mxu0 %v770
      %1618 = vmatprep.subr.mxu0 0.0
      %1619 = vmatpush1.xpose.msra.mxu0 %v773
      %1620 = vmatprep.subr.mxu0 0.0
      %1621 = vmatpush1.xpose.msra.mxu0 %v776
      %1622 = vmatprep.subr.mxu0 0.0
      %1623 = vmatpush1.xpose.msra.mxu0 %v779
      %1624 = vmatprep.subr.mxu0 0.0
      %1625 = vmatpush1.xpose.msra.mxu0 %v782
      %1626 = vmatprep.subr.mxu0 0.0
      %1627 = vmatpush1.xpose.msra.mxu0 %v785
      %1628 = vmatprep.subr.mxu0 0.0
      %1629 = vmatpush1.xpose.msra.mxu0 %v788
      %1630 = vmatprep.subr.mxu0 0.0
      %1631 = vmatpush1.xpose.msra.mxu0 %v791
      %1632 = vmatprep.subr.mxu0 0.0
      %1633 = vmatpush1.xpose.msra.mxu0 %v794
      %1634 = vmatprep.subr.mxu0 0.0
      %1635 = vmatpush1.xpose.msra.mxu0 %v797
      %1636 = vmatprep.subr.mxu0 0.0
      %1637 = vmatpush1.xpose.msra.mxu0 %v800
      %1638 = vmatprep.subr.mxu0 0.0
      %1639 = vmatpush1.xpose.msra.mxu0 %v803
      %1640 = vmatprep.subr.mxu0 0.0
      %1641 = vmatpush1.xpose.msra.mxu0 %v806
      %1642 = vmatprep.subr.mxu0 0.0
      %1643 = vmatpush1.xpose.msra.mxu0 %v809
      %1644 = vmatprep.subr.mxu0 0.0
      %1645 = vmatpush1.xpose.msra.mxu0 %v812
      %1646 = vmatprep.mubr.f32.mxu0 0.0
      %1647 = vmatmul.mubr.f32.gmra.mrb[0].mxu0 %v716
      %v1648 = vpop.f32.mrb[0].mxu0
      %v1649 = vadd.f32 %v627, %v1648
      %v1650 = vpop.f32.mrb[0].mxu0
      %v1651 = vadd.f32 %v631, %v1650
      %1652 = vdwg.mxu0
      %1653 = vmatprep.subr.mxu0 0.0
      %1654 = vmatpush1.xpose.msra.mxu0 %v815
      %1655 = vmatprep.subr.mxu0 0.0
      %1656 = vmatpush1.xpose.msra.mxu0 %v818
      %1657 = vmatprep.subr.mxu0 0.0
      %1658 = vmatpush1.xpose.msra.mxu0 %v821
      %1659 = vmatprep.subr.mxu0 0.0
      %1660 = vmatpush1.xpose.msra.mxu0 %v824
      %1661 = vmatprep.subr.mxu0 0.0
      %1662 = vmatpush1.xpose.msra.mxu0 %v827
      %1663 = vmatprep.subr.mxu0 0.0
      %1664 = vmatpush1.xpose.msra.mxu0 %v830
      %1665 = vmatprep.subr.mxu0 0.0
      %1666 = vmatpush1.xpose.msra.mxu0 %v833
      %1667 = vmatprep.subr.mxu0 0.0
      %1668 = vmatpush1.xpose.msra.mxu0 %v836
      %1669 = vmatprep.subr.mxu0 0.0
      %1670 = vmatpush1.xpose.msra.mxu0 %v839
      %1671 = vmatprep.subr.mxu0 0.0
      %1672 = vmatpush1.xpose.msra.mxu0 %v842
      %1673 = vmatprep.subr.mxu0 0.0
      %1674 = vmatpush1.xpose.msra.mxu0 %v845
      %1675 = vmatprep.subr.mxu0 0.0
      %1676 = vmatpush1.xpose.msra.mxu0 %v848
      %1677 = vmatprep.subr.mxu0 0.0
      %1678 = vmatpush1.xpose.msra.mxu0 %v851
      %1679 = vmatprep.subr.mxu0 0.0
      %1680 = vmatpush1.xpose.msra.mxu0 %v854
      %1681 = vmatprep.subr.mxu0 0.0
      %1682 = vmatpush1.xpose.msra.mxu0 %v857
      %1683 = vmatprep.subr.mxu0 0.0
      %1684 = vmatpush1.xpose.msra.mxu0 %v860
      %1685 = vmatprep.subr.mxu0 0.0
      %1686 = vmatpush1.xpose.msra.mxu0 %v863
      %1687 = vmatprep.subr.mxu0 0.0
      %1688 = vmatpush1.xpose.msra.mxu0 %v866
      %1689 = vmatprep.subr.mxu0 0.0
      %1690 = vmatpush1.xpose.msra.mxu0 %v869
      %1691 = vmatprep.subr.mxu0 0.0
      %1692 = vmatpush1.xpose.msra.mxu0 %v872
      %1693 = vmatprep.subr.mxu0 0.0
      %1694 = vmatpush1.xpose.msra.mxu0 %v875
      %1695 = vmatprep.subr.mxu0 0.0
      %1696 = vmatpush1.xpose.msra.mxu0 %v878
      %1697 = vmatprep.subr.mxu0 0.0
      %1698 = vmatpush1.xpose.msra.mxu0 %v881
      %1699 = vmatprep.subr.mxu0 0.0
      %1700 = vmatpush1.xpose.msra.mxu0 %v884
      %1701 = vmatprep.subr.mxu0 0.0
      %1702 = vmatpush1.xpose.msra.mxu0 %v887
      %1703 = vmatprep.subr.mxu0 0.0
      %1704 = vmatpush1.xpose.msra.mxu0 %v890
      %1705 = vmatprep.subr.mxu0 0.0
      %1706 = vmatpush1.xpose.msra.mxu0 %v893
      %1707 = vmatprep.subr.mxu0 0.0
      %1708 = vmatpush1.xpose.msra.mxu0 %v896
      %1709 = vmatprep.subr.mxu0 0.0
      %1710 = vmatpush1.xpose.msra.mxu0 %v899
      %1711 = vmatprep.subr.mxu0 0.0
      %1712 = vmatpush1.xpose.msra.mxu0 %v902
      %1713 = vmatprep.subr.mxu0 0.0
      %1714 = vmatpush1.xpose.msra.mxu0 %v905
      %1715 = vmatprep.subr.mxu0 0.0
      %1716 = vmatpush1.xpose.msra.mxu0 %v908
      %1717 = vmatprep.mubr.f32.mxu0 0.0
      %1718 = vmatmul.mubr.f32.gmra.mrb[0].mxu0 %v716
      %v1719 = vpop.f32.mrb[0].mxu0
      %v1720 = vadd.f32 %v635, %v1719
      %v1721 = vpop.f32.mrb[0].mxu0
      %v1722 = vadd.f32 %v639, %v1721
      %1723 = vdwg.mxu0
      %1724 = vmatprep.subr.mxu0 0.0
      %1725 = vmatpush1.xpose.msra.mxu0 %v911
      %1726 = vmatprep.subr.mxu0 0.0
      %1727 = vmatpush1.xpose.msra.mxu0 %v914
      %1728 = vmatprep.subr.mxu0 0.0
      %1729 = vmatpush1.xpose.msra.mxu0 %v917
      %1730 = vmatprep.subr.mxu0 0.0
      %1731 = vmatpush1.xpose.msra.mxu0 %v920
      %1732 = vmatprep.subr.mxu0 0.0
      %1733 = vmatpush1.xpose.msra.mxu0 %v923
      %1734 = vmatprep.subr.mxu0 0.0
      %1735 = vmatpush1.xpose.msra.mxu0 %v926
      %1736 = vmatprep.subr.mxu0 0.0
      %1737 = vmatpush1.xpose.msra.mxu0 %v929
      %1738 = vmatprep.subr.mxu0 0.0
      %1739 = vmatpush1.xpose.msra.mxu0 %v932
      %1740 = vmatprep.subr.mxu0 0.0
      %1741 = vmatpush1.xpose.msra.mxu0 %v935
      %1742 = vmatprep.subr.mxu0 0.0
      %1743 = vmatpush1.xpose.msra.mxu0 %v938
      %1744 = vmatprep.subr.mxu0 0.0
      %1745 = vmatpush1.xpose.msra.mxu0 %v941
      %1746 = vmatprep.subr.mxu0 0.0
      %1747 = vmatpush1.xpose.msra.mxu0 %v944
      %1748 = vmatprep.subr.mxu0 0.0
      %1749 = vmatpush1.xpose.msra.mxu0 %v947
      %1750 = vmatprep.subr.mxu0 0.0
      %1751 = vmatpush1.xpose.msra.mxu0 %v950
      %1752 = vmatprep.subr.mxu0 0.0
      %1753 = vmatpush1.xpose.msra.mxu0 %v953
      %1754 = vmatprep.subr.mxu0 0.0
      %1755 = vmatpush1.xpose.msra.mxu0 %v956
      %1756 = vmatprep.subr.mxu0 0.0
      %1757 = vmatpush1.xpose.msra.mxu0 %v959
      %1758 = vmatprep.subr.mxu0 0.0
      %1759 = vmatpush1.xpose.msra.mxu0 %v962
      %1760 = vmatprep.subr.mxu0 0.0
      %1761 = vmatpush1.xpose.msra.mxu0 %v965
      %1762 = vmatprep.subr.mxu0 0.0
      %1763 = vmatpush1.xpose.msra.mxu0 %v968
      %1764 = vmatprep.subr.mxu0 0.0
      %1765 = vmatpush1.xpose.msra.mxu0 %v971
      %1766 = vmatprep.subr.mxu0 0.0
      %1767 = vmatpush1.xpose.msra.mxu0 %v974
      %1768 = vmatprep.subr.mxu0 0.0
      %1769 = vmatpush1.xpose.msra.mxu0 %v977
      %1770 = vmatprep.subr.mxu0 0.0
      %1771 = vmatpush1.xpose.msra.mxu0 %v980
      %1772 = vmatprep.subr.mxu0 0.0
      %1773 = vmatpush1.xpose.msra.mxu0 %v983
      %1774 = vmatprep.subr.mxu0 0.0
      %1775 = vmatpush1.xpose.msra.mxu0 %v986
      %1776 = vmatprep.subr.mxu0 0.0
      %1777 = vmatpush1.xpose.msra.mxu0 %v989
      %1778 = vmatprep.subr.mxu0 0.0
      %1779 = vmatpush1.xpose.msra.mxu0 %v992
      %1780 = vmatprep.subr.mxu0 0.0
      %1781 = vmatpush1.xpose.msra.mxu0 %v995
      %1782 = vmatprep.subr.mxu0 0.0
      %1783 = vmatpush1.xpose.msra.mxu0 %v998
      %1784 = vmatprep.subr.mxu0 0.0
      %1785 = vmatpush1.xpose.msra.mxu0 %v1001
      %1786 = vmatprep.subr.mxu0 0.0
      %1787 = vmatpush1.xpose.msra.mxu0 %v1004
      %1788 = vmatprep.mubr.f32.mxu0 0.0
      %1789 = vmatmul.mubr.f32.gmra.mrb[0].mxu0 %v716
      %v1790 = vpop.f32.mrb[0].mxu0
      %v1791 = vadd.f32 %v643, %v1790
      %v1792 = vpop.f32.mrb[0].mxu0
      %v1793 = vadd.f32 %v647, %v1792
      %1794 = vdwg.mxu0
      %1795 = vmatprep.subr.mxu0 0.0
      %1796 = vmatpush1.xpose.msra.mxu0 %v1007
      %1797 = vmatprep.subr.mxu0 0.0
      %1798 = vmatpush1.xpose.msra.mxu0 %v1010
      %1799 = vmatprep.subr.mxu0 0.0
      %1800 = vmatpush1.xpose.msra.mxu0 %v1013
      %1801 = vmatprep.subr.mxu0 0.0
      %1802 = vmatpush1.xpose.msra.mxu0 %v1016
      %1803 = vmatprep.subr.mxu0 0.0
      %1804 = vmatpush1.xpose.msra.mxu0 %v1019
      %1805 = vmatprep.subr.mxu0 0.0
      %1806 = vmatpush1.xpose.msra.mxu0 %v1022
      %1807 = vmatprep.subr.mxu0 0.0
      %1808 = vmatpush1.xpose.msra.mxu0 %v1025
      %1809 = vmatprep.subr.mxu0 0.0
      %1810 = vmatpush1.xpose.msra.mxu0 %v1028
      %1811 = vmatprep.subr.mxu0 0.0
      %1812 = vmatpush1.xpose.msra.mxu0 %v1031
      %1813 = vmatprep.subr.mxu0 0.0
      %1814 = vmatpush1.xpose.msra.mxu0 %v1034
      %1815 = vmatprep.subr.mxu0 0.0
      %1816 = vmatpush1.xpose.msra.mxu0 %v1037
      %1817 = vmatprep.subr.mxu0 0.0
      %1818 = vmatpush1.xpose.msra.mxu0 %v1040
      %1819 = vmatprep.subr.mxu0 0.0
      %1820 = vmatpush1.xpose.msra.mxu0 %v1043
      %1821 = vmatprep.subr.mxu0 0.0
      %1822 = vmatpush1.xpose.msra.mxu0 %v1046
      %1823 = vmatprep.subr.mxu0 0.0
      %1824 = vmatpush1.xpose.msra.mxu0 %v1049
      %1825 = vmatprep.subr.mxu0 0.0
      %1826 = vmatpush1.xpose.msra.mxu0 %v1052
      %1827 = vmatprep.subr.mxu0 0.0
      %1828 = vmatpush1.xpose.msra.mxu0 %v1055
      %1829 = vmatprep.subr.mxu0 0.0
      %1830 = vmatpush1.xpose.msra.mxu0 %v1058
      %1831 = vmatprep.subr.mxu0 0.0
      %1832 = vmatpush1.xpose.msra.mxu0 %v1061
      %1833 = vmatprep.subr.mxu0 0.0
      %1834 = vmatpush1.xpose.msra.mxu0 %v1064
      %1835 = vmatprep.subr.mxu0 0.0
      %1836 = vmatpush1.xpose.msra.mxu0 %v1067
      %1837 = vmatprep.subr.mxu0 0.0
      %1838 = vmatpush1.xpose.msra.mxu0 %v1070
      %1839 = vmatprep.subr.mxu0 0.0
      %1840 = vmatpush1.xpose.msra.mxu0 %v1073
      %1841 = vmatprep.subr.mxu0 0.0
      %1842 = vmatpush1.xpose.msra.mxu0 %v1076
      %1843 = vmatprep.subr.mxu0 0.0
      %1844 = vmatpush1.xpose.msra.mxu0 %v1079
      %1845 = vmatprep.subr.mxu0 0.0
      %1846 = vmatpush1.xpose.msra.mxu0 %v1082
      %1847 = vmatprep.subr.mxu0 0.0
      %1848 = vmatpush1.xpose.msra.mxu0 %v1085
      %1849 = vmatprep.subr.mxu0 0.0
      %1850 = vmatpush1.xpose.msra.mxu0 %v1088
      %1851 = vmatprep.subr.mxu0 0.0
      %1852 = vmatpush1.xpose.msra.mxu0 %v1091
      %1853 = vmatprep.subr.mxu0 0.0
      %1854 = vmatpush1.xpose.msra.mxu0 %v1094
      %1855 = vmatprep.subr.mxu0 0.0
      %1856 = vmatpush1.xpose.msra.mxu0 %v1097
      %1857 = vmatprep.subr.mxu0 0.0
      %1858 = vmatpush1.xpose.msra.mxu0 %v1100
      %1859 = vmatprep.mubr.f32.mxu0 0.0
      %1860 = vmatmul.mubr.f32.gmra.mrb[0].mxu0 %v716
      %v1861 = vpop.f32.mrb[0].mxu0
      %v1862 = vadd.f32 %v651, %v1861
      %v1863 = vpop.f32.mrb[0].mxu0
      %v1864 = vadd.f32 %v655, %v1863
      %1865 = vdwg.mxu0
      %1866 = vmatprep.subr.mxu0 0.0
      %1867 = vmatpush1.xpose.msra.mxu0 %v1103
      %1868 = vmatprep.subr.mxu0 0.0
      %1869 = vmatpush1.xpose.msra.mxu0 %v1106
      %1870 = vmatprep.subr.mxu0 0.0
      %1871 = vmatpush1.xpose.msra.mxu0 %v1109
      %1872 = vmatprep.subr.mxu0 0.0
      %1873 = vmatpush1.xpose.msra.mxu0 %v1112
      %1874 = vmatprep.subr.mxu0 0.0
      %1875 = vmatpush1.xpose.msra.mxu0 %v1115
      %1876 = vmatprep.subr.mxu0 0.0
      %1877 = vmatpush1.xpose.msra.mxu0 %v1118
      %1878 = vmatprep.subr.mxu0 0.0
      %1879 = vmatpush1.xpose.msra.mxu0 %v1121
      %1880 = vmatprep.subr.mxu0 0.0
      %1881 = vmatpush1.xpose.msra.mxu0 %v1124
      %1882 = vmatprep.subr.mxu0 0.0
      %1883 = vmatpush1.xpose.msra.mxu0 %v1127
      %1884 = vmatprep.subr.mxu0 0.0
      %1885 = vmatpush1.xpose.msra.mxu0 %v1130
      %1886 = vmatprep.subr.mxu0 0.0
      %1887 = vmatpush1.xpose.msra.mxu0 %v1133
      %1888 = vmatprep.subr.mxu0 0.0
      %1889 = vmatpush1.xpose.msra.mxu0 %v1136
      %1890 = vmatprep.subr.mxu0 0.0
      %1891 = vmatpush1.xpose.msra.mxu0 %v1139
      %1892 = vmatprep.subr.mxu0 0.0
      %1893 = vmatpush1.xpose.msra.mxu0 %v1142
      %1894 = vmatprep.subr.mxu0 0.0
      %1895 = vmatpush1.xpose.msra.mxu0 %v1145
      %1896 = vmatprep.subr.mxu0 0.0
      %1897 = vmatpush1.xpose.msra.mxu0 %v1148
      %1898 = vmatprep.subr.mxu0 0.0
      %1899 = vmatpush1.xpose.msra.mxu0 %v1151
      %1900 = vmatprep.subr.mxu0 0.0
      %1901 = vmatpush1.xpose.msra.mxu0 %v1154
      %1902 = vmatprep.subr.mxu0 0.0
      %1903 = vmatpush1.xpose.msra.mxu0 %v1157
      %1904 = vmatprep.subr.mxu0 0.0
      %1905 = vmatpush1.xpose.msra.mxu0 %v1160
      %1906 = vmatprep.subr.mxu0 0.0
      %1907 = vmatpush1.xpose.msra.mxu0 %v1163
      %1908 = vmatprep.subr.mxu0 0.0
      %1909 = vmatpush1.xpose.msra.mxu0 %v1166
      %1910 = vmatprep.subr.mxu0 0.0
      %1911 = vmatpush1.xpose.msra.mxu0 %v1169
      %1912 = vmatprep.subr.mxu0 0.0
      %1913 = vmatpush1.xpose.msra.mxu0 %v1172
      %1914 = vmatprep.subr.mxu0 0.0
      %1915 = vmatpush1.xpose.msra.mxu0 %v1175
      %1916 = vmatprep.subr.mxu0 0.0
      %1917 = vmatpush1.xpose.msra.mxu0 %v1178
      %1918 = vmatprep.subr.mxu0 0.0
      %1919 = vmatpush1.xpose.msra.mxu0 %v1181
      %1920 = vmatprep.subr.mxu0 0.0
      %1921 = vmatpush1.xpose.msra.mxu0 %v1184
      %1922 = vmatprep.subr.mxu0 0.0
      %1923 = vmatpush1.xpose.msra.mxu0 %v1187
      %1924 = vmatprep.subr.mxu0 0.0
      %1925 = vmatpush1.xpose.msra.mxu0 %v1190
      %1926 = vmatprep.subr.mxu0 0.0
      %1927 = vmatpush1.xpose.msra.mxu0 %v1193
      %1928 = vmatprep.subr.mxu0 0.0
      %1929 = vmatpush1.xpose.msra.mxu0 %v1196
      %1930 = vmatprep.mubr.f32.mxu0 0.0
      %1931 = vmatmul.mubr.f32.gmra.mrb[0].mxu0 %v716
      %v1932 = vpop.f32.mrb[0].mxu0
      %v1933 = vadd.f32 %v659, %v1932
      %v1934 = vpop.f32.mrb[0].mxu0
      %v1935 = vadd.f32 %v663, %v1934
      %1936 = vdwg.mxu0
      %1937 = vmatprep.subr.mxu0 0.0
      %1938 = vmatpush1.xpose.msra.mxu0 %v1199
      %1939 = vmatprep.subr.mxu0 0.0
      %1940 = vmatpush1.xpose.msra.mxu0 %v1202
      %1941 = vmatprep.subr.mxu0 0.0
      %1942 = vmatpush1.xpose.msra.mxu0 %v1205
      %1943 = vmatprep.subr.mxu0 0.0
      %1944 = vmatpush1.xpose.msra.mxu0 %v1208
      %1945 = vmatprep.subr.mxu0 0.0
      %1946 = vmatpush1.xpose.msra.mxu0 %v1211
      %1947 = vmatprep.subr.mxu0 0.0
      %1948 = vmatpush1.xpose.msra.mxu0 %v1214
      %1949 = vmatprep.subr.mxu0 0.0
      %1950 = vmatpush1.xpose.msra.mxu0 %v1217
      %1951 = vmatprep.subr.mxu0 0.0
      %1952 = vmatpush1.xpose.msra.mxu0 %v1220
      %1953 = vmatprep.subr.mxu0 0.0
      %1954 = vmatpush1.xpose.msra.mxu0 %v1223
      %1955 = vmatprep.subr.mxu0 0.0
      %1956 = vmatpush1.xpose.msra.mxu0 %v1226
      %1957 = vmatprep.subr.mxu0 0.0
      %1958 = vmatpush1.xpose.msra.mxu0 %v1229
      %1959 = vmatprep.subr.mxu0 0.0
      %1960 = vmatpush1.xpose.msra.mxu0 %v1232
      %1961 = vmatprep.subr.mxu0 0.0
      %1962 = vmatpush1.xpose.msra.mxu0 %v1235
      %1963 = vmatprep.subr.mxu0 0.0
      %1964 = vmatpush1.xpose.msra.mxu0 %v1238
      %1965 = vmatprep.subr.mxu0 0.0
      %1966 = vmatpush1.xpose.msra.mxu0 %v1241
      %1967 = vmatprep.subr.mxu0 0.0
      %1968 = vmatpush1.xpose.msra.mxu0 %v1244
      %1969 = vmatprep.subr.mxu0 0.0
      %1970 = vmatpush1.xpose.msra.mxu0 %v1247
      %1971 = vmatprep.subr.mxu0 0.0
      %1972 = vmatpush1.xpose.msra.mxu0 %v1250
      %1973 = vmatprep.subr.mxu0 0.0
      %1974 = vmatpush1.xpose.msra.mxu0 %v1253
      %1975 = vmatprep.subr.mxu0 0.0
      %1976 = vmatpush1.xpose.msra.mxu0 %v1256
      %1977 = vmatprep.subr.mxu0 0.0
      %1978 = vmatpush1.xpose.msra.mxu0 %v1259
      %1979 = vmatprep.subr.mxu0 0.0
      %1980 = vmatpush1.xpose.msra.mxu0 %v1262
      %1981 = vmatprep.subr.mxu0 0.0
      %1982 = vmatpush1.xpose.msra.mxu0 %v1265
      %1983 = vmatprep.subr.mxu0 0.0
      %1984 = vmatpush1.xpose.msra.mxu0 %v1268
      %1985 = vmatprep.subr.mxu0 0.0
      %1986 = vmatpush1.xpose.msra.mxu0 %v1271
      %1987 = vmatprep.subr.mxu0 0.0
      %1988 = vmatpush1.xpose.msra.mxu0 %v1274
      %1989 = vmatprep.subr.mxu0 0.0
      %1990 = vmatpush1.xpose.msra.mxu0 %v1277
      %1991 = vmatprep.subr.mxu0 0.0
      %1992 = vmatpush1.xpose.msra.mxu0 %v1280
      %1993 = vmatprep.subr.mxu0 0.0
      %1994 = vmatpush1.xpose.msra.mxu0 %v1283
      %1995 = vmatprep.subr.mxu0 0.0
      %1996 = vmatpush1.xpose.msra.mxu0 %v1286
      %1997 = vmatprep.subr.mxu0 0.0
      %1998 = vmatpush1.xpose.msra.mxu0 %v1289
      %1999 = vmatprep.subr.mxu0 0.0
      %2000 = vmatpush1.xpose.msra.mxu0 %v1292
      %2001 = vmatprep.mubr.f32.mxu0 0.0
      %2002 = vmatmul.mubr.f32.gmra.mrb[0].mxu0 %v716
      %v2003 = vpop.f32.mrb[0].mxu0
      %v2004 = vadd.f32 %v667, %v2003
      %v2005 = vpop.f32.mrb[0].mxu0
      %v2006 = vadd.f32 %v671, %v2005
      %2007 = vdwg.mxu0
      %2008 = vmatprep.subr.mxu0 0.0
      %2009 = vmatpush1.xpose.msra.mxu0 %v1295
      %2010 = vmatprep.subr.mxu0 0.0
      %2011 = vmatpush1.xpose.msra.mxu0 %v1298
      %2012 = vmatprep.subr.mxu0 0.0
      %2013 = vmatpush1.xpose.msra.mxu0 %v1301
      %2014 = vmatprep.subr.mxu0 0.0
      %2015 = vmatpush1.xpose.msra.mxu0 %v1304
      %2016 = vmatprep.subr.mxu0 0.0
      %2017 = vmatpush1.xpose.msra.mxu0 %v1307
      %2018 = vmatprep.subr.mxu0 0.0
      %2019 = vmatpush1.xpose.msra.mxu0 %v1310
      %2020 = vmatprep.subr.mxu0 0.0
      %2021 = vmatpush1.xpose.msra.mxu0 %v1313
      %2022 = vmatprep.subr.mxu0 0.0
      %2023 = vmatpush1.xpose.msra.mxu0 %v1316
      %2024 = vmatprep.subr.mxu0 0.0
      %2025 = vmatpush1.xpose.msra.mxu0 %v1319
      %2026 = vmatprep.subr.mxu0 0.0
      %2027 = vmatpush1.xpose.msra.mxu0 %v1322
      %2028 = vmatprep.subr.mxu0 0.0
      %2029 = vmatpush1.xpose.msra.mxu0 %v1325
      %2030 = vmatprep.subr.mxu0 0.0
      %2031 = vmatpush1.xpose.msra.mxu0 %v1328
      %2032 = vmatprep.subr.mxu0 0.0
      %2033 = vmatpush1.xpose.msra.mxu0 %v1331
      %2034 = vmatprep.subr.mxu0 0.0
      %2035 = vmatpush1.xpose.msra.mxu0 %v1334
      %2036 = vmatprep.subr.mxu0 0.0
      %2037 = vmatpush1.xpose.msra.mxu0 %v1337
      %2038 = vmatprep.subr.mxu0 0.0
      %2039 = vmatpush1.xpose.msra.mxu0 %v1340
      %2040 = vmatprep.subr.mxu0 0.0
      %2041 = vmatpush1.xpose.msra.mxu0 %v1343
      %2042 = vmatprep.subr.mxu0 0.0
      %2043 = vmatpush1.xpose.msra.mxu0 %v1346
      %2044 = vmatprep.subr.mxu0 0.0
      %2045 = vmatpush1.xpose.msra.mxu0 %v1349
      %2046 = vmatprep.subr.mxu0 0.0
      %2047 = vmatpush1.xpose.msra.mxu0 %v1352
      %2048 = vmatprep.subr.mxu0 0.0
      %2049 = vmatpush1.xpose.msra.mxu0 %v1355
      %2050 = vmatprep.subr.mxu0 0.0
      %2051 = vmatpush1.xpose.msra.mxu0 %v1358
      %2052 = vmatprep.subr.mxu0 0.0
      %2053 = vmatpush1.xpose.msra.mxu0 %v1361
      %2054 = vmatprep.subr.mxu0 0.0
      %2055 = vmatpush1.xpose.msra.mxu0 %v1364
      %2056 = vmatprep.subr.mxu0 0.0
      %2057 = vmatpush1.xpose.msra.mxu0 %v1367
      %2058 = vmatprep.subr.mxu0 0.0
      %2059 = vmatpush1.xpose.msra.mxu0 %v1370
      %2060 = vmatprep.subr.mxu0 0.0
      %2061 = vmatpush1.xpose.msra.mxu0 %v1373
      %2062 = vmatprep.subr.mxu0 0.0
      %2063 = vmatpush1.xpose.msra.mxu0 %v1376
      %2064 = vmatprep.subr.mxu0 0.0
      %2065 = vmatpush1.xpose.msra.mxu0 %v1379
      %2066 = vmatprep.subr.mxu0 0.0
      %2067 = vmatpush1.xpose.msra.mxu0 %v1382
      %2068 = vmatprep.subr.mxu0 0.0
      %2069 = vmatpush1.xpose.msra.mxu0 %v1385
      %2070 = vmatprep.subr.mxu0 0.0
      %2071 = vmatpush1.xpose.msra.mxu0 %v1388
      %2072 = vmatprep.mubr.f32.mxu0 0.0
      %2073 = vmatmul.mubr.f32.gmra.mrb[0].mxu0 %v716
      %v2074 = vpop.f32.mrb[0].mxu0
      %v2075 = vadd.f32 %v675, %v2074
      %v2076 = vpop.f32.mrb[0].mxu0
      %v2077 = vadd.f32 %v679, %v2076
      %2078 = vdwg.mxu0
      %2079 = vmatprep.subr.mxu0 0.0
      %2080 = vmatpush1.xpose.msra.mxu0 %v1391
      %2081 = vmatprep.subr.mxu0 0.0
      %2082 = vmatpush1.xpose.msra.mxu0 %v1394
      %2083 = vmatprep.subr.mxu0 0.0
      %2084 = vmatpush1.xpose.msra.mxu0 %v1397
      %2085 = vmatprep.subr.mxu0 0.0
      %2086 = vmatpush1.xpose.msra.mxu0 %v1400
      %2087 = vmatprep.subr.mxu0 0.0
      %2088 = vmatpush1.xpose.msra.mxu0 %v1403
      %2089 = vmatprep.subr.mxu0 0.0
      %2090 = vmatpush1.xpose.msra.mxu0 %v1406
      %2091 = vmatprep.subr.mxu0 0.0
      %2092 = vmatpush1.xpose.msra.mxu0 %v1409
      %2093 = vmatprep.subr.mxu0 0.0
      %2094 = vmatpush1.xpose.msra.mxu0 %v1412
      %2095 = vmatprep.subr.mxu0 0.0
      %2096 = vmatpush1.xpose.msra.mxu0 %v1415
      %2097 = vmatprep.subr.mxu0 0.0
      %2098 = vmatpush1.xpose.msra.mxu0 %v1418
      %2099 = vmatprep.subr.mxu0 0.0
      %2100 = vmatpush1.xpose.msra.mxu0 %v1421
      %2101 = vmatprep.subr.mxu0 0.0
      %2102 = vmatpush1.xpose.msra.mxu0 %v1424
      %2103 = vmatprep.subr.mxu0 0.0
      %2104 = vmatpush1.xpose.msra.mxu0 %v1427
      %2105 = vmatprep.subr.mxu0 0.0
      %2106 = vmatpush1.xpose.msra.mxu0 %v1430
      %2107 = vmatprep.subr.mxu0 0.0
      %2108 = vmatpush1.xpose.msra.mxu0 %v1433
      %2109 = vmatprep.subr.mxu0 0.0
      %2110 = vmatpush1.xpose.msra.mxu0 %v1436
      %2111 = vmatprep.subr.mxu0 0.0
      %2112 = vmatpush1.xpose.msra.mxu0 %v1439
      %2113 = vmatprep.subr.mxu0 0.0
      %2114 = vmatpush1.xpose.msra.mxu0 %v1442
      %2115 = vmatprep.subr.mxu0 0.0
      %2116 = vmatpush1.xpose.msra.mxu0 %v1445
      %2117 = vmatprep.subr.mxu0 0.0
      %2118 = vmatpush1.xpose.msra.mxu0 %v1448
      %2119 = vmatprep.subr.mxu0 0.0
      %2120 = vmatpush1.xpose.msra.mxu0 %v1451
      %2121 = vmatprep.subr.mxu0 0.0
      %2122 = vmatpush1.xpose.msra.mxu0 %v1454
      %2123 = vmatprep.subr.mxu0 0.0
      %2124 = vmatpush1.xpose.msra.mxu0 %v1457
      %2125 = vmatprep.subr.mxu0 0.0
      %2126 = vmatpush1.xpose.msra.mxu0 %v1460
      %2127 = vmatprep.subr.mxu0 0.0
      %2128 = vmatpush1.xpose.msra.mxu0 %v1463
      %2129 = vmatprep.subr.mxu0 0.0
      %2130 = vmatpush1.xpose.msra.mxu0 %v1466
      %2131 = vmatprep.subr.mxu0 0.0
      %2132 = vmatpush1.xpose.msra.mxu0 %v1469
      %2133 = vmatprep.subr.mxu0 0.0
      %2134 = vmatpush1.xpose.msra.mxu0 %v1472
      %2135 = vmatprep.subr.mxu0 0.0
      %2136 = vmatpush1.xpose.msra.mxu0 %v1475
      %2137 = vmatprep.subr.mxu0 0.0
      %2138 = vmatpush1.xpose.msra.mxu0 %v1478
      %2139 = vmatprep.subr.mxu0 0.0
      %2140 = vmatpush1.xpose.msra.mxu0 %v1481
      %2141 = vmatprep.subr.mxu0 0.0
      %2142 = vmatpush1.xpose.msra.mxu0 %v1484
      %2143 = vmatprep.mubr.f32.mxu0 0.0
      %2144 = vmatmul.mubr.f32.gmra.mrb[0].mxu0 %v716
      %v2145 = vpop.f32.mrb[0].mxu0
      %v2146 = vadd.f32 %v683, %v2145
      %v2147 = vpop.f32.mrb[0].mxu0
      %v2148 = vadd.f32 %v687, %v2147
      %2149 = vdwg.mxu0
      %2150 = vmatprep.subr.mxu0 0.0
      %2151 = vmatpush1.xpose.msra.mxu0 %v1487
      %2152 = vmatprep.subr.mxu0 0.0
      %2153 = vmatpush1.xpose.msra.mxu0 %v1490
      %2154 = vmatprep.subr.mxu0 0.0
      %2155 = vmatpush1.xpose.msra.mxu0 %v1493
      %2156 = vmatprep.subr.mxu0 0.0
      %2157 = vmatpush1.xpose.msra.mxu0 %v1496
      %2158 = vmatprep.subr.mxu0 0.0
      %2159 = vmatpush1.xpose.msra.mxu0 %v1499
      %2160 = vmatprep.subr.mxu0 0.0
      %2161 = vmatpush1.xpose.msra.mxu0 %v1502
      %2162 = vmatprep.subr.mxu0 0.0
      %2163 = vmatpush1.xpose.msra.mxu0 %v1505
      %2164 = vmatprep.subr.mxu0 0.0
      %2165 = vmatpush1.xpose.msra.mxu0 %v1508
      %2166 = vmatprep.subr.mxu0 0.0
      %2167 = vmatpush1.xpose.msra.mxu0 %v1511
      %2168 = vmatprep.subr.mxu0 0.0
      %2169 = vmatpush1.xpose.msra.mxu0 %v1514
      %2170 = vmatprep.subr.mxu0 0.0
      %2171 = vmatpush1.xpose.msra.mxu0 %v1517
      %2172 = vmatprep.subr.mxu0 0.0
      %2173 = vmatpush1.xpose.msra.mxu0 %v1520
      %2174 = vmatprep.subr.mxu0 0.0
      %2175 = vmatpush1.xpose.msra.mxu0 %v1523
      %2176 = vmatprep.subr.mxu0 0.0
      %2177 = vmatpush1.xpose.msra.mxu0 %v1526
      %2178 = vmatprep.subr.mxu0 0.0
      %2179 = vmatpush1.xpose.msra.mxu0 %v1529
      %2180 = vmatprep.subr.mxu0 0.0
      %2181 = vmatpush1.xpose.msra.mxu0 %v1532
      %2182 = vmatprep.subr.mxu0 0.0
      %2183 = vmatpush1.xpose.msra.mxu0 %v1535
      %2184 = vmatprep.subr.mxu0 0.0
      %2185 = vmatpush1.xpose.msra.mxu0 %v1538
      %2186 = vmatprep.subr.mxu0 0.0
      %2187 = vmatpush1.xpose.msra.mxu0 %v1541
      %2188 = vmatprep.subr.mxu0 0.0
      %2189 = vmatpush1.xpose.msra.mxu0 %v1544
      %2190 = vmatprep.subr.mxu0 0.0
      %2191 = vmatpush1.xpose.msra.mxu0 %v1547
      %2192 = vmatprep.subr.mxu0 0.0
      %2193 = vmatpush1.xpose.msra.mxu0 %v1550
      %2194 = vmatprep.subr.mxu0 0.0
      %2195 = vmatpush1.xpose.msra.mxu0 %v1553
      %2196 = vmatprep.subr.mxu0 0.0
      %2197 = vmatpush1.xpose.msra.mxu0 %v1556
      %2198 = vmatprep.subr.mxu0 0.0
      %2199 = vmatpush1.xpose.msra.mxu0 %v1559
      %2200 = vmatprep.subr.mxu0 0.0
      %2201 = vmatpush1.xpose.msra.mxu0 %v1562
      %2202 = vmatprep.subr.mxu0 0.0
      %2203 = vmatpush1.xpose.msra.mxu0 %v1565
      %2204 = vmatprep.subr.mxu0 0.0
      %2205 = vmatpush1.xpose.msra.mxu0 %v1568
      %2206 = vmatprep.subr.mxu0 0.0
      %2207 = vmatpush1.xpose.msra.mxu0 %v1571
      %2208 = vmatprep.subr.mxu0 0.0
      %2209 = vmatpush1.xpose.msra.mxu0 %v1574
      %2210 = vmatprep.subr.mxu0 0.0
      %2211 = vmatpush1.xpose.msra.mxu0 %v1577
      %2212 = vmatprep.subr.mxu0 0.0
      %2213 = vmatpush1.xpose.msra.mxu0 %v1580
      %2214 = vmatprep.mubr.f32.mxu0 0.0
      %2215 = vmatmul.mubr.f32.gmra.mrb[0].mxu0 %v716
      %v2216 = vpop.f32.mrb[0].mxu0
      %v2217 = vadd.f32 %v691, %v2216
      %v2218 = vpop.f32.mrb[0].mxu0
      %v2219 = vadd.f32 %v695, %v2218
      %2220 = vdwg.mxu0
      %v2221 = vxor.u32 %v1649, 2147483648
      %v2222 = vxor.u32 %v1651, 2147483648
      %v2223 = vxor.u32 %v1720, 2147483648
      %v2224 = vxor.u32 %v1722, 2147483648
      %v2225 = vxor.u32 %v1791, 2147483648
      %v2226 = vxor.u32 %v1793, 2147483648
      %v2227 = vxor.u32 %v1862, 2147483648
      %v2228 = vxor.u32 %v1864, 2147483648
      %v2229 = vxor.u32 %v1933, 2147483648
      %v2230 = vxor.u32 %v1935, 2147483648
      %v2231 = vxor.u32 %v2004, 2147483648
      %v2232 = vxor.u32 %v2006, 2147483648
      %v2233 = vxor.u32 %v2075, 2147483648
      %v2234 = vxor.u32 %v2077, 2147483648
      %v2235 = vxor.u32 %v2146, 2147483648
      %v2236 = vxor.u32 %v2148, 2147483648
      %v2237 = vxor.u32 %v2217, 2147483648
      %v2238 = vxor.u32 %v2219, 2147483648
      %v2239 = vmul.f32 %v2221, 1.442695
      %v2240 = vpow.pop %v2239
      %v2241 = vmul.f32 %v2222, 1.442695
      %v2242 = vpow.pop %v2241
      %v2243 = vmul.f32 %v2223, 1.442695
      %v2244 = vpow.pop %v2243
      %v2245 = vmul.f32 %v2224, 1.442695
      %v2246 = vpow.pop %v2245
      %v2247 = vmul.f32 %v2225, 1.442695
      %v2248 = vpow.pop %v2247
      %v2249 = vmul.f32 %v2226, 1.442695
      %v2250 = vpow.pop %v2249
      %v2251 = vmul.f32 %v2227, 1.442695
      %v2252 = vpow.pop %v2251
      %v2253 = vmul.f32 %v2228, 1.442695
      %v2254 = vpow.pop %v2253
      %v2255 = vmul.f32 %v2229, 1.442695
      %v2256 = vpow.pop %v2255
      %v2257 = vmul.f32 %v2230, 1.442695
      %v2258 = vpow.pop %v2257
      %v2259 = vmul.f32 %v2231, 1.442695
      %v2260 = vpow.pop %v2259
      %v2261 = vmul.f32 %v2232, 1.442695
      %v2262 = vpow.pop %v2261
      %v2263 = vmul.f32 %v2233, 1.442695
      %v2264 = vpow.pop %v2263
      %v2265 = vmul.f32 %v2234, 1.442695
      %v2266 = vpow.pop %v2265
      %v2267 = vmul.f32 %v2235, 1.442695
      %v2268 = vpow.pop %v2267
      %v2269 = vmul.f32 %v2236, 1.442695
      %v2270 = vpow.pop %v2269
      %v2271 = vmul.f32 %v2237, 1.442695
      %v2272 = vpow.pop %v2271
      %v2273 = vmul.f32 %v2238, 1.442695
      %v2274 = vpow.pop %v2273
      %v2275 = vadd.f32 %v2240, 1.0
      %v2276 = vadd.f32 %v2242, 1.0
      %v2277 = vadd.f32 %v2244, 1.0
      %v2278 = vadd.f32 %v2246, 1.0
      %v2279 = vadd.f32 %v2248, 1.0
      %v2280 = vadd.f32 %v2250, 1.0
      %v2281 = vadd.f32 %v2252, 1.0
      %v2282 = vadd.f32 %v2254, 1.0
      %v2283 = vadd.f32 %v2256, 1.0
      %v2284 = vadd.f32 %v2258, 1.0
      %v2285 = vadd.f32 %v2260, 1.0
      %v2286 = vadd.f32 %v2262, 1.0
      %v2287 = vadd.f32 %v2264, 1.0
      %v2288 = vadd.f32 %v2266, 1.0
      %v2289 = vadd.f32 %v2268, 1.0
      %v2290 = vadd.f32 %v2270, 1.0
      %v2291 = vadd.f32 %v2272, 1.0
      %v2292 = vadd.f32 %v2274, 1.0
      %v2293 = vrcp.pop %v2275
      %v2294 = vmul.f32 1.0, %v2293
      %v2295 = vrcp.pop %v2276
      %v2296 = vmul.f32 1.0, %v2295
      %v2297 = vrcp.pop %v2277
      %v2298 = vmul.f32 1.0, %v2297
      %v2299 = vrcp.pop %v2278
      %v2300 = vmul.f32 1.0, %v2299
      %v2301 = vrcp.pop %v2279
      %v2302 = vmul.f32 1.0, %v2301
      %v2303 = vrcp.pop %v2280
      %v2304 = vmul.f32 1.0, %v2303
      %v2305 = vrcp.pop %v2281
      %v2306 = vmul.f32 1.0, %v2305
      %v2307 = vrcp.pop %v2282
      %v2308 = vmul.f32 1.0, %v2307
      %v2309 = vrcp.pop %v2283
      %v2310 = vmul.f32 1.0, %v2309
      %v2311 = vrcp.pop %v2284
      %v2312 = vmul.f32 1.0, %v2311
      %v2313 = vrcp.pop %v2285
      %v2314 = vmul.f32 1.0, %v2313
      %v2315 = vrcp.pop %v2286
      %v2316 = vmul.f32 1.0, %v2315
      %v2317 = vrcp.pop %v2287
      %v2318 = vmul.f32 1.0, %v2317
      %v2319 = vrcp.pop %v2288
      %v2320 = vmul.f32 1.0, %v2319
      %v2321 = vrcp.pop %v2289
      %v2322 = vmul.f32 1.0, %v2321
      %v2323 = vrcp.pop %v2290
      %v2324 = vmul.f32 1.0, %v2323
      %v2325 = vrcp.pop %v2291
      %v2326 = vmul.f32 1.0, %v2325
      %v2327 = vrcp.pop %v2292
      %v2328 = vmul.f32 1.0, %v2327
      %v2329 = vld [vmem:[%s309] sm:$0xff]
      %v2330 = vld [vmem:[%s309 + $0x8] sm:$0xff]
      %v2331 = vld [vmem:[%s309 + $0x10] sm:$0xff]
      %v2332 = vld [vmem:[%s309 + $0x18] sm:$0xff]
      %v2333 = vld [vmem:[%s309 + $0x20] sm:$0xff]
      %v2334 = vld [vmem:[%s309 + $0x28] sm:$0xff]
      %v2335 = vld [vmem:[%s309 + $0x30] sm:$0xff]
      %v2336 = vld [vmem:[%s309 + $0x38] sm:$0xff]
      %v2337 = vld [vmem:[%s309 + $0x40] sm:$0xff]
      %v2338 = vld [vmem:[%s309 + $0x48] sm:$0xff]
      %v2339 = vld [vmem:[%s309 + $0x50] sm:$0xff]
      %v2340 = vld [vmem:[%s309 + $0x58] sm:$0xff]
      %v2341 = vld [vmem:[%s309 + $0x60] sm:$0xff]
      %v2342 = vld [vmem:[%s309 + $0x68] sm:$0xff]
      %v2343 = vld [vmem:[%s309 + $0x70] sm:$0xff]
      %v2344 = vld [vmem:[%s309 + $0x78] sm:$0xff]
      %v2345 = vld [vmem:[%s309 + $0x80] sm:$0xff]
      %v2346 = vld [vmem:[%s309 + $0x88] sm:$0xff]
      %v2347 = vld [vmem:[%s309 + $0x90] sm:$0xff]
      %v2348 = vld [vmem:[%s309 + $0x98] sm:$0xff]
      %v2349 = vld [vmem:[%s309 + $0xa0] sm:$0xff]
      %v2350 = vld [vmem:[%s309 + $0xa8] sm:$0xff]
      %v2351 = vld [vmem:[%s309 + $0xb0] sm:$0xff]
      %v2352 = vld [vmem:[%s309 + $0xb8] sm:$0xff]
      %v2353 = vld [vmem:[%s309 + $0xc0] sm:$0xff]
      %v2354 = vld [vmem:[%s309 + $0xc8] sm:$0xff]
      %v2355 = vld [vmem:[%s309 + $0xd0] sm:$0xff]
      %v2356 = vld [vmem:[%s309 + $0xd8] sm:$0xff]
      %v2357 = vld [vmem:[%s309 + $0xe0] sm:$0xff]
      %v2358 = vld [vmem:[%s309 + $0xe8] sm:$0xff]
      %v2359 = vld [vmem:[%s309 + $0xf0] sm:$0xff]
      %v2360 = vld [vmem:[%s309 + $0xf8] sm:$0xff]
      %v2361 = vld [vmem:[%s309 + $0x100] sm:$0xff]
      %v2362 = vld [vmem:[%s309 + $0x108] sm:$0xff]
      %v2363 = vld [vmem:[%s309 + $0x110] sm:$0xff]
      %v2364 = vld [vmem:[%s309 + $0x118] sm:$0xff]
      %v2365 = vld [vmem:[%s309 + $0x120] sm:$0xff]
      %v2366 = vld [vmem:[%s309 + $0x128] sm:$0xff]
      %v2367 = vld [vmem:[%s309 + $0x130] sm:$0xff]
      %v2368 = vld [vmem:[%s309 + $0x138] sm:$0xff]
      %v2369 = vld [vmem:[%s309 + $0x140] sm:$0xff]
      %v2370 = vld [vmem:[%s309 + $0x148] sm:$0xff]
      %v2371 = vld [vmem:[%s309 + $0x150] sm:$0xff]
      %v2372 = vld [vmem:[%s309 + $0x158] sm:$0xff]
      %v2373 = vld [vmem:[%s309 + $0x160] sm:$0xff]
      %v2374 = vld [vmem:[%s309 + $0x168] sm:$0xff]
      %v2375 = vld [vmem:[%s309 + $0x170] sm:$0xff]
      %v2376 = vld [vmem:[%s309 + $0x178] sm:$0xff]
      %v2377 = vld [vmem:[%s309 + $0x180] sm:$0xff]
      %v2378 = vld [vmem:[%s309 + $0x188] sm:$0xff]
      %v2379 = vld [vmem:[%s309 + $0x190] sm:$0xff]
      %v2380 = vld [vmem:[%s309 + $0x198] sm:$0xff]
      %v2381 = vld [vmem:[%s309 + $0x1a0] sm:$0xff]
      %v2382 = vld [vmem:[%s309 + $0x1a8] sm:$0xff]
      %v2383 = vld [vmem:[%s309 + $0x1b0] sm:$0xff]
      %v2384 = vld [vmem:[%s309 + $0x1b8] sm:$0xff]
      %v2385 = vld [vmem:[%s309 + $0x1c0] sm:$0xff]
      %v2386 = vld [vmem:[%s309 + $0x1c8] sm:$0xff]
      %v2387 = vld [vmem:[%s309 + $0x1d0] sm:$0xff]
      %v2388 = vld [vmem:[%s309 + $0x1d8] sm:$0xff]
      %v2389 = vld [vmem:[%s309 + $0x1e0] sm:$0xff]
      %v2390 = vld [vmem:[%s309 + $0x1e8] sm:$0xff]
      %v2391 = vld [vmem:[%s309 + $0x1f0] sm:$0xff]
      %v2392 = vld [vmem:[%s309 + $0x1f8] sm:$0xff]
      %v2393 = vld [vmem:[%s309 + $0x200] sm:$0xff]
      %v2394 = vld [vmem:[%s309 + $0x208] sm:$0xff]
      %v2395 = vld [vmem:[%s309 + $0x210] sm:$0xff]
      %v2396 = vld [vmem:[%s309 + $0x218] sm:$0xff]
      %v2397 = vld [vmem:[%s309 + $0x220] sm:$0xff]
      %v2398 = vld [vmem:[%s309 + $0x228] sm:$0xff]
      %v2399 = vld [vmem:[%s309 + $0x230] sm:$0xff]
      %v2400 = vld [vmem:[%s309 + $0x238] sm:$0xff]
      %v2401 = vld [vmem:[%s309 + $0x240] sm:$0xff]
      %v2402 = vld [vmem:[%s309 + $0x248] sm:$0xff]
      %v2403 = vld [vmem:[%s309 + $0x250] sm:$0xff]
      %v2404 = vld [vmem:[%s309 + $0x258] sm:$0xff]
      %v2405 = vld [vmem:[%s309 + $0x260] sm:$0xff]
      %v2406 = vld [vmem:[%s309 + $0x268] sm:$0xff]
      %v2407 = vld [vmem:[%s309 + $0x270] sm:$0xff]
      %v2408 = vld [vmem:[%s309 + $0x278] sm:$0xff]
      %v2409 = vld [vmem:[%s309 + $0x280] sm:$0xff]
      %v2410 = vld [vmem:[%s309 + $0x288] sm:$0xff]
      %v2411 = vld [vmem:[%s309 + $0x290] sm:$0xff]
      %v2412 = vld [vmem:[%s309 + $0x298] sm:$0xff]
      %v2413 = vld [vmem:[%s309 + $0x2a0] sm:$0xff]
      %v2414 = vld [vmem:[%s309 + $0x2a8] sm:$0xff]
      %v2415 = vld [vmem:[%s309 + $0x2b0] sm:$0xff]
      %v2416 = vld [vmem:[%s309 + $0x2b8] sm:$0xff]
      %v2417 = vld [vmem:[%s309 + $0x2c0] sm:$0xff]
      %v2418 = vld [vmem:[%s309 + $0x2c8] sm:$0xff]
      %v2419 = vld [vmem:[%s309 + $0x2d0] sm:$0xff]
      %v2420 = vld [vmem:[%s309 + $0x2d8] sm:$0xff]
      %v2421 = vld [vmem:[%s309 + $0x2e0] sm:$0xff]
      %v2422 = vld [vmem:[%s309 + $0x2e8] sm:$0xff]
      %v2423 = vld [vmem:[%s309 + $0x2f0] sm:$0xff]
      %v2424 = vld [vmem:[%s309 + $0x2f8] sm:$0xff]
      %v2425 = vld [vmem:[%s309 + $0x300] sm:$0xff]
      %v2426 = vld [vmem:[%s309 + $0x308] sm:$0xff]
      %v2427 = vld [vmem:[%s309 + $0x310] sm:$0xff]
      %v2428 = vld [vmem:[%s309 + $0x318] sm:$0xff]
      %v2429 = vld [vmem:[%s309 + $0x320] sm:$0xff]
      %v2430 = vld [vmem:[%s309 + $0x328] sm:$0xff]
      %v2431 = vld [vmem:[%s309 + $0x330] sm:$0xff]
      %v2432 = vld [vmem:[%s309 + $0x338] sm:$0xff]
      %v2433 = vld [vmem:[%s309 + $0x340] sm:$0xff]
      %v2434 = vld [vmem:[%s309 + $0x348] sm:$0xff]
      %v2435 = vld [vmem:[%s309 + $0x350] sm:$0xff]
      %v2436 = vld [vmem:[%s309 + $0x358] sm:$0xff]
      %v2437 = vld [vmem:[%s309 + $0x360] sm:$0xff]
      %v2438 = vld [vmem:[%s309 + $0x368] sm:$0xff]
      %v2439 = vld [vmem:[%s309 + $0x370] sm:$0xff]
      %v2440 = vld [vmem:[%s309 + $0x378] sm:$0xff]
      %v2441 = vld [vmem:[%s309 + $0x380] sm:$0xff]
      %v2442 = vld [vmem:[%s309 + $0x388] sm:$0xff]
      %v2443 = vld [vmem:[%s309 + $0x390] sm:$0xff]
      %v2444 = vld [vmem:[%s309 + $0x398] sm:$0xff]
      %v2445 = vld [vmem:[%s309 + $0x3a0] sm:$0xff]
      %v2446 = vld [vmem:[%s309 + $0x3a8] sm:$0xff]
      %v2447 = vld [vmem:[%s309 + $0x3b0] sm:$0xff]
      %v2448 = vld [vmem:[%s309 + $0x3b8] sm:$0xff]
      %v2449 = vld [vmem:[%s309 + $0x3c0] sm:$0xff]
      %v2450 = vld [vmem:[%s309 + $0x3c8] sm:$0xff]
      %v2451 = vld [vmem:[%s309 + $0x3d0] sm:$0xff]
      %v2452 = vld [vmem:[%s309 + $0x3d8] sm:$0xff]
      %v2453 = vld [vmem:[%s309 + $0x3e0] sm:$0xff]
      %v2454 = vld [vmem:[%s309 + $0x3e8] sm:$0xff]
      %v2455 = vld [vmem:[%s309 + $0x3f0] sm:$0xff]
      %v2456 = vld [vmem:[%s309 + $0x3f8] sm:$0xff]
      %v2457 = vld [vmem:[%s309 + $0x400] sm:$0xff]
      %v2458 = vld [vmem:[%s309 + $0x408] sm:$0xff]
      %v2459 = vld [vmem:[%s309 + $0x410] sm:$0xff]
      %v2460 = vld [vmem:[%s309 + $0x418] sm:$0xff]
      %v2461 = vld [vmem:[%s309 + $0x420] sm:$0xff]
      %v2462 = vld [vmem:[%s309 + $0x428] sm:$0xff]
      %v2463 = vld [vmem:[%s309 + $0x430] sm:$0xff]
      %v2464 = vld [vmem:[%s309 + $0x438] sm:$0xff]
      %v2465 = vld [vmem:[%s309 + $0x440] sm:$0xff]
      %v2466 = vld [vmem:[%s309 + $0x448] sm:$0xff]
      %v2467 = vld [vmem:[%s309 + $0x450] sm:$0xff]
      %v2468 = vld [vmem:[%s309 + $0x458] sm:$0xff]
      %v2469 = vld [vmem:[%s309 + $0x460] sm:$0xff]
      %v2470 = vld [vmem:[%s309 + $0x468] sm:$0xff]
      %v2471 = vld [vmem:[%s309 + $0x470] sm:$0xff]
      %v2472 = vld [vmem:[%s309 + $0x478] sm:$0xff]
      %v2473 = vld [vmem:[%s309 + $0x480] sm:$0xff]
      %v2474 = vld [vmem:[%s309 + $0x488] sm:$0xff]
      %v2475 = vld [vmem:[%s309 + $0x490] sm:$0xff]
      %v2476 = vld [vmem:[%s309 + $0x498] sm:$0xff]
      %v2477 = vld [vmem:[%s309 + $0x4a0] sm:$0xff]
      %v2478 = vld [vmem:[%s309 + $0x4a8] sm:$0xff]
      %v2479 = vld [vmem:[%s309 + $0x4b0] sm:$0xff]
      %v2480 = vld [vmem:[%s309 + $0x4b8] sm:$0xff]
      %v2481 = vld [vmem:[%s309 + $0x4c0] sm:$0xff]
      %v2482 = vld [vmem:[%s309 + $0x4c8] sm:$0xff]
      %v2483 = vld [vmem:[%s309 + $0x4d0] sm:$0xff]
      %v2484 = vld [vmem:[%s309 + $0x4d8] sm:$0xff]
      %v2485 = vld [vmem:[%s309 + $0x4e0] sm:$0xff]
      %v2486 = vld [vmem:[%s309 + $0x4e8] sm:$0xff]
      %v2487 = vld [vmem:[%s309 + $0x4f0] sm:$0xff]
      %v2488 = vld [vmem:[%s309 + $0x4f8] sm:$0xff]
      %v2489 = vld [vmem:[%s309 + $0x500] sm:$0xff]
      %v2490 = vld [vmem:[%s309 + $0x508] sm:$0xff]
      %v2491 = vld [vmem:[%s309 + $0x510] sm:$0xff]
      %v2492 = vld [vmem:[%s309 + $0x518] sm:$0xff]
      %v2493 = vld [vmem:[%s309 + $0x520] sm:$0xff]
      %v2494 = vld [vmem:[%s309 + $0x528] sm:$0xff]
      %v2495 = vld [vmem:[%s309 + $0x530] sm:$0xff]
      %v2496 = vld [vmem:[%s309 + $0x538] sm:$0xff]
      %v2497 = vld [vmem:[%s309 + $0x540] sm:$0xff]
      %v2498 = vld [vmem:[%s309 + $0x548] sm:$0xff]
      %v2499 = vld [vmem:[%s309 + $0x550] sm:$0xff]
      %v2500 = vld [vmem:[%s309 + $0x558] sm:$0xff]
      %v2501 = vld [vmem:[%s309 + $0x560] sm:$0xff]
      %v2502 = vld [vmem:[%s309 + $0x568] sm:$0xff]
      %v2503 = vld [vmem:[%s309 + $0x570] sm:$0xff]
      %v2504 = vld [vmem:[%s309 + $0x578] sm:$0xff]
      %v2505 = vld [vmem:[%s309 + $0x580] sm:$0xff]
      %v2506 = vld [vmem:[%s309 + $0x588] sm:$0xff]
      %v2507 = vld [vmem:[%s309 + $0x590] sm:$0xff]
      %v2508 = vld [vmem:[%s309 + $0x598] sm:$0xff]
      %v2509 = vld [vmem:[%s309 + $0x5a0] sm:$0xff]
      %v2510 = vld [vmem:[%s309 + $0x5a8] sm:$0xff]
      %v2511 = vld [vmem:[%s309 + $0x5b0] sm:$0xff]
      %v2512 = vld [vmem:[%s309 + $0x5b8] sm:$0xff]
      %v2513 = vld [vmem:[%s309 + $0x5c0] sm:$0xff]
      %v2514 = vld [vmem:[%s309 + $0x5c8] sm:$0xff]
      %v2515 = vld [vmem:[%s309 + $0x5d0] sm:$0xff]
      %v2516 = vld [vmem:[%s309 + $0x5d8] sm:$0xff]
      %v2517 = vld [vmem:[%s309 + $0x5e0] sm:$0xff]
      %v2518 = vld [vmem:[%s309 + $0x5e8] sm:$0xff]
      %v2519 = vld [vmem:[%s309 + $0x5f0] sm:$0xff]
      %v2520 = vld [vmem:[%s309 + $0x5f8] sm:$0xff]
      %v2521 = vld [vmem:[%s309 + $0x600] sm:$0xff]
      %v2522 = vld [vmem:[%s309 + $0x608] sm:$0xff]
      %v2523 = vld [vmem:[%s309 + $0x610] sm:$0xff]
      %v2524 = vld [vmem:[%s309 + $0x618] sm:$0xff]
      %v2525 = vld [vmem:[%s309 + $0x620] sm:$0xff]
      %v2526 = vld [vmem:[%s309 + $0x628] sm:$0xff]
      %v2527 = vld [vmem:[%s309 + $0x630] sm:$0xff]
      %v2528 = vld [vmem:[%s309 + $0x638] sm:$0xff]
      %v2529 = vld [vmem:[%s309 + $0x640] sm:$0xff]
      %v2530 = vld [vmem:[%s309 + $0x648] sm:$0xff]
      %v2531 = vld [vmem:[%s309 + $0x650] sm:$0xff]
      %v2532 = vld [vmem:[%s309 + $0x658] sm:$0xff]
      %v2533 = vld [vmem:[%s309 + $0x660] sm:$0xff]
      %v2534 = vld [vmem:[%s309 + $0x668] sm:$0xff]
      %v2535 = vld [vmem:[%s309 + $0x670] sm:$0xff]
      %v2536 = vld [vmem:[%s309 + $0x678] sm:$0xff]
      %v2537 = vld [vmem:[%s309 + $0x680] sm:$0xff]
      %v2538 = vld [vmem:[%s309 + $0x688] sm:$0xff]
      %v2539 = vld [vmem:[%s309 + $0x690] sm:$0xff]
      %v2540 = vld [vmem:[%s309 + $0x698] sm:$0xff]
      %v2541 = vld [vmem:[%s309 + $0x6a0] sm:$0xff]
      %v2542 = vld [vmem:[%s309 + $0x6a8] sm:$0xff]
      %v2543 = vld [vmem:[%s309 + $0x6b0] sm:$0xff]
      %v2544 = vld [vmem:[%s309 + $0x6b8] sm:$0xff]
      %v2545 = vld [vmem:[%s309 + $0x6c0] sm:$0xff]
      %v2546 = vld [vmem:[%s309 + $0x6c8] sm:$0xff]
      %v2547 = vld [vmem:[%s309 + $0x6d0] sm:$0xff]
      %v2548 = vld [vmem:[%s309 + $0x6d8] sm:$0xff]
      %v2549 = vld [vmem:[%s309 + $0x6e0] sm:$0xff]
      %v2550 = vld [vmem:[%s309 + $0x6e8] sm:$0xff]
      %v2551 = vld [vmem:[%s309 + $0x6f0] sm:$0xff]
      %v2552 = vld [vmem:[%s309 + $0x6f8] sm:$0xff]
      %v2553 = vld [vmem:[%s309 + $0x700] sm:$0xff]
      %v2554 = vld [vmem:[%s309 + $0x708] sm:$0xff]
      %v2555 = vld [vmem:[%s309 + $0x710] sm:$0xff]
      %v2556 = vld [vmem:[%s309 + $0x718] sm:$0xff]
      %v2557 = vld [vmem:[%s309 + $0x720] sm:$0xff]
      %v2558 = vld [vmem:[%s309 + $0x728] sm:$0xff]
      %v2559 = vld [vmem:[%s309 + $0x730] sm:$0xff]
      %v2560 = vld [vmem:[%s309 + $0x738] sm:$0xff]
      %v2561 = vld [vmem:[%s309 + $0x740] sm:$0xff]
      %v2562 = vld [vmem:[%s309 + $0x748] sm:$0xff]
      %v2563 = vld [vmem:[%s309 + $0x750] sm:$0xff]
      %v2564 = vld [vmem:[%s309 + $0x758] sm:$0xff]
      %v2565 = vld [vmem:[%s309 + $0x760] sm:$0xff]
      %v2566 = vld [vmem:[%s309 + $0x768] sm:$0xff]
      %v2567 = vld [vmem:[%s309 + $0x770] sm:$0xff]
      %v2568 = vld [vmem:[%s309 + $0x778] sm:$0xff]
      %v2569 = vld [vmem:[%s309 + $0x780] sm:$0xff]
      %v2570 = vld [vmem:[%s309 + $0x788] sm:$0xff]
      %v2571 = vld [vmem:[%s309 + $0x790] sm:$0xff]
      %v2572 = vld [vmem:[%s309 + $0x798] sm:$0xff]
      %v2573 = vld [vmem:[%s309 + $0x7a0] sm:$0xff]
      %v2574 = vld [vmem:[%s309 + $0x7a8] sm:$0xff]
      %v2575 = vld [vmem:[%s309 + $0x7b0] sm:$0xff]
      %v2576 = vld [vmem:[%s309 + $0x7b8] sm:$0xff]
      %v2577 = vld [vmem:[%s309 + $0x7c0] sm:$0xff]
      %v2578 = vld [vmem:[%s309 + $0x7c8] sm:$0xff]
      %v2579 = vld [vmem:[%s309 + $0x7d0] sm:$0xff]
      %v2580 = vld [vmem:[%s309 + $0x7d8] sm:$0xff]
      %v2581 = vld [vmem:[%s309 + $0x7e0] sm:$0xff]
      %v2582 = vld [vmem:[%s309 + $0x7e8] sm:$0xff]
      %v2583 = vld [vmem:[%s309 + $0x7f0] sm:$0xff]
      %v2584 = vld [vmem:[%s309 + $0x7f8] sm:$0xff]
      %v2585 = vld [vmem:[%s309 + $0x800] sm:$0xff]
      %v2586 = vld [vmem:[%s309 + $0x808] sm:$0xff]
      %v2587 = vld [vmem:[%s309 + $0x810] sm:$0xff]
      %v2588 = vld [vmem:[%s309 + $0x818] sm:$0xff]
      %v2589 = vld [vmem:[%s309 + $0x820] sm:$0xff]
      %v2590 = vld [vmem:[%s309 + $0x828] sm:$0xff]
      %v2591 = vld [vmem:[%s309 + $0x830] sm:$0xff]
      %v2592 = vld [vmem:[%s309 + $0x838] sm:$0xff]
      %v2593 = vld [vmem:[%s309 + $0x840] sm:$0xff]
      %v2594 = vld [vmem:[%s309 + $0x848] sm:$0xff]
      %v2595 = vld [vmem:[%s309 + $0x850] sm:$0xff]
      %v2596 = vld [vmem:[%s309 + $0x858] sm:$0xff]
      %v2597 = vld [vmem:[%s309 + $0x860] sm:$0xff]
      %v2598 = vld [vmem:[%s309 + $0x868] sm:$0xff]
      %v2599 = vld [vmem:[%s309 + $0x870] sm:$0xff]
      %v2600 = vld [vmem:[%s309 + $0x878] sm:$0xff]
      %v2601 = vld [vmem:[%s309 + $0x880] sm:$0xff]
      %v2602 = vld [vmem:[%s309 + $0x888] sm:$0xff]
      %v2603 = vld [vmem:[%s309 + $0x890] sm:$0xff]
      %v2604 = vld [vmem:[%s309 + $0x898] sm:$0xff]
      %v2605 = vld [vmem:[%s309 + $0x8a0] sm:$0xff]
      %v2606 = vld [vmem:[%s309 + $0x8a8] sm:$0xff]
      %v2607 = vld [vmem:[%s309 + $0x8b0] sm:$0xff]
      %v2608 = vld [vmem:[%s309 + $0x8b8] sm:$0xff]
      %v2609 = vld [vmem:[%s309 + $0x8c0] sm:$0xff]
      %v2610 = vld [vmem:[%s309 + $0x8c8] sm:$0xff]
      %v2611 = vld [vmem:[%s309 + $0x8d0] sm:$0xff]
      %v2612 = vld [vmem:[%s309 + $0x8d8] sm:$0xff]
      %v2613 = vld [vmem:[%s309 + $0x8e0] sm:$0xff]
      %v2614 = vld [vmem:[%s309 + $0x8e8] sm:$0xff]
      %v2615 = vld [vmem:[%s309 + $0x8f0] sm:$0xff]
      %v2616 = vld [vmem:[%s309 + $0x8f8] sm:$0xff]
      %v2617 = vlaneseq
      %v2618 = vshrl.u32 %v2617, 7
      %v2619 = vsub.s32 0, %v2618
      %v2620 = vrot.slane %v2294, %v2619
      %v2621 = vlaneseq
      %v2622 = vshrl.u32 %v2621, 7
      %v2623 = vsub.s32 0, %v2622
      %v2624 = vrot.slane %v2296, %v2623
      %v2625 = vlaneseq
      %v2626 = vshrl.u32 %v2625, 7
      %v2627 = vsub.s32 0, %v2626
      %v2628 = vrot.slane %v2298, %v2627
      %v2629 = vlaneseq
      %v2630 = vshrl.u32 %v2629, 7
      %v2631 = vsub.s32 0, %v2630
      %v2632 = vrot.slane %v2300, %v2631
      %v2633 = vlaneseq
      %v2634 = vshrl.u32 %v2633, 7
      %v2635 = vsub.s32 0, %v2634
      %v2636 = vrot.slane %v2302, %v2635
      %v2637 = vlaneseq
      %v2638 = vshrl.u32 %v2637, 7
      %v2639 = vsub.s32 0, %v2638
      %v2640 = vrot.slane %v2304, %v2639
      %v2641 = vlaneseq
      %v2642 = vshrl.u32 %v2641, 7
      %v2643 = vsub.s32 0, %v2642
      %v2644 = vrot.slane %v2306, %v2643
      %v2645 = vlaneseq
      %v2646 = vshrl.u32 %v2645, 7
      %v2647 = vsub.s32 0, %v2646
      %v2648 = vrot.slane %v2308, %v2647
      %v2649 = vlaneseq
      %v2650 = vshrl.u32 %v2649, 7
      %v2651 = vsub.s32 0, %v2650
      %v2652 = vrot.slane %v2310, %v2651
      %v2653 = vlaneseq
      %v2654 = vshrl.u32 %v2653, 7
      %v2655 = vsub.s32 0, %v2654
      %v2656 = vrot.slane %v2312, %v2655
      %v2657 = vlaneseq
      %v2658 = vshrl.u32 %v2657, 7
      %v2659 = vsub.s32 0, %v2658
      %v2660 = vrot.slane %v2314, %v2659
      %v2661 = vlaneseq
      %v2662 = vshrl.u32 %v2661, 7
      %v2663 = vsub.s32 0, %v2662
      %v2664 = vrot.slane %v2316, %v2663
      %v2665 = vlaneseq
      %v2666 = vshrl.u32 %v2665, 7
      %v2667 = vsub.s32 0, %v2666
      %v2668 = vrot.slane %v2318, %v2667
      %v2669 = vlaneseq
      %v2670 = vshrl.u32 %v2669, 7
      %v2671 = vsub.s32 0, %v2670
      %v2672 = vrot.slane %v2320, %v2671
      %v2673 = vlaneseq
      %v2674 = vshrl.u32 %v2673, 7
      %v2675 = vsub.s32 0, %v2674
      %v2676 = vrot.slane %v2322, %v2675
      %v2677 = vlaneseq
      %v2678 = vshrl.u32 %v2677, 7
      %v2679 = vsub.s32 0, %v2678
      %v2680 = vrot.slane %v2324, %v2679
      %v2681 = vlaneseq
      %v2682 = vshrl.u32 %v2681, 7
      %v2683 = vsub.s32 0, %v2682
      %v2684 = vrot.slane %v2326, %v2683
      %v2685 = vlaneseq
      %v2686 = vshrl.u32 %v2685, 7
      %v2687 = vsub.s32 0, %v2686
      %v2688 = vrot.slane %v2328, %v2687
      %v2689 = vmul.f32 %v2329, %v2620
      %v2690 = vmul.f32 %v2330, %v2624
      %v2691 = vmul.f32 %v2331, %v2628
      %v2692 = vmul.f32 %v2332, %v2632
      %v2693 = vmul.f32 %v2333, %v2636
      %v2694 = vmul.f32 %v2334, %v2640
      %v2695 = vmul.f32 %v2335, %v2644
      %v2696 = vmul.f32 %v2336, %v2648
      %v2697 = vmul.f32 %v2337, %v2652
      %v2698 = vmul.f32 %v2338, %v2656
      %v2699 = vmul.f32 %v2339, %v2660
      %v2700 = vmul.f32 %v2340, %v2664
      %v2701 = vmul.f32 %v2341, %v2668
      %v2702 = vmul.f32 %v2342, %v2672
      %v2703 = vmul.f32 %v2343, %v2676
      %v2704 = vmul.f32 %v2344, %v2680
      %v2705 = vmul.f32 %v2345, %v2684
      %v2706 = vmul.f32 %v2346, %v2688
      %v2707 = vmul.f32 %v2347, %v2620
      %v2708 = vmul.f32 %v2348, %v2624
      %v2709 = vmul.f32 %v2349, %v2628
      %v2710 = vmul.f32 %v2350, %v2632
      %v2711 = vmul.f32 %v2351, %v2636
      %v2712 = vmul.f32 %v2352, %v2640
      %v2713 = vmul.f32 %v2353, %v2644
      %v2714 = vmul.f32 %v2354, %v2648
      %v2715 = vmul.f32 %v2355, %v2652
      %v2716 = vmul.f32 %v2356, %v2656
      %v2717 = vmul.f32 %v2357, %v2660
      %v2718 = vmul.f32 %v2358, %v2664
      %v2719 = vmul.f32 %v2359, %v2668
      %v2720 = vmul.f32 %v2360, %v2672
      %v2721 = vmul.f32 %v2361, %v2676
      %v2722 = vmul.f32 %v2362, %v2680
      %v2723 = vmul.f32 %v2363, %v2684
      %v2724 = vmul.f32 %v2364, %v2688
      %v2725 = vmul.f32 %v2365, %v2620
      %v2726 = vmul.f32 %v2366, %v2624
      %v2727 = vmul.f32 %v2367, %v2628
      %v2728 = vmul.f32 %v2368, %v2632
      %v2729 = vmul.f32 %v2369, %v2636
      %v2730 = vmul.f32 %v2370, %v2640
      %v2731 = vmul.f32 %v2371, %v2644
      %v2732 = vmul.f32 %v2372, %v2648
      %v2733 = vmul.f32 %v2373, %v2652
      %v2734 = vmul.f32 %v2374, %v2656
      %v2735 = vmul.f32 %v2375, %v2660
      %v2736 = vmul.f32 %v2376, %v2664
      %v2737 = vmul.f32 %v2377, %v2668
      %v2738 = vmul.f32 %v2378, %v2672
      %v2739 = vmul.f32 %v2379, %v2676
      %v2740 = vmul.f32 %v2380, %v2680
      %v2741 = vmul.f32 %v2381, %v2684
      %v2742 = vmul.f32 %v2382, %v2688
      %v2743 = vmul.f32 %v2383, %v2620
      %v2744 = vmul.f32 %v2384, %v2624
      %v2745 = vmul.f32 %v2385, %v2628
      %v2746 = vmul.f32 %v2386, %v2632
      %v2747 = vmul.f32 %v2387, %v2636
      %v2748 = vmul.f32 %v2388, %v2640
      %v2749 = vmul.f32 %v2389, %v2644
      %v2750 = vmul.f32 %v2390, %v2648
      %v2751 = vmul.f32 %v2391, %v2652
      %v2752 = vmul.f32 %v2392, %v2656
      %v2753 = vmul.f32 %v2393, %v2660
      %v2754 = vmul.f32 %v2394, %v2664
      %v2755 = vmul.f32 %v2395, %v2668
      %v2756 = vmul.f32 %v2396, %v2672
      %v2757 = vmul.f32 %v2397, %v2676
      %v2758 = vmul.f32 %v2398, %v2680
      %v2759 = vmul.f32 %v2399, %v2684
      %v2760 = vmul.f32 %v2400, %v2688
      %v2761 = vmul.f32 %v2401, %v2620
      %v2762 = vmul.f32 %v2402, %v2624
      %v2763 = vmul.f32 %v2403, %v2628
      %v2764 = vmul.f32 %v2404, %v2632
      %v2765 = vmul.f32 %v2405, %v2636
      %v2766 = vmul.f32 %v2406, %v2640
      %v2767 = vmul.f32 %v2407, %v2644
      %v2768 = vmul.f32 %v2408, %v2648
      %v2769 = vmul.f32 %v2409, %v2652
      %v2770 = vmul.f32 %v2410, %v2656
      %v2771 = vmul.f32 %v2411, %v2660
      %v2772 = vmul.f32 %v2412, %v2664
      %v2773 = vmul.f32 %v2413, %v2668
      %v2774 = vmul.f32 %v2414, %v2672
      %v2775 = vmul.f32 %v2415, %v2676
      %v2776 = vmul.f32 %v2416, %v2680
      %v2777 = vmul.f32 %v2417, %v2684
      %v2778 = vmul.f32 %v2418, %v2688
      %v2779 = vmul.f32 %v2419, %v2620
      %v2780 = vmul.f32 %v2420, %v2624
      %v2781 = vmul.f32 %v2421, %v2628
      %v2782 = vmul.f32 %v2422, %v2632
      %v2783 = vmul.f32 %v2423, %v2636
      %v2784 = vmul.f32 %v2424, %v2640
      %v2785 = vmul.f32 %v2425, %v2644
      %v2786 = vmul.f32 %v2426, %v2648
      %v2787 = vmul.f32 %v2427, %v2652
      %v2788 = vmul.f32 %v2428, %v2656
      %v2789 = vmul.f32 %v2429, %v2660
      %v2790 = vmul.f32 %v2430, %v2664
      %v2791 = vmul.f32 %v2431, %v2668
      %v2792 = vmul.f32 %v2432, %v2672
      %v2793 = vmul.f32 %v2433, %v2676
      %v2794 = vmul.f32 %v2434, %v2680
      %v2795 = vmul.f32 %v2435, %v2684
      %v2796 = vmul.f32 %v2436, %v2688
      %v2797 = vmul.f32 %v2437, %v2620
      %v2798 = vmul.f32 %v2438, %v2624
      %v2799 = vmul.f32 %v2439, %v2628
      %v2800 = vmul.f32 %v2440, %v2632
      %v2801 = vmul.f32 %v2441, %v2636
      %v2802 = vmul.f32 %v2442, %v2640
      %v2803 = vmul.f32 %v2443, %v2644
      %v2804 = vmul.f32 %v2444, %v2648
      %v2805 = vmul.f32 %v2445, %v2652
      %v2806 = vmul.f32 %v2446, %v2656
      %v2807 = vmul.f32 %v2447, %v2660
      %v2808 = vmul.f32 %v2448, %v2664
      %v2809 = vmul.f32 %v2449, %v2668
      %v2810 = vmul.f32 %v2450, %v2672
      %v2811 = vmul.f32 %v2451, %v2676
      %v2812 = vmul.f32 %v2452, %v2680
      %v2813 = vmul.f32 %v2453, %v2684
      %v2814 = vmul.f32 %v2454, %v2688
      %v2815 = vmul.f32 %v2455, %v2620
      %v2816 = vmul.f32 %v2456, %v2624
      %v2817 = vmul.f32 %v2457, %v2628
      %v2818 = vmul.f32 %v2458, %v2632
      %v2819 = vmul.f32 %v2459, %v2636
      %v2820 = vmul.f32 %v2460, %v2640
      %v2821 = vmul.f32 %v2461, %v2644
      %v2822 = vmul.f32 %v2462, %v2648
      %v2823 = vmul.f32 %v2463, %v2652
      %v2824 = vmul.f32 %v2464, %v2656
      %v2825 = vmul.f32 %v2465, %v2660
      %v2826 = vmul.f32 %v2466, %v2664
      %v2827 = vmul.f32 %v2467, %v2668
      %v2828 = vmul.f32 %v2468, %v2672
      %v2829 = vmul.f32 %v2469, %v2676
      %v2830 = vmul.f32 %v2470, %v2680
      %v2831 = vmul.f32 %v2471, %v2684
      %v2832 = vmul.f32 %v2472, %v2688
      %v2833 = vmul.f32 %v2473, %v2620
      %v2834 = vmul.f32 %v2474, %v2624
      %v2835 = vmul.f32 %v2475, %v2628
      %v2836 = vmul.f32 %v2476, %v2632
      %v2837 = vmul.f32 %v2477, %v2636
      %v2838 = vmul.f32 %v2478, %v2640
      %v2839 = vmul.f32 %v2479, %v2644
      %v2840 = vmul.f32 %v2480, %v2648
      %v2841 = vmul.f32 %v2481, %v2652
      %v2842 = vmul.f32 %v2482, %v2656
      %v2843 = vmul.f32 %v2483, %v2660
      %v2844 = vmul.f32 %v2484, %v2664
      %v2845 = vmul.f32 %v2485, %v2668
      %v2846 = vmul.f32 %v2486, %v2672
      %v2847 = vmul.f32 %v2487, %v2676
      %v2848 = vmul.f32 %v2488, %v2680
      %v2849 = vmul.f32 %v2489, %v2684
      %v2850 = vmul.f32 %v2490, %v2688
      %v2851 = vmul.f32 %v2491, %v2620
      %v2852 = vmul.f32 %v2492, %v2624
      %v2853 = vmul.f32 %v2493, %v2628
      %v2854 = vmul.f32 %v2494, %v2632
      %v2855 = vmul.f32 %v2495, %v2636
      %v2856 = vmul.f32 %v2496, %v2640
      %v2857 = vmul.f32 %v2497, %v2644
      %v2858 = vmul.f32 %v2498, %v2648
      %v2859 = vmul.f32 %v2499, %v2652
      %v2860 = vmul.f32 %v2500, %v2656
      %v2861 = vmul.f32 %v2501, %v2660
      %v2862 = vmul.f32 %v2502, %v2664
      %v2863 = vmul.f32 %v2503, %v2668
      %v2864 = vmul.f32 %v2504, %v2672
      %v2865 = vmul.f32 %v2505, %v2676
      %v2866 = vmul.f32 %v2506, %v2680
      %v2867 = vmul.f32 %v2507, %v2684
      %v2868 = vmul.f32 %v2508, %v2688
      %v2869 = vmul.f32 %v2509, %v2620
      %v2870 = vmul.f32 %v2510, %v2624
      %v2871 = vmul.f32 %v2511, %v2628
      %v2872 = vmul.f32 %v2512, %v2632
      %v2873 = vmul.f32 %v2513, %v2636
      %v2874 = vmul.f32 %v2514, %v2640
      %v2875 = vmul.f32 %v2515, %v2644
      %v2876 = vmul.f32 %v2516, %v2648
      %v2877 = vmul.f32 %v2517, %v2652
      %v2878 = vmul.f32 %v2518, %v2656
      %v2879 = vmul.f32 %v2519, %v2660
      %v2880 = vmul.f32 %v2520, %v2664
      %v2881 = vmul.f32 %v2521, %v2668
      %v2882 = vmul.f32 %v2522, %v2672
      %v2883 = vmul.f32 %v2523, %v2676
      %v2884 = vmul.f32 %v2524, %v2680
      %v2885 = vmul.f32 %v2525, %v2684
      %v2886 = vmul.f32 %v2526, %v2688
      %v2887 = vmul.f32 %v2527, %v2620
      %v2888 = vmul.f32 %v2528, %v2624
      %v2889 = vmul.f32 %v2529, %v2628
      %v2890 = vmul.f32 %v2530, %v2632
      %v2891 = vmul.f32 %v2531, %v2636
      %v2892 = vmul.f32 %v2532, %v2640
      %v2893 = vmul.f32 %v2533, %v2644
      %v2894 = vmul.f32 %v2534, %v2648
      %v2895 = vmul.f32 %v2535, %v2652
      %v2896 = vmul.f32 %v2536, %v2656
      %v2897 = vmul.f32 %v2537, %v2660
      %v2898 = vmul.f32 %v2538, %v2664
      %v2899 = vmul.f32 %v2539, %v2668
      %v2900 = vmul.f32 %v2540, %v2672
      %v2901 = vmul.f32 %v2541, %v2676
      %v2902 = vmul.f32 %v2542, %v2680
      %v2903 = vmul.f32 %v2543, %v2684
      %v2904 = vmul.f32 %v2544, %v2688
      %v2905 = vmul.f32 %v2545, %v2620
      %v2906 = vmul.f32 %v2546, %v2624
      %v2907 = vmul.f32 %v2547, %v2628
      %v2908 = vmul.f32 %v2548, %v2632
      %v2909 = vmul.f32 %v2549, %v2636
      %v2910 = vmul.f32 %v2550, %v2640
      %v2911 = vmul.f32 %v2551, %v2644
      %v2912 = vmul.f32 %v2552, %v2648
      %v2913 = vmul.f32 %v2553, %v2652
      %v2914 = vmul.f32 %v2554, %v2656
      %v2915 = vmul.f32 %v2555, %v2660
      %v2916 = vmul.f32 %v2556, %v2664
      %v2917 = vmul.f32 %v2557, %v2668
      %v2918 = vmul.f32 %v2558, %v2672
      %v2919 = vmul.f32 %v2559, %v2676
      %v2920 = vmul.f32 %v2560, %v2680
      %v2921 = vmul.f32 %v2561, %v2684
      %v2922 = vmul.f32 %v2562, %v2688
      %v2923 = vmul.f32 %v2563, %v2620
      %v2924 = vmul.f32 %v2564, %v2624
      %v2925 = vmul.f32 %v2565, %v2628
      %v2926 = vmul.f32 %v2566, %v2632
      %v2927 = vmul.f32 %v2567, %v2636
      %v2928 = vmul.f32 %v2568, %v2640
      %v2929 = vmul.f32 %v2569, %v2644
      %v2930 = vmul.f32 %v2570, %v2648
      %v2931 = vmul.f32 %v2571, %v2652
      %v2932 = vmul.f32 %v2572, %v2656
      %v2933 = vmul.f32 %v2573, %v2660
      %v2934 = vmul.f32 %v2574, %v2664
      %v2935 = vmul.f32 %v2575, %v2668
      %v2936 = vmul.f32 %v2576, %v2672
      %v2937 = vmul.f32 %v2577, %v2676
      %v2938 = vmul.f32 %v2578, %v2680
      %v2939 = vmul.f32 %v2579, %v2684
      %v2940 = vmul.f32 %v2580, %v2688
      %v2941 = vmul.f32 %v2581, %v2620
      %v2942 = vmul.f32 %v2582, %v2624
      %v2943 = vmul.f32 %v2583, %v2628
      %v2944 = vmul.f32 %v2584, %v2632
      %v2945 = vmul.f32 %v2585, %v2636
      %v2946 = vmul.f32 %v2586, %v2640
      %v2947 = vmul.f32 %v2587, %v2644
      %v2948 = vmul.f32 %v2588, %v2648
      %v2949 = vmul.f32 %v2589, %v2652
      %v2950 = vmul.f32 %v2590, %v2656
      %v2951 = vmul.f32 %v2591, %v2660
      %v2952 = vmul.f32 %v2592, %v2664
      %v2953 = vmul.f32 %v2593, %v2668
      %v2954 = vmul.f32 %v2594, %v2672
      %v2955 = vmul.f32 %v2595, %v2676
      %v2956 = vmul.f32 %v2596, %v2680
      %v2957 = vmul.f32 %v2597, %v2684
      %v2958 = vmul.f32 %v2598, %v2688
      %v2959 = vmul.f32 %v2599, %v2620
      %v2960 = vmul.f32 %v2600, %v2624
      %v2961 = vmul.f32 %v2601, %v2628
      %v2962 = vmul.f32 %v2602, %v2632
      %v2963 = vmul.f32 %v2603, %v2636
      %v2964 = vmul.f32 %v2604, %v2640
      %v2965 = vmul.f32 %v2605, %v2644
      %v2966 = vmul.f32 %v2606, %v2648
      %v2967 = vmul.f32 %v2607, %v2652
      %v2968 = vmul.f32 %v2608, %v2656
      %v2969 = vmul.f32 %v2609, %v2660
      %v2970 = vmul.f32 %v2610, %v2664
      %v2971 = vmul.f32 %v2611, %v2668
      %v2972 = vmul.f32 %v2612, %v2672
      %v2973 = vmul.f32 %v2613, %v2676
      %v2974 = vmul.f32 %v2614, %v2680
      %v2975 = vmul.f32 %v2615, %v2684
      %v2976 = vmul.f32 %v2616, %v2688
      %v2977 = vld [vmem:[%s3] sm:$0xff]
      %v2978 = vld [vmem:[%s3 + $0x8] sm:$0xff]
      %v2979 = vld [vmem:[%s3 + $0x10] sm:$0xff]
      %v2980 = vld [vmem:[%s3 + $0x18] sm:$0xff]
      %v2981 = vld [vmem:[%s3 + $0x20] sm:$0xff]
      %v2982 = vld [vmem:[%s3 + $0x28] sm:$0xff]
      %v2983 = vld [vmem:[%s3 + $0x30] sm:$0xff]
      %v2984 = vld [vmem:[%s3 + $0x38] sm:$0xff]
      %v2985 = vld [vmem:[%s3 + $0x40] sm:$0xff]
      %v2986 = vld [vmem:[%s3 + $0x48] sm:$0xff]
      %v2987 = vld [vmem:[%s3 + $0x50] sm:$0xff]
      %v2988 = vld [vmem:[%s3 + $0x58] sm:$0xff]
      %v2989 = vld [vmem:[%s3 + $0x60] sm:$0xff]
      %v2990 = vld [vmem:[%s3 + $0x68] sm:$0xff]
      %v2991 = vld [vmem:[%s3 + $0x70] sm:$0xff]
      %v2992 = vld [vmem:[%s3 + $0x78] sm:$0xff]
      %v2993 = vld [vmem:[%s3 + $0x80] sm:$0xff]
      %v2994 = vld [vmem:[%s3 + $0x88] sm:$0xff]
      %v2995 = vld [vmem:[%s3 + $0x90] sm:$0xff]
      %v2996 = vld [vmem:[%s3 + $0x98] sm:$0xff]
      %v2997 = vld [vmem:[%s3 + $0xa0] sm:$0xff]
      %v2998 = vld [vmem:[%s3 + $0xa8] sm:$0xff]
      %v2999 = vld [vmem:[%s3 + $0xb0] sm:$0xff]
      %v3000 = vld [vmem:[%s3 + $0xb8] sm:$0xff]
      %v3001 = vld [vmem:[%s3 + $0xc0] sm:$0xff]
      %v3002 = vld [vmem:[%s3 + $0xc8] sm:$0xff]
      %v3003 = vld [vmem:[%s3 + $0xd0] sm:$0xff]
      %v3004 = vld [vmem:[%s3 + $0xd8] sm:$0xff]
      %v3005 = vld [vmem:[%s3 + $0xe0] sm:$0xff]
      %v3006 = vld [vmem:[%s3 + $0xe8] sm:$0xff]
      %v3007 = vld [vmem:[%s3 + $0xf0] sm:$0xff]
      %v3008 = vld [vmem:[%s3 + $0xf8] sm:$0xff]
      %v3009 = vld [vmem:[%s3 + $0x100] sm:$0xff]
      %v3010 = vld [vmem:[%s3 + $0x108] sm:$0xff]
      %v3011 = vld [vmem:[%s3 + $0x110] sm:$0xff]
      %v3012 = vld [vmem:[%s3 + $0x118] sm:$0xff]
      %v3013 = vld [vmem:[%s3 + $0x120] sm:$0xff]
      %v3014 = vld [vmem:[%s3 + $0x128] sm:$0xff]
      %v3015 = vld [vmem:[%s3 + $0x130] sm:$0xff]
      %v3016 = vld [vmem:[%s3 + $0x138] sm:$0xff]
      %v3017 = vld [vmem:[%s3 + $0x140] sm:$0xff]
      %v3018 = vld [vmem:[%s3 + $0x148] sm:$0xff]
      %v3019 = vld [vmem:[%s3 + $0x150] sm:$0xff]
      %v3020 = vld [vmem:[%s3 + $0x158] sm:$0xff]
      %v3021 = vld [vmem:[%s3 + $0x160] sm:$0xff]
      %v3022 = vld [vmem:[%s3 + $0x168] sm:$0xff]
      %v3023 = vld [vmem:[%s3 + $0x170] sm:$0xff]
      %v3024 = vld [vmem:[%s3 + $0x178] sm:$0xff]
      %v3025 = vld [vmem:[%s3 + $0x180] sm:$0xff]
      %v3026 = vld [vmem:[%s3 + $0x188] sm:$0xff]
      %v3027 = vld [vmem:[%s3 + $0x190] sm:$0xff]
      %v3028 = vld [vmem:[%s3 + $0x198] sm:$0xff]
      %v3029 = vld [vmem:[%s3 + $0x1a0] sm:$0xff]
      %v3030 = vld [vmem:[%s3 + $0x1a8] sm:$0xff]
      %v3031 = vld [vmem:[%s3 + $0x1b0] sm:$0xff]
      %v3032 = vld [vmem:[%s3 + $0x1b8] sm:$0xff]
      %v3033 = vld [vmem:[%s3 + $0x1c0] sm:$0xff]
      %v3034 = vld [vmem:[%s3 + $0x1c8] sm:$0xff]
      %v3035 = vld [vmem:[%s3 + $0x1d0] sm:$0xff]
      %v3036 = vld [vmem:[%s3 + $0x1d8] sm:$0xff]
      %v3037 = vld [vmem:[%s3 + $0x1e0] sm:$0xff]
      %v3038 = vld [vmem:[%s3 + $0x1e8] sm:$0xff]
      %v3039 = vld [vmem:[%s3 + $0x1f0] sm:$0xff]
      %v3040 = vld [vmem:[%s3 + $0x1f8] sm:$0xff]
      %v3041 = vld [vmem:[%s3 + $0x200] sm:$0xff]
      %v3042 = vld [vmem:[%s3 + $0x208] sm:$0xff]
      %v3043 = vld [vmem:[%s3 + $0x210] sm:$0xff]
      %v3044 = vld [vmem:[%s3 + $0x218] sm:$0xff]
      %v3045 = vld [vmem:[%s3 + $0x220] sm:$0xff]
      %v3046 = vld [vmem:[%s3 + $0x228] sm:$0xff]
      %v3047 = vld [vmem:[%s3 + $0x230] sm:$0xff]
      %v3048 = vld [vmem:[%s3 + $0x238] sm:$0xff]
      %v3049 = vld [vmem:[%s3 + $0x240] sm:$0xff]
      %v3050 = vld [vmem:[%s3 + $0x248] sm:$0xff]
      %v3051 = vld [vmem:[%s3 + $0x250] sm:$0xff]
      %v3052 = vld [vmem:[%s3 + $0x258] sm:$0xff]
      %v3053 = vld [vmem:[%s3 + $0x260] sm:$0xff]
      %v3054 = vld [vmem:[%s3 + $0x268] sm:$0xff]
      %v3055 = vld [vmem:[%s3 + $0x270] sm:$0xff]
      %v3056 = vld [vmem:[%s3 + $0x278] sm:$0xff]
      %v3057 = vld [vmem:[%s3 + $0x280] sm:$0xff]
      %v3058 = vld [vmem:[%s3 + $0x288] sm:$0xff]
      %v3059 = vld [vmem:[%s3 + $0x290] sm:$0xff]
      %v3060 = vld [vmem:[%s3 + $0x298] sm:$0xff]
      %v3061 = vld [vmem:[%s3 + $0x2a0] sm:$0xff]
      %v3062 = vld [vmem:[%s3 + $0x2a8] sm:$0xff]
      %v3063 = vld [vmem:[%s3 + $0x2b0] sm:$0xff]
      %v3064 = vld [vmem:[%s3 + $0x2b8] sm:$0xff]
      %v3065 = vld [vmem:[%s3 + $0x2c0] sm:$0xff]
      %v3066 = vld [vmem:[%s3 + $0x2c8] sm:$0xff]
      %v3067 = vld [vmem:[%s3 + $0x2d0] sm:$0xff]
      %v3068 = vld [vmem:[%s3 + $0x2d8] sm:$0xff]
      %v3069 = vld [vmem:[%s3 + $0x2e0] sm:$0xff]
      %v3070 = vld [vmem:[%s3 + $0x2e8] sm:$0xff]
      %v3071 = vld [vmem:[%s3 + $0x2f0] sm:$0xff]
      %v3072 = vld [vmem:[%s3 + $0x2f8] sm:$0xff]
      %v3073 = vld [vmem:[%s3 + $0x300] sm:$0xff]
      %v3074 = vld [vmem:[%s3 + $0x308] sm:$0xff]
      %v3075 = vld [vmem:[%s3 + $0x310] sm:$0xff]
      %v3076 = vld [vmem:[%s3 + $0x318] sm:$0xff]
      %v3077 = vld [vmem:[%s3 + $0x320] sm:$0xff]
      %v3078 = vld [vmem:[%s3 + $0x328] sm:$0xff]
      %v3079 = vld [vmem:[%s3 + $0x330] sm:$0xff]
      %v3080 = vld [vmem:[%s3 + $0x338] sm:$0xff]
      %v3081 = vld [vmem:[%s3 + $0x340] sm:$0xff]
      %v3082 = vld [vmem:[%s3 + $0x348] sm:$0xff]
      %v3083 = vld [vmem:[%s3 + $0x350] sm:$0xff]
      %v3084 = vld [vmem:[%s3 + $0x358] sm:$0xff]
      %v3085 = vld [vmem:[%s3 + $0x360] sm:$0xff]
      %v3086 = vld [vmem:[%s3 + $0x368] sm:$0xff]
      %v3087 = vld [vmem:[%s3 + $0x370] sm:$0xff]
      %v3088 = vld [vmem:[%s3 + $0x378] sm:$0xff]
      %v3089 = vld [vmem:[%s3 + $0x380] sm:$0xff]
      %v3090 = vld [vmem:[%s3 + $0x388] sm:$0xff]
      %v3091 = vld [vmem:[%s3 + $0x390] sm:$0xff]
      %v3092 = vld [vmem:[%s3 + $0x398] sm:$0xff]
      %v3093 = vld [vmem:[%s3 + $0x3a0] sm:$0xff]
      %v3094 = vld [vmem:[%s3 + $0x3a8] sm:$0xff]
      %v3095 = vld [vmem:[%s3 + $0x3b0] sm:$0xff]
      %v3096 = vld [vmem:[%s3 + $0x3b8] sm:$0xff]
      %v3097 = vld [vmem:[%s3 + $0x3c0] sm:$0xff]
      %v3098 = vld [vmem:[%s3 + $0x3c8] sm:$0xff]
      %v3099 = vld [vmem:[%s3 + $0x3d0] sm:$0xff]
      %v3100 = vld [vmem:[%s3 + $0x3d8] sm:$0xff]
      %v3101 = vld [vmem:[%s3 + $0x3e0] sm:$0xff]
      %v3102 = vld [vmem:[%s3 + $0x3e8] sm:$0xff]
      %v3103 = vld [vmem:[%s3 + $0x3f0] sm:$0xff]
      %v3104 = vld [vmem:[%s3 + $0x3f8] sm:$0xff]
      %v3105 = vld [vmem:[%s3 + $0x400] sm:$0xff]
      %v3106 = vld [vmem:[%s3 + $0x408] sm:$0xff]
      %v3107 = vld [vmem:[%s3 + $0x410] sm:$0xff]
      %v3108 = vld [vmem:[%s3 + $0x418] sm:$0xff]
      %v3109 = vld [vmem:[%s3 + $0x420] sm:$0xff]
      %v3110 = vld [vmem:[%s3 + $0x428] sm:$0xff]
      %v3111 = vld [vmem:[%s3 + $0x430] sm:$0xff]
      %v3112 = vld [vmem:[%s3 + $0x438] sm:$0xff]
      %v3113 = vld [vmem:[%s3 + $0x440] sm:$0xff]
      %v3114 = vld [vmem:[%s3 + $0x448] sm:$0xff]
      %v3115 = vld [vmem:[%s3 + $0x450] sm:$0xff]
      %v3116 = vld [vmem:[%s3 + $0x458] sm:$0xff]
      %v3117 = vld [vmem:[%s3 + $0x460] sm:$0xff]
      %v3118 = vld [vmem:[%s3 + $0x468] sm:$0xff]
      %v3119 = vld [vmem:[%s3 + $0x470] sm:$0xff]
      %v3120 = vld [vmem:[%s3 + $0x478] sm:$0xff]
      %v3121 = vld [vmem:[%s3 + $0x480] sm:$0xff]
      %v3122 = vld [vmem:[%s3 + $0x488] sm:$0xff]
      %v3123 = vld [vmem:[%s3 + $0x490] sm:$0xff]
      %v3124 = vld [vmem:[%s3 + $0x498] sm:$0xff]
      %v3125 = vld [vmem:[%s3 + $0x4a0] sm:$0xff]
      %v3126 = vld [vmem:[%s3 + $0x4a8] sm:$0xff]
      %v3127 = vld [vmem:[%s3 + $0x4b0] sm:$0xff]
      %v3128 = vld [vmem:[%s3 + $0x4b8] sm:$0xff]
      %v3129 = vld [vmem:[%s3 + $0x4c0] sm:$0xff]
      %v3130 = vld [vmem:[%s3 + $0x4c8] sm:$0xff]
      %v3131 = vld [vmem:[%s3 + $0x4d0] sm:$0xff]
      %v3132 = vld [vmem:[%s3 + $0x4d8] sm:$0xff]
      %v3133 = vld [vmem:[%s3 + $0x4e0] sm:$0xff]
      %v3134 = vld [vmem:[%s3 + $0x4e8] sm:$0xff]
      %v3135 = vld [vmem:[%s3 + $0x4f0] sm:$0xff]
      %v3136 = vld [vmem:[%s3 + $0x4f8] sm:$0xff]
      %v3137 = vld [vmem:[%s3 + $0x500] sm:$0xff]
      %v3138 = vld [vmem:[%s3 + $0x508] sm:$0xff]
      %v3139 = vld [vmem:[%s3 + $0x510] sm:$0xff]
      %v3140 = vld [vmem:[%s3 + $0x518] sm:$0xff]
      %v3141 = vld [vmem:[%s3 + $0x520] sm:$0xff]
      %v3142 = vld [vmem:[%s3 + $0x528] sm:$0xff]
      %v3143 = vld [vmem:[%s3 + $0x530] sm:$0xff]
      %v3144 = vld [vmem:[%s3 + $0x538] sm:$0xff]
      %v3145 = vld [vmem:[%s3 + $0x540] sm:$0xff]
      %v3146 = vld [vmem:[%s3 + $0x548] sm:$0xff]
      %v3147 = vld [vmem:[%s3 + $0x550] sm:$0xff]
      %v3148 = vld [vmem:[%s3 + $0x558] sm:$0xff]
      %v3149 = vld [vmem:[%s3 + $0x560] sm:$0xff]
      %v3150 = vld [vmem:[%s3 + $0x568] sm:$0xff]
      %v3151 = vld [vmem:[%s3 + $0x570] sm:$0xff]
      %v3152 = vld [vmem:[%s3 + $0x578] sm:$0xff]
      %v3153 = vld [vmem:[%s3 + $0x580] sm:$0xff]
      %v3154 = vld [vmem:[%s3 + $0x588] sm:$0xff]
      %v3155 = vld [vmem:[%s3 + $0x590] sm:$0xff]
      %v3156 = vld [vmem:[%s3 + $0x598] sm:$0xff]
      %v3157 = vld [vmem:[%s3 + $0x5a0] sm:$0xff]
      %v3158 = vld [vmem:[%s3 + $0x5a8] sm:$0xff]
      %v3159 = vld [vmem:[%s3 + $0x5b0] sm:$0xff]
      %v3160 = vld [vmem:[%s3 + $0x5b8] sm:$0xff]
      %v3161 = vld [vmem:[%s3 + $0x5c0] sm:$0xff]
      %v3162 = vld [vmem:[%s3 + $0x5c8] sm:$0xff]
      %v3163 = vld [vmem:[%s3 + $0x5d0] sm:$0xff]
      %v3164 = vld [vmem:[%s3 + $0x5d8] sm:$0xff]
      %v3165 = vld [vmem:[%s3 + $0x5e0] sm:$0xff]
      %v3166 = vld [vmem:[%s3 + $0x5e8] sm:$0xff]
      %v3167 = vld [vmem:[%s3 + $0x5f0] sm:$0xff]
      %v3168 = vld [vmem:[%s3 + $0x5f8] sm:$0xff]
      %v3169 = vld [vmem:[%s3 + $0x600] sm:$0xff]
      %v3170 = vld [vmem:[%s3 + $0x608] sm:$0xff]
      %v3171 = vld [vmem:[%s3 + $0x610] sm:$0xff]
      %v3172 = vld [vmem:[%s3 + $0x618] sm:$0xff]
      %v3173 = vld [vmem:[%s3 + $0x620] sm:$0xff]
      %v3174 = vld [vmem:[%s3 + $0x628] sm:$0xff]
      %v3175 = vld [vmem:[%s3 + $0x630] sm:$0xff]
      %v3176 = vld [vmem:[%s3 + $0x638] sm:$0xff]
      %v3177 = vld [vmem:[%s3 + $0x640] sm:$0xff]
      %v3178 = vld [vmem:[%s3 + $0x648] sm:$0xff]
      %v3179 = vld [vmem:[%s3 + $0x650] sm:$0xff]
      %v3180 = vld [vmem:[%s3 + $0x658] sm:$0xff]
      %v3181 = vld [vmem:[%s3 + $0x660] sm:$0xff]
      %v3182 = vld [vmem:[%s3 + $0x668] sm:$0xff]
      %v3183 = vld [vmem:[%s3 + $0x670] sm:$0xff]
      %v3184 = vld [vmem:[%s3 + $0x678] sm:$0xff]
      %v3185 = vld [vmem:[%s3 + $0x680] sm:$0xff]
      %v3186 = vld [vmem:[%s3 + $0x688] sm:$0xff]
      %v3187 = vld [vmem:[%s3 + $0x690] sm:$0xff]
      %v3188 = vld [vmem:[%s3 + $0x698] sm:$0xff]
      %v3189 = vld [vmem:[%s3 + $0x6a0] sm:$0xff]
      %v3190 = vld [vmem:[%s3 + $0x6a8] sm:$0xff]
      %v3191 = vld [vmem:[%s3 + $0x6b0] sm:$0xff]
      %v3192 = vld [vmem:[%s3 + $0x6b8] sm:$0xff]
      %v3193 = vld [vmem:[%s3 + $0x6c0] sm:$0xff]
      %v3194 = vld [vmem:[%s3 + $0x6c8] sm:$0xff]
      %v3195 = vld [vmem:[%s3 + $0x6d0] sm:$0xff]
      %v3196 = vld [vmem:[%s3 + $0x6d8] sm:$0xff]
      %v3197 = vld [vmem:[%s3 + $0x6e0] sm:$0xff]
      %v3198 = vld [vmem:[%s3 + $0x6e8] sm:$0xff]
      %v3199 = vld [vmem:[%s3 + $0x6f0] sm:$0xff]
      %v3200 = vld [vmem:[%s3 + $0x6f8] sm:$0xff]
      %v3201 = vld [vmem:[%s3 + $0x700] sm:$0xff]
      %v3202 = vld [vmem:[%s3 + $0x708] sm:$0xff]
      %v3203 = vld [vmem:[%s3 + $0x710] sm:$0xff]
      %v3204 = vld [vmem:[%s3 + $0x718] sm:$0xff]
      %v3205 = vld [vmem:[%s3 + $0x720] sm:$0xff]
      %v3206 = vld [vmem:[%s3 + $0x728] sm:$0xff]
      %v3207 = vld [vmem:[%s3 + $0x730] sm:$0xff]
      %v3208 = vld [vmem:[%s3 + $0x738] sm:$0xff]
      %v3209 = vld [vmem:[%s3 + $0x740] sm:$0xff]
      %v3210 = vld [vmem:[%s3 + $0x748] sm:$0xff]
      %v3211 = vld [vmem:[%s3 + $0x750] sm:$0xff]
      %v3212 = vld [vmem:[%s3 + $0x758] sm:$0xff]
      %v3213 = vld [vmem:[%s3 + $0x760] sm:$0xff]
      %v3214 = vld [vmem:[%s3 + $0x768] sm:$0xff]
      %v3215 = vld [vmem:[%s3 + $0x770] sm:$0xff]
      %v3216 = vld [vmem:[%s3 + $0x778] sm:$0xff]
      %v3217 = vld [vmem:[%s3 + $0x780] sm:$0xff]
      %v3218 = vld [vmem:[%s3 + $0x788] sm:$0xff]
      %v3219 = vld [vmem:[%s3 + $0x790] sm:$0xff]
      %v3220 = vld [vmem:[%s3 + $0x798] sm:$0xff]
      %v3221 = vld [vmem:[%s3 + $0x7a0] sm:$0xff]
      %v3222 = vld [vmem:[%s3 + $0x7a8] sm:$0xff]
      %v3223 = vld [vmem:[%s3 + $0x7b0] sm:$0xff]
      %v3224 = vld [vmem:[%s3 + $0x7b8] sm:$0xff]
      %v3225 = vld [vmem:[%s3 + $0x7c0] sm:$0xff]
      %v3226 = vld [vmem:[%s3 + $0x7c8] sm:$0xff]
      %v3227 = vld [vmem:[%s3 + $0x7d0] sm:$0xff]
      %v3228 = vld [vmem:[%s3 + $0x7d8] sm:$0xff]
      %v3229 = vld [vmem:[%s3 + $0x7e0] sm:$0xff]
      %v3230 = vld [vmem:[%s3 + $0x7e8] sm:$0xff]
      %v3231 = vld [vmem:[%s3 + $0x7f0] sm:$0xff]
      %v3232 = vld [vmem:[%s3 + $0x7f8] sm:$0xff]
      %v3233 = vld [vmem:[%s3 + $0x800] sm:$0xff]
      %v3234 = vld [vmem:[%s3 + $0x808] sm:$0xff]
      %v3235 = vld [vmem:[%s3 + $0x810] sm:$0xff]
      %v3236 = vld [vmem:[%s3 + $0x818] sm:$0xff]
      %v3237 = vld [vmem:[%s3 + $0x820] sm:$0xff]
      %v3238 = vld [vmem:[%s3 + $0x828] sm:$0xff]
      %v3239 = vld [vmem:[%s3 + $0x830] sm:$0xff]
      %v3240 = vld [vmem:[%s3 + $0x838] sm:$0xff]
      %v3241 = vld [vmem:[%s3 + $0x840] sm:$0xff]
      %v3242 = vld [vmem:[%s3 + $0x848] sm:$0xff]
      %v3243 = vld [vmem:[%s3 + $0x850] sm:$0xff]
      %v3244 = vld [vmem:[%s3 + $0x858] sm:$0xff]
      %v3245 = vld [vmem:[%s3 + $0x860] sm:$0xff]
      %v3246 = vld [vmem:[%s3 + $0x868] sm:$0xff]
      %v3247 = vld [vmem:[%s3 + $0x870] sm:$0xff]
      %v3248 = vld [vmem:[%s3 + $0x878] sm:$0xff]
      %v3249 = vld [vmem:[%s3 + $0x880] sm:$0xff]
      %v3250 = vld [vmem:[%s3 + $0x888] sm:$0xff]
      %v3251 = vld [vmem:[%s3 + $0x890] sm:$0xff]
      %v3252 = vld [vmem:[%s3 + $0x898] sm:$0xff]
      %v3253 = vld [vmem:[%s3 + $0x8a0] sm:$0xff]
      %v3254 = vld [vmem:[%s3 + $0x8a8] sm:$0xff]
      %v3255 = vld [vmem:[%s3 + $0x8b0] sm:$0xff]
      %v3256 = vld [vmem:[%s3 + $0x8b8] sm:$0xff]
      %v3257 = vld [vmem:[%s3 + $0x8c0] sm:$0xff]
      %v3258 = vld [vmem:[%s3 + $0x8c8] sm:$0xff]
      %v3259 = vld [vmem:[%s3 + $0x8d0] sm:$0xff]
      %v3260 = vld [vmem:[%s3 + $0x8d8] sm:$0xff]
      %v3261 = vld [vmem:[%s3 + $0x8e0] sm:$0xff]
      %v3262 = vld [vmem:[%s3 + $0x8e8] sm:$0xff]
      %v3263 = vld [vmem:[%s3 + $0x8f0] sm:$0xff]
      %v3264 = vld [vmem:[%s3 + $0x8f8] sm:$0xff]
      %3265 = vmatprep.subr.mxu0 0.0
      %3266 = vmatpush1.msra.mxu0 %v2977
      %3267 = vmatprep.subr.mxu0 0.0
      %3268 = vmatpush1.msra.mxu0 %v2978
      %3269 = vmatprep.subr.mxu0 0.0
      %3270 = vmatpush1.msra.mxu0 %v2979
      %3271 = vmatprep.subr.mxu0 0.0
      %3272 = vmatpush1.msra.mxu0 %v2980
      %3273 = vmatprep.subr.mxu0 0.0
      %3274 = vmatpush1.msra.mxu0 %v2981
      %3275 = vmatprep.subr.mxu0 0.0
      %3276 = vmatpush1.msra.mxu0 %v2982
      %3277 = vmatprep.subr.mxu0 0.0
      %3278 = vmatpush1.msra.mxu0 %v2983
      %3279 = vmatprep.subr.mxu0 0.0
      %3280 = vmatpush1.msra.mxu0 %v2984
      %3281 = vmatprep.subr.mxu0 0.0
      %3282 = vmatpush1.msra.mxu0 %v2985
      %3283 = vmatprep.subr.mxu0 0.0
      %3284 = vmatpush1.msra.mxu0 %v2986
      %3285 = vmatprep.subr.mxu0 0.0
      %3286 = vmatpush1.msra.mxu0 %v2987
      %3287 = vmatprep.subr.mxu0 0.0
      %3288 = vmatpush1.msra.mxu0 %v2988
      %3289 = vmatprep.subr.mxu0 0.0
      %3290 = vmatpush1.msra.mxu0 %v2989
      %3291 = vmatprep.subr.mxu0 0.0
      %3292 = vmatpush1.msra.mxu0 %v2990
      %3293 = vmatprep.subr.mxu0 0.0
      %3294 = vmatpush1.msra.mxu0 %v2991
      %3295 = vmatprep.subr.mxu0 0.0
      %3296 = vmatpush1.msra.mxu0 %v2992
      %3297 = vmatprep.subr.mxu0 0.0
      %3298 = vmatpush1.msra.mxu0 %v2993
      %3299 = vmatprep.subr.mxu0 0.0
      %3300 = vmatpush1.msra.mxu0 %v2994
      %3301 = vmatprep.subr.mxu0 0.0
      %3302 = vmatpush1.msra.mxu0 %v2995
      %3303 = vmatprep.subr.mxu0 0.0
      %3304 = vmatpush1.msra.mxu0 %v2996
      %3305 = vmatprep.subr.mxu0 0.0
      %3306 = vmatpush1.msra.mxu0 %v2997
      %3307 = vmatprep.subr.mxu0 0.0
      %3308 = vmatpush1.msra.mxu0 %v2998
      %3309 = vmatprep.subr.mxu0 0.0
      %3310 = vmatpush1.msra.mxu0 %v2999
      %3311 = vmatprep.subr.mxu0 0.0
      %3312 = vmatpush1.msra.mxu0 %v3000
      %3313 = vmatprep.subr.mxu0 0.0
      %3314 = vmatpush1.msra.mxu0 %v3001
      %3315 = vmatprep.subr.mxu0 0.0
      %3316 = vmatpush1.msra.mxu0 %v3002
      %3317 = vmatprep.subr.mxu0 0.0
      %3318 = vmatpush1.msra.mxu0 %v3003
      %3319 = vmatprep.subr.mxu0 0.0
      %3320 = vmatpush1.msra.mxu0 %v3004
      %3321 = vmatprep.subr.mxu0 0.0
      %3322 = vmatpush1.msra.mxu0 %v3005
      %3323 = vmatprep.subr.mxu0 0.0
      %3324 = vmatpush1.msra.mxu0 %v3006
      %3325 = vmatprep.subr.mxu0 0.0
      %3326 = vmatpush1.msra.mxu0 %v3007
      %3327 = vmatprep.subr.mxu0 0.0
      %3328 = vmatpush1.msra.mxu0 %v3008
      %3329 = vmatprep.mubr.f32.mxu0 %v2690
      %3330 = vmatmul.mubr.f32.gmra.mrb[0].mxu0 %v2689
      %v3331 = vpop.f32.mrb[0].mxu0
      %v3332 = vadd.f32 0.0, %v3331
      %v3333 = vpop.f32.mrb[0].mxu0
      %3334 = vmatprep.mubr.f32.mxu0 %v2708
      %3335 = vmatmul.mubr.f32.gmra.mrb[0].mxu0 %v2707
      %v3336 = vpop.f32.mrb[0].mxu0
      %v3337 = vadd.f32 0.0, %v3336
      %v3338 = vpop.f32.mrb[0].mxu0
      %3339 = vmatprep.mubr.f32.mxu0 %v2726
      %3340 = vmatmul.mubr.f32.gmra.mrb[0].mxu0 %v2725
      %v3341 = vpop.f32.mrb[0].mxu0
      %v3342 = vadd.f32 0.0, %v3341
      %v3343 = vpop.f32.mrb[0].mxu0
      %3344 = vmatprep.mubr.f32.mxu0 %v2744
      %3345 = vmatmul.mubr.f32.gmra.mrb[0].mxu0 %v2743
      %v3346 = vpop.f32.mrb[0].mxu0
      %v3347 = vadd.f32 0.0, %v3346
      %v3348 = vpop.f32.mrb[0].mxu0
      %3349 = vmatprep.mubr.f32.mxu0 %v2762
      %3350 = vmatmul.mubr.f32.gmra.mrb[0].mxu0 %v2761
      %v3351 = vpop.f32.mrb[0].mxu0
      %v3352 = vadd.f32 0.0, %v3351
      %v3353 = vpop.f32.mrb[0].mxu0
      %3354 = vmatprep.mubr.f32.mxu0 %v2780
      %3355 = vmatmul.mubr.f32.gmra.mrb[0].mxu0 %v2779
      %v3356 = vpop.f32.mrb[0].mxu0
      %v3357 = vadd.f32 0.0, %v3356
      %v3358 = vpop.f32.mrb[0].mxu0
      %3359 = vmatprep.mubr.f32.mxu0 %v2798
      %3360 = vmatmul.mubr.f32.gmra.mrb[0].mxu0 %v2797
      %v3361 = vpop.f32.mrb[0].mxu0
      %v3362 = vadd.f32 0.0, %v3361
      %v3363 = vpop.f32.mrb[0].mxu0
      %3364 = vmatprep.mubr.f32.mxu0 %v2816
      %3365 = vmatmul.mubr.f32.gmra.mrb[0].mxu0 %v2815
      %v3366 = vpop.f32.mrb[0].mxu0
      %v3367 = vadd.f32 0.0, %v3366
      %v3368 = vpop.f32.mrb[0].mxu0
      %3369 = vmatprep.mubr.f32.mxu0 %v2834
      %3370 = vmatmul.mubr.f32.gmra.mrb[0].mxu0 %v2833
      %v3371 = vpop.f32.mrb[0].mxu0
      %v3372 = vadd.f32 0.0, %v3371
      %v3373 = vpop.f32.mrb[0].mxu0
      %3374 = vmatprep.mubr.f32.mxu0 %v2852
      %3375 = vmatmul.mubr.f32.gmra.mrb[0].mxu0 %v2851
      %v3376 = vpop.f32.mrb[0].mxu0
      %v3377 = vadd.f32 0.0, %v3376
      %v3378 = vpop.f32.mrb[0].mxu0
      %3379 = vmatprep.mubr.f32.mxu0 %v2870
      %3380 = vmatmul.mubr.f32.gmra.mrb[0].mxu0 %v2869
      %v3381 = vpop.f32.mrb[0].mxu0
      %v3382 = vadd.f32 0.0, %v3381
      %v3383 = vpop.f32.mrb[0].mxu0
      %3384 = vmatprep.mubr.f32.mxu0 %v2888
      %3385 = vmatmul.mubr.f32.gmra.mrb[0].mxu0 %v2887
      %v3386 = vpop.f32.mrb[0].mxu0
      %v3387 = vadd.f32 0.0, %v3386
      %v3388 = vpop.f32.mrb[0].mxu0
      %3389 = vmatprep.mubr.f32.mxu0 %v2906
      %3390 = vmatmul.mubr.f32.gmra.mrb[0].mxu0 %v2905
      %v3391 = vpop.f32.mrb[0].mxu0
      %v3392 = vadd.f32 0.0, %v3391
      %v3393 = vpop.f32.mrb[0].mxu0
      %3394 = vmatprep.mubr.f32.mxu0 %v2924
      %3395 = vmatmul.mubr.f32.gmra.mrb[0].mxu0 %v2923
      %v3396 = vpop.f32.mrb[0].mxu0
      %v3397 = vadd.f32 0.0, %v3396
      %v3398 = vpop.f32.mrb[0].mxu0
      %3399 = vmatprep.mubr.f32.mxu0 %v2942
      %3400 = vmatmul.mubr.f32.gmra.mrb[0].mxu0 %v2941
      %v3401 = vpop.f32.mrb[0].mxu0
      %v3402 = vadd.f32 0.0, %v3401
      %v3403 = vpop.f32.mrb[0].mxu0
      %3404 = vmatprep.mubr.f32.mxu0 %v2960
      %3405 = vmatmul.mubr.f32.gmra.mrb[0].mxu0 %v2959
      %v3406 = vpop.f32.mrb[0].mxu0
      %v3407 = vadd.f32 0.0, %v3406
      %v3408 = vpop.f32.mrb[0].mxu0
      %3409 = vdwg.mxu0
      %3410 = vmatprep.subr.mxu0 0.0
      %3411 = vmatpush1.msra.mxu0 %v3009
      %3412 = vmatprep.subr.mxu0 0.0
      %3413 = vmatpush1.msra.mxu0 %v3010
      %3414 = vmatprep.subr.mxu0 0.0
      %3415 = vmatpush1.msra.mxu0 %v3011
      %3416 = vmatprep.subr.mxu0 0.0
      %3417 = vmatpush1.msra.mxu0 %v3012
      %3418 = vmatprep.subr.mxu0 0.0
      %3419 = vmatpush1.msra.mxu0 %v3013
      %3420 = vmatprep.subr.mxu0 0.0
      %3421 = vmatpush1.msra.mxu0 %v3014
      %3422 = vmatprep.subr.mxu0 0.0
      %3423 = vmatpush1.msra.mxu0 %v3015
      %3424 = vmatprep.subr.mxu0 0.0
      %3425 = vmatpush1.msra.mxu0 %v3016
      %3426 = vmatprep.subr.mxu0 0.0
      %3427 = vmatpush1.msra.mxu0 %v3017
      %3428 = vmatprep.subr.mxu0 0.0
      %3429 = vmatpush1.msra.mxu0 %v3018
      %3430 = vmatprep.subr.mxu0 0.0
      %3431 = vmatpush1.msra.mxu0 %v3019
      %3432 = vmatprep.subr.mxu0 0.0
      %3433 = vmatpush1.msra.mxu0 %v3020
      %3434 = vmatprep.subr.mxu0 0.0
      %3435 = vmatpush1.msra.mxu0 %v3021
      %3436 = vmatprep.subr.mxu0 0.0
      %3437 = vmatpush1.msra.mxu0 %v3022
      %3438 = vmatprep.subr.mxu0 0.0
      %3439 = vmatpush1.msra.mxu0 %v3023
      %3440 = vmatprep.subr.mxu0 0.0
      %3441 = vmatpush1.msra.mxu0 %v3024
      %3442 = vmatprep.subr.mxu0 0.0
      %3443 = vmatpush1.msra.mxu0 %v3025
      %3444 = vmatprep.subr.mxu0 0.0
      %3445 = vmatpush1.msra.mxu0 %v3026
      %3446 = vmatprep.subr.mxu0 0.0
      %3447 = vmatpush1.msra.mxu0 %v3027
      %3448 = vmatprep.subr.mxu0 0.0
      %3449 = vmatpush1.msra.mxu0 %v3028
      %3450 = vmatprep.subr.mxu0 0.0
      %3451 = vmatpush1.msra.mxu0 %v3029
      %3452 = vmatprep.subr.mxu0 0.0
      %3453 = vmatpush1.msra.mxu0 %v3030
      %3454 = vmatprep.subr.mxu0 0.0
      %3455 = vmatpush1.msra.mxu0 %v3031
      %3456 = vmatprep.subr.mxu0 0.0
      %3457 = vmatpush1.msra.mxu0 %v3032
      %3458 = vmatprep.subr.mxu0 0.0
      %3459 = vmatpush1.msra.mxu0 %v3033
      %3460 = vmatprep.subr.mxu0 0.0
      %3461 = vmatpush1.msra.mxu0 %v3034
      %3462 = vmatprep.subr.mxu0 0.0
      %3463 = vmatpush1.msra.mxu0 %v3035
      %3464 = vmatprep.subr.mxu0 0.0
      %3465 = vmatpush1.msra.mxu0 %v3036
      %3466 = vmatprep.subr.mxu0 0.0
      %3467 = vmatpush1.msra.mxu0 %v3037
      %3468 = vmatprep.subr.mxu0 0.0
      %3469 = vmatpush1.msra.mxu0 %v3038
      %3470 = vmatprep.subr.mxu0 0.0
      %3471 = vmatpush1.msra.mxu0 %v3039
      %3472 = vmatprep.subr.mxu0 0.0
      %3473 = vmatpush1.msra.mxu0 %v3040
      %3474 = vmatprep.mubr.f32.mxu0 %v2692
      %3475 = vmatmul.mubr.f32.gmra.mrb[0].mxu0 %v2691
      %v3476 = vpop.f32.mrb[0].mxu0
      %v3477 = vadd.f32 %v3332, %v3476
      %v3478 = vpop.f32.mrb[0].mxu0
      %3479 = vmatprep.mubr.f32.mxu0 %v2710
      %3480 = vmatmul.mubr.f32.gmra.mrb[0].mxu0 %v2709
      %v3481 = vpop.f32.mrb[0].mxu0
      %v3482 = vadd.f32 %v3337, %v3481
      %v3483 = vpop.f32.mrb[0].mxu0
      %3484 = vmatprep.mubr.f32.mxu0 %v2728
      %3485 = vmatmul.mubr.f32.gmra.mrb[0].mxu0 %v2727
      %v3486 = vpop.f32.mrb[0].mxu0
      %v3487 = vadd.f32 %v3342, %v3486
      %v3488 = vpop.f32.mrb[0].mxu0
      %3489 = vmatprep.mubr.f32.mxu0 %v2746
      %3490 = vmatmul.mubr.f32.gmra.mrb[0].mxu0 %v2745
      %v3491 = vpop.f32.mrb[0].mxu0
      %v3492 = vadd.f32 %v3347, %v3491
      %v3493 = vpop.f32.mrb[0].mxu0
      %3494 = vmatprep.mubr.f32.mxu0 %v2764
      %3495 = vmatmul.mubr.f32.gmra.mrb[0].mxu0 %v2763
      %v3496 = vpop.f32.mrb[0].mxu0
      %v3497 = vadd.f32 %v3352, %v3496
      %v3498 = vpop.f32.mrb[0].mxu0
      %3499 = vmatprep.mubr.f32.mxu0 %v2782
      %3500 = vmatmul.mubr.f32.gmra.mrb[0].mxu0 %v2781
      %v3501 = vpop.f32.mrb[0].mxu0
      %v3502 = vadd.f32 %v3357, %v3501
      %v3503 = vpop.f32.mrb[0].mxu0
      %3504 = vmatprep.mubr.f32.mxu0 %v2800
      %3505 = vmatmul.mubr.f32.gmra.mrb[0].mxu0 %v2799
      %v3506 = vpop.f32.mrb[0].mxu0
      %v3507 = vadd.f32 %v3362, %v3506
      %v3508 = vpop.f32.mrb[0].mxu0
      %3509 = vmatprep.mubr.f32.mxu0 %v2818
      %3510 = vmatmul.mubr.f32.gmra.mrb[0].mxu0 %v2817
      %v3511 = vpop.f32.mrb[0].mxu0
      %v3512 = vadd.f32 %v3367, %v3511
      %v3513 = vpop.f32.mrb[0].mxu0
      %3514 = vmatprep.mubr.f32.mxu0 %v2836
      %3515 = vmatmul.mubr.f32.gmra.mrb[0].mxu0 %v2835
      %v3516 = vpop.f32.mrb[0].mxu0
      %v3517 = vadd.f32 %v3372, %v3516
      %v3518 = vpop.f32.mrb[0].mxu0
      %3519 = vmatprep.mubr.f32.mxu0 %v2854
      %3520 = vmatmul.mubr.f32.gmra.mrb[0].mxu0 %v2853
      %v3521 = vpop.f32.mrb[0].mxu0
      %v3522 = vadd.f32 %v3377, %v3521
      %v3523 = vpop.f32.mrb[0].mxu0
      %3524 = vmatprep.mubr.f32.mxu0 %v2872
      %3525 = vmatmul.mubr.f32.gmra.mrb[0].mxu0 %v2871
      %v3526 = vpop.f32.mrb[0].mxu0
      %v3527 = vadd.f32 %v3382, %v3526
      %v3528 = vpop.f32.mrb[0].mxu0
      %3529 = vmatprep.mubr.f32.mxu0 %v2890
      %3530 = vmatmul.mubr.f32.gmra.mrb[0].mxu0 %v2889
      %v3531 = vpop.f32.mrb[0].mxu0
      %v3532 = vadd.f32 %v3387, %v3531
      %v3533 = vpop.f32.mrb[0].mxu0
      %3534 = vmatprep.mubr.f32.mxu0 %v2908
      %3535 = vmatmul.mubr.f32.gmra.mrb[0].mxu0 %v2907
      %v3536 = vpop.f32.mrb[0].mxu0
      %v3537 = vadd.f32 %v3392, %v3536
      %v3538 = vpop.f32.mrb[0].mxu0
      %3539 = vmatprep.mubr.f32.mxu0 %v2926
      %3540 = vmatmul.mubr.f32.gmra.mrb[0].mxu0 %v2925
      %v3541 = vpop.f32.mrb[0].mxu0
      %v3542 = vadd.f32 %v3397, %v3541
      %v3543 = vpop.f32.mrb[0].mxu0
      %3544 = vmatprep.mubr.f32.mxu0 %v2944
      %3545 = vmatmul.mubr.f32.gmra.mrb[0].mxu0 %v2943
      %v3546 = vpop.f32.mrb[0].mxu0
      %v3547 = vadd.f32 %v3402, %v3546
      %v3548 = vpop.f32.mrb[0].mxu0
      %3549 = vmatprep.mubr.f32.mxu0 %v2962
      %3550 = vmatmul.mubr.f32.gmra.mrb[0].mxu0 %v2961
      %v3551 = vpop.f32.mrb[0].mxu0
      %v3552 = vadd.f32 %v3407, %v3551
      %v3553 = vpop.f32.mrb[0].mxu0
      %3554 = vdwg.mxu0
      %3555 = vmatprep.subr.mxu0 0.0
      %3556 = vmatpush1.msra.mxu0 %v3041
      %3557 = vmatprep.subr.mxu0 0.0
      %3558 = vmatpush1.msra.mxu0 %v3042
      %3559 = vmatprep.subr.mxu0 0.0
      %3560 = vmatpush1.msra.mxu0 %v3043
      %3561 = vmatprep.subr.mxu0 0.0
      %3562 = vmatpush1.msra.mxu0 %v3044
      %3563 = vmatprep.subr.mxu0 0.0
      %3564 = vmatpush1.msra.mxu0 %v3045
      %3565 = vmatprep.subr.mxu0 0.0
      %3566 = vmatpush1.msra.mxu0 %v3046
      %3567 = vmatprep.subr.mxu0 0.0
      %3568 = vmatpush1.msra.mxu0 %v3047
      %3569 = vmatprep.subr.mxu0 0.0
      %3570 = vmatpush1.msra.mxu0 %v3048
      %3571 = vmatprep.subr.mxu0 0.0
      %3572 = vmatpush1.msra.mxu0 %v3049
      %3573 = vmatprep.subr.mxu0 0.0
      %3574 = vmatpush1.msra.mxu0 %v3050
      %3575 = vmatprep.subr.mxu0 0.0
      %3576 = vmatpush1.msra.mxu0 %v3051
      %3577 = vmatprep.subr.mxu0 0.0
      %3578 = vmatpush1.msra.mxu0 %v3052
      %3579 = vmatprep.subr.mxu0 0.0
      %3580 = vmatpush1.msra.mxu0 %v3053
      %3581 = vmatprep.subr.mxu0 0.0
      %3582 = vmatpush1.msra.mxu0 %v3054
      %3583 = vmatprep.subr.mxu0 0.0
      %3584 = vmatpush1.msra.mxu0 %v3055
      %3585 = vmatprep.subr.mxu0 0.0
      %3586 = vmatpush1.msra.mxu0 %v3056
      %3587 = vmatprep.subr.mxu0 0.0
      %3588 = vmatpush1.msra.mxu0 %v3057
      %3589 = vmatprep.subr.mxu0 0.0
      %3590 = vmatpush1.msra.mxu0 %v3058
      %3591 = vmatprep.subr.mxu0 0.0
      %3592 = vmatpush1.msra.mxu0 %v3059
      %3593 = vmatprep.subr.mxu0 0.0
      %3594 = vmatpush1.msra.mxu0 %v3060
      %3595 = vmatprep.subr.mxu0 0.0
      %3596 = vmatpush1.msra.mxu0 %v3061
      %3597 = vmatprep.subr.mxu0 0.0
      %3598 = vmatpush1.msra.mxu0 %v3062
      %3599 = vmatprep.subr.mxu0 0.0
      %3600 = vmatpush1.msra.mxu0 %v3063
      %3601 = vmatprep.subr.mxu0 0.0
      %3602 = vmatpush1.msra.mxu0 %v3064
      %3603 = vmatprep.subr.mxu0 0.0
      %3604 = vmatpush1.msra.mxu0 %v3065
      %3605 = vmatprep.subr.mxu0 0.0
      %3606 = vmatpush1.msra.mxu0 %v3066
      %3607 = vmatprep.subr.mxu0 0.0
      %3608 = vmatpush1.msra.mxu0 %v3067
      %3609 = vmatprep.subr.mxu0 0.0
      %3610 = vmatpush1.msra.mxu0 %v3068
      %3611 = vmatprep.subr.mxu0 0.0
      %3612 = vmatpush1.msra.mxu0 %v3069
      %3613 = vmatprep.subr.mxu0 0.0
      %3614 = vmatpush1.msra.mxu0 %v3070
      %3615 = vmatprep.subr.mxu0 0.0
      %3616 = vmatpush1.msra.mxu0 %v3071
      %3617 = vmatprep.subr.mxu0 0.0
      %3618 = vmatpush1.msra.mxu0 %v3072
      %3619 = vmatprep.mubr.f32.mxu0 %v2694
      %3620 = vmatmul.mubr.f32.gmra.mrb[0].mxu0 %v2693
      %v3621 = vpop.f32.mrb[0].mxu0
      %v3622 = vadd.f32 %v3477, %v3621
      %v3623 = vpop.f32.mrb[0].mxu0
      %3624 = vmatprep.mubr.f32.mxu0 %v2712
      %3625 = vmatmul.mubr.f32.gmra.mrb[0].mxu0 %v2711
      %v3626 = vpop.f32.mrb[0].mxu0
      %v3627 = vadd.f32 %v3482, %v3626
      %v3628 = vpop.f32.mrb[0].mxu0
      %3629 = vmatprep.mubr.f32.mxu0 %v2730
      %3630 = vmatmul.mubr.f32.gmra.mrb[0].mxu0 %v2729
      %v3631 = vpop.f32.mrb[0].mxu0
      %v3632 = vadd.f32 %v3487, %v3631
      %v3633 = vpop.f32.mrb[0].mxu0
      %3634 = vmatprep.mubr.f32.mxu0 %v2748
      %3635 = vmatmul.mubr.f32.gmra.mrb[0].mxu0 %v2747
      %v3636 = vpop.f32.mrb[0].mxu0
      %v3637 = vadd.f32 %v3492, %v3636
      %v3638 = vpop.f32.mrb[0].mxu0
      %3639 = vmatprep.mubr.f32.mxu0 %v2766
      %3640 = vmatmul.mubr.f32.gmra.mrb[0].mxu0 %v2765
      %v3641 = vpop.f32.mrb[0].mxu0
      %v3642 = vadd.f32 %v3497, %v3641
      %v3643 = vpop.f32.mrb[0].mxu0
      %3644 = vmatprep.mubr.f32.mxu0 %v2784
      %3645 = vmatmul.mubr.f32.gmra.mrb[0].mxu0 %v2783
      %v3646 = vpop.f32.mrb[0].mxu0
      %v3647 = vadd.f32 %v3502, %v3646
      %v3648 = vpop.f32.mrb[0].mxu0
      %3649 = vmatprep.mubr.f32.mxu0 %v2802
      %3650 = vmatmul.mubr.f32.gmra.mrb[0].mxu0 %v2801
      %v3651 = vpop.f32.mrb[0].mxu0
      %v3652 = vadd.f32 %v3507, %v3651
      %v3653 = vpop.f32.mrb[0].mxu0
      %3654 = vmatprep.mubr.f32.mxu0 %v2820
      %3655 = vmatmul.mubr.f32.gmra.mrb[0].mxu0 %v2819
      %v3656 = vpop.f32.mrb[0].mxu0
      %v3657 = vadd.f32 %v3512, %v3656
      %v3658 = vpop.f32.mrb[0].mxu0
      %3659 = vmatprep.mubr.f32.mxu0 %v2838
      %3660 = vmatmul.mubr.f32.gmra.mrb[0].mxu0 %v2837
      %v3661 = vpop.f32.mrb[0].mxu0
      %v3662 = vadd.f32 %v3517, %v3661
      %v3663 = vpop.f32.mrb[0].mxu0
      %3664 = vmatprep.mubr.f32.mxu0 %v2856
      %3665 = vmatmul.mubr.f32.gmra.mrb[0].mxu0 %v2855
      %v3666 = vpop.f32.mrb[0].mxu0
      %v3667 = vadd.f32 %v3522, %v3666
      %v3668 = vpop.f32.mrb[0].mxu0
      %3669 = vmatprep.mubr.f32.mxu0 %v2874
      %3670 = vmatmul.mubr.f32.gmra.mrb[0].mxu0 %v2873
      %v3671 = vpop.f32.mrb[0].mxu0
      %v3672 = vadd.f32 %v3527, %v3671
      %v3673 = vpop.f32.mrb[0].mxu0
      %3674 = vmatprep.mubr.f32.mxu0 %v2892
      %3675 = vmatmul.mubr.f32.gmra.mrb[0].mxu0 %v2891
      %v3676 = vpop.f32.mrb[0].mxu0
      %v3677 = vadd.f32 %v3532, %v3676
      %v3678 = vpop.f32.mrb[0].mxu0
      %3679 = vmatprep.mubr.f32.mxu0 %v2910
      %3680 = vmatmul.mubr.f32.gmra.mrb[0].mxu0 %v2909
      %v3681 = vpop.f32.mrb[0].mxu0
      %v3682 = vadd.f32 %v3537, %v3681
      %v3683 = vpop.f32.mrb[0].mxu0
      %3684 = vmatprep.mubr.f32.mxu0 %v2928
      %3685 = vmatmul.mubr.f32.gmra.mrb[0].mxu0 %v2927
      %v3686 = vpop.f32.mrb[0].mxu0
      %v3687 = vadd.f32 %v3542, %v3686
      %v3688 = vpop.f32.mrb[0].mxu0
      %3689 = vmatprep.mubr.f32.mxu0 %v2946
      %3690 = vmatmul.mubr.f32.gmra.mrb[0].mxu0 %v2945
      %v3691 = vpop.f32.mrb[0].mxu0
      %v3692 = vadd.f32 %v3547, %v3691
      %v3693 = vpop.f32.mrb[0].mxu0
      %3694 = vmatprep.mubr.f32.mxu0 %v2964
      %3695 = vmatmul.mubr.f32.gmra.mrb[0].mxu0 %v2963
      %v3696 = vpop.f32.mrb[0].mxu0
      %v3697 = vadd.f32 %v3552, %v3696
      %v3698 = vpop.f32.mrb[0].mxu0
      %3699 = vdwg.mxu0
      %3700 = vmatprep.subr.mxu0 0.0
      %3701 = vmatpush1.msra.mxu0 %v3073
      %3702 = vmatprep.subr.mxu0 0.0
      %3703 = vmatpush1.msra.mxu0 %v3074
      %3704 = vmatprep.subr.mxu0 0.0
      %3705 = vmatpush1.msra.mxu0 %v3075
      %3706 = vmatprep.subr.mxu0 0.0
      %3707 = vmatpush1.msra.mxu0 %v3076
      %3708 = vmatprep.subr.mxu0 0.0
      %3709 = vmatpush1.msra.mxu0 %v3077
      %3710 = vmatprep.subr.mxu0 0.0
      %3711 = vmatpush1.msra.mxu0 %v3078
      %3712 = vmatprep.subr.mxu0 0.0
      %3713 = vmatpush1.msra.mxu0 %v3079
      %3714 = vmatprep.subr.mxu0 0.0
      %3715 = vmatpush1.msra.mxu0 %v3080
      %3716 = vmatprep.subr.mxu0 0.0
      %3717 = vmatpush1.msra.mxu0 %v3081
      %3718 = vmatprep.subr.mxu0 0.0
      %3719 = vmatpush1.msra.mxu0 %v3082
      %3720 = vmatprep.subr.mxu0 0.0
      %3721 = vmatpush1.msra.mxu0 %v3083
      %3722 = vmatprep.subr.mxu0 0.0
      %3723 = vmatpush1.msra.mxu0 %v3084
      %3724 = vmatprep.subr.mxu0 0.0
      %3725 = vmatpush1.msra.mxu0 %v3085
      %3726 = vmatprep.subr.mxu0 0.0
      %3727 = vmatpush1.msra.mxu0 %v3086
      %3728 = vmatprep.subr.mxu0 0.0
      %3729 = vmatpush1.msra.mxu0 %v3087
      %3730 = vmatprep.subr.mxu0 0.0
      %3731 = vmatpush1.msra.mxu0 %v3088
      %3732 = vmatprep.subr.mxu0 0.0
      %3733 = vmatpush1.msra.mxu0 %v3089
      %3734 = vmatprep.subr.mxu0 0.0
      %3735 = vmatpush1.msra.mxu0 %v3090
      %3736 = vmatprep.subr.mxu0 0.0
      %3737 = vmatpush1.msra.mxu0 %v3091
      %3738 = vmatprep.subr.mxu0 0.0
      %3739 = vmatpush1.msra.mxu0 %v3092
      %3740 = vmatprep.subr.mxu0 0.0
      %3741 = vmatpush1.msra.mxu0 %v3093
      %3742 = vmatprep.subr.mxu0 0.0
      %3743 = vmatpush1.msra.mxu0 %v3094
      %3744 = vmatprep.subr.mxu0 0.0
      %3745 = vmatpush1.msra.mxu0 %v3095
      %3746 = vmatprep.subr.mxu0 0.0
      %3747 = vmatpush1.msra.mxu0 %v3096
      %3748 = vmatprep.subr.mxu0 0.0
      %3749 = vmatpush1.msra.mxu0 %v3097
      %3750 = vmatprep.subr.mxu0 0.0
      %3751 = vmatpush1.msra.mxu0 %v3098
      %3752 = vmatprep.subr.mxu0 0.0
      %3753 = vmatpush1.msra.mxu0 %v3099
      %3754 = vmatprep.subr.mxu0 0.0
      %3755 = vmatpush1.msra.mxu0 %v3100
      %3756 = vmatprep.subr.mxu0 0.0
      %3757 = vmatpush1.msra.mxu0 %v3101
      %3758 = vmatprep.subr.mxu0 0.0
      %3759 = vmatpush1.msra.mxu0 %v3102
      %3760 = vmatprep.subr.mxu0 0.0
      %3761 = vmatpush1.msra.mxu0 %v3103
      %3762 = vmatprep.subr.mxu0 0.0
      %3763 = vmatpush1.msra.mxu0 %v3104
      %3764 = vmatprep.mubr.f32.mxu0 %v2696
      %3765 = vmatmul.mubr.f32.gmra.mrb[0].mxu0 %v2695
      %v3766 = vpop.f32.mrb[0].mxu0
      %v3767 = vadd.f32 %v3622, %v3766
      %v3768 = vpop.f32.mrb[0].mxu0
      %3769 = vmatprep.mubr.f32.mxu0 %v2714
      %3770 = vmatmul.mubr.f32.gmra.mrb[0].mxu0 %v2713
      %v3771 = vpop.f32.mrb[0].mxu0
      %v3772 = vadd.f32 %v3627, %v3771
      %v3773 = vpop.f32.mrb[0].mxu0
      %3774 = vmatprep.mubr.f32.mxu0 %v2732
      %3775 = vmatmul.mubr.f32.gmra.mrb[0].mxu0 %v2731
      %v3776 = vpop.f32.mrb[0].mxu0
      %v3777 = vadd.f32 %v3632, %v3776
      %v3778 = vpop.f32.mrb[0].mxu0
      %3779 = vmatprep.mubr.f32.mxu0 %v2750
      %3780 = vmatmul.mubr.f32.gmra.mrb[0].mxu0 %v2749
      %v3781 = vpop.f32.mrb[0].mxu0
      %v3782 = vadd.f32 %v3637, %v3781
      %v3783 = vpop.f32.mrb[0].mxu0
      %3784 = vmatprep.mubr.f32.mxu0 %v2768
      %3785 = vmatmul.mubr.f32.gmra.mrb[0].mxu0 %v2767
      %v3786 = vpop.f32.mrb[0].mxu0
      %v3787 = vadd.f32 %v3642, %v3786
      %v3788 = vpop.f32.mrb[0].mxu0
      %3789 = vmatprep.mubr.f32.mxu0 %v2786
      %3790 = vmatmul.mubr.f32.gmra.mrb[0].mxu0 %v2785
      %v3791 = vpop.f32.mrb[0].mxu0
      %v3792 = vadd.f32 %v3647, %v3791
      %v3793 = vpop.f32.mrb[0].mxu0
      %3794 = vmatprep.mubr.f32.mxu0 %v2804
      %3795 = vmatmul.mubr.f32.gmra.mrb[0].mxu0 %v2803
      %v3796 = vpop.f32.mrb[0].mxu0
      %v3797 = vadd.f32 %v3652, %v3796
      %v3798 = vpop.f32.mrb[0].mxu0
      %3799 = vmatprep.mubr.f32.mxu0 %v2822
      %3800 = vmatmul.mubr.f32.gmra.mrb[0].mxu0 %v2821
      %v3801 = vpop.f32.mrb[0].mxu0
      %v3802 = vadd.f32 %v3657, %v3801
      %v3803 = vpop.f32.mrb[0].mxu0
      %3804 = vmatprep.mubr.f32.mxu0 %v2840
      %3805 = vmatmul.mubr.f32.gmra.mrb[0].mxu0 %v2839
      %v3806 = vpop.f32.mrb[0].mxu0
      %v3807 = vadd.f32 %v3662, %v3806
      %v3808 = vpop.f32.mrb[0].mxu0
      %3809 = vmatprep.mubr.f32.mxu0 %v2858
      %3810 = vmatmul.mubr.f32.gmra.mrb[0].mxu0 %v2857
      %v3811 = vpop.f32.mrb[0].mxu0
      %v3812 = vadd.f32 %v3667, %v3811
      %v3813 = vpop.f32.mrb[0].mxu0
      %3814 = vmatprep.mubr.f32.mxu0 %v2876
      %3815 = vmatmul.mubr.f32.gmra.mrb[0].mxu0 %v2875
      %v3816 = vpop.f32.mrb[0].mxu0
      %v3817 = vadd.f32 %v3672, %v3816
      %v3818 = vpop.f32.mrb[0].mxu0
      %3819 = vmatprep.mubr.f32.mxu0 %v2894
      %3820 = vmatmul.mubr.f32.gmra.mrb[0].mxu0 %v2893
      %v3821 = vpop.f32.mrb[0].mxu0
      %v3822 = vadd.f32 %v3677, %v3821
      %v3823 = vpop.f32.mrb[0].mxu0
      %3824 = vmatprep.mubr.f32.mxu0 %v2912
      %3825 = vmatmul.mubr.f32.gmra.mrb[0].mxu0 %v2911
      %v3826 = vpop.f32.mrb[0].mxu0
      %v3827 = vadd.f32 %v3682, %v3826
      %v3828 = vpop.f32.mrb[0].mxu0
      %3829 = vmatprep.mubr.f32.mxu0 %v2930
      %3830 = vmatmul.mubr.f32.gmra.mrb[0].mxu0 %v2929
      %v3831 = vpop.f32.mrb[0].mxu0
      %v3832 = vadd.f32 %v3687, %v3831
      %v3833 = vpop.f32.mrb[0].mxu0
      %3834 = vmatprep.mubr.f32.mxu0 %v2948
      %3835 = vmatmul.mubr.f32.gmra.mrb[0].mxu0 %v2947
      %v3836 = vpop.f32.mrb[0].mxu0
      %v3837 = vadd.f32 %v3692, %v3836
      %v3838 = vpop.f32.mrb[0].mxu0
      %3839 = vmatprep.mubr.f32.mxu0 %v2966
      %3840 = vmatmul.mubr.f32.gmra.mrb[0].mxu0 %v2965
      %v3841 = vpop.f32.mrb[0].mxu0
      %v3842 = vadd.f32 %v3697, %v3841
      %v3843 = vpop.f32.mrb[0].mxu0
      %3844 = vdwg.mxu0
      %3845 = vmatprep.subr.mxu0 0.0
      %3846 = vmatpush1.msra.mxu0 %v3105
      %3847 = vmatprep.subr.mxu0 0.0
      %3848 = vmatpush1.msra.mxu0 %v3106
      %3849 = vmatprep.subr.mxu0 0.0
      %3850 = vmatpush1.msra.mxu0 %v3107
      %3851 = vmatprep.subr.mxu0 0.0
      %3852 = vmatpush1.msra.mxu0 %v3108
      %3853 = vmatprep.subr.mxu0 0.0
      %3854 = vmatpush1.msra.mxu0 %v3109
      %3855 = vmatprep.subr.mxu0 0.0
      %3856 = vmatpush1.msra.mxu0 %v3110
      %3857 = vmatprep.subr.mxu0 0.0
      %3858 = vmatpush1.msra.mxu0 %v3111
      %3859 = vmatprep.subr.mxu0 0.0
      %3860 = vmatpush1.msra.mxu0 %v3112
      %3861 = vmatprep.subr.mxu0 0.0
      %3862 = vmatpush1.msra.mxu0 %v3113
      %3863 = vmatprep.subr.mxu0 0.0
      %3864 = vmatpush1.msra.mxu0 %v3114
      %3865 = vmatprep.subr.mxu0 0.0
      %3866 = vmatpush1.msra.mxu0 %v3115
      %3867 = vmatprep.subr.mxu0 0.0
      %3868 = vmatpush1.msra.mxu0 %v3116
      %3869 = vmatprep.subr.mxu0 0.0
      %3870 = vmatpush1.msra.mxu0 %v3117
      %3871 = vmatprep.subr.mxu0 0.0
      %3872 = vmatpush1.msra.mxu0 %v3118
      %3873 = vmatprep.subr.mxu0 0.0
      %3874 = vmatpush1.msra.mxu0 %v3119
      %3875 = vmatprep.subr.mxu0 0.0
      %3876 = vmatpush1.msra.mxu0 %v3120
      %3877 = vmatprep.subr.mxu0 0.0
      %3878 = vmatpush1.msra.mxu0 %v3121
      %3879 = vmatprep.subr.mxu0 0.0
      %3880 = vmatpush1.msra.mxu0 %v3122
      %3881 = vmatprep.subr.mxu0 0.0
      %3882 = vmatpush1.msra.mxu0 %v3123
      %3883 = vmatprep.subr.mxu0 0.0
      %3884 = vmatpush1.msra.mxu0 %v3124
      %3885 = vmatprep.subr.mxu0 0.0
      %3886 = vmatpush1.msra.mxu0 %v3125
      %3887 = vmatprep.subr.mxu0 0.0
      %3888 = vmatpush1.msra.mxu0 %v3126
      %3889 = vmatprep.subr.mxu0 0.0
      %3890 = vmatpush1.msra.mxu0 %v3127
      %3891 = vmatprep.subr.mxu0 0.0
      %3892 = vmatpush1.msra.mxu0 %v3128
      %3893 = vmatprep.subr.mxu0 0.0
      %3894 = vmatpush1.msra.mxu0 %v3129
      %3895 = vmatprep.subr.mxu0 0.0
      %3896 = vmatpush1.msra.mxu0 %v3130
      %3897 = vmatprep.subr.mxu0 0.0
      %3898 = vmatpush1.msra.mxu0 %v3131
      %3899 = vmatprep.subr.mxu0 0.0
      %3900 = vmatpush1.msra.mxu0 %v3132
      %3901 = vmatprep.subr.mxu0 0.0
      %3902 = vmatpush1.msra.mxu0 %v3133
      %3903 = vmatprep.subr.mxu0 0.0
      %3904 = vmatpush1.msra.mxu0 %v3134
      %3905 = vmatprep.subr.mxu0 0.0
      %3906 = vmatpush1.msra.mxu0 %v3135
      %3907 = vmatprep.subr.mxu0 0.0
      %3908 = vmatpush1.msra.mxu0 %v3136
      %3909 = vmatprep.mubr.f32.mxu0 %v2698
      %3910 = vmatmul.mubr.f32.gmra.mrb[0].mxu0 %v2697
      %v3911 = vpop.f32.mrb[0].mxu0
      %v3912 = vadd.f32 %v3767, %v3911
      %v3913 = vpop.f32.mrb[0].mxu0
      %3914 = vmatprep.mubr.f32.mxu0 %v2716
      %3915 = vmatmul.mubr.f32.gmra.mrb[0].mxu0 %v2715
      %v3916 = vpop.f32.mrb[0].mxu0
      %v3917 = vadd.f32 %v3772, %v3916
      %v3918 = vpop.f32.mrb[0].mxu0
      %3919 = vmatprep.mubr.f32.mxu0 %v2734
      %3920 = vmatmul.mubr.f32.gmra.mrb[0].mxu0 %v2733
      %v3921 = vpop.f32.mrb[0].mxu0
      %v3922 = vadd.f32 %v3777, %v3921
      %v3923 = vpop.f32.mrb[0].mxu0
      %3924 = vmatprep.mubr.f32.mxu0 %v2752
      %3925 = vmatmul.mubr.f32.gmra.mrb[0].mxu0 %v2751
      %v3926 = vpop.f32.mrb[0].mxu0
      %v3927 = vadd.f32 %v3782, %v3926
      %v3928 = vpop.f32.mrb[0].mxu0
      %3929 = vmatprep.mubr.f32.mxu0 %v2770
      %3930 = vmatmul.mubr.f32.gmra.mrb[0].mxu0 %v2769
      %v3931 = vpop.f32.mrb[0].mxu0
      %v3932 = vadd.f32 %v3787, %v3931
      %v3933 = vpop.f32.mrb[0].mxu0
      %3934 = vmatprep.mubr.f32.mxu0 %v2788
      %3935 = vmatmul.mubr.f32.gmra.mrb[0].mxu0 %v2787
      %v3936 = vpop.f32.mrb[0].mxu0
      %v3937 = vadd.f32 %v3792, %v3936
      %v3938 = vpop.f32.mrb[0].mxu0
      %3939 = vmatprep.mubr.f32.mxu0 %v2806
      %3940 = vmatmul.mubr.f32.gmra.mrb[0].mxu0 %v2805
      %v3941 = vpop.f32.mrb[0].mxu0
      %v3942 = vadd.f32 %v3797, %v3941
      %v3943 = vpop.f32.mrb[0].mxu0
      %3944 = vmatprep.mubr.f32.mxu0 %v2824
      %3945 = vmatmul.mubr.f32.gmra.mrb[0].mxu0 %v2823
      %v3946 = vpop.f32.mrb[0].mxu0
      %v3947 = vadd.f32 %v3802, %v3946
      %v3948 = vpop.f32.mrb[0].mxu0
      %3949 = vmatprep.mubr.f32.mxu0 %v2842
      %3950 = vmatmul.mubr.f32.gmra.mrb[0].mxu0 %v2841
      %v3951 = vpop.f32.mrb[0].mxu0
      %v3952 = vadd.f32 %v3807, %v3951
      %v3953 = vpop.f32.mrb[0].mxu0
      %3954 = vmatprep.mubr.f32.mxu0 %v2860
      %3955 = vmatmul.mubr.f32.gmra.mrb[0].mxu0 %v2859
      %v3956 = vpop.f32.mrb[0].mxu0
      %v3957 = vadd.f32 %v3812, %v3956
      %v3958 = vpop.f32.mrb[0].mxu0
      %3959 = vmatprep.mubr.f32.mxu0 %v2878
      %3960 = vmatmul.mubr.f32.gmra.mrb[0].mxu0 %v2877
      %v3961 = vpop.f32.mrb[0].mxu0
      %v3962 = vadd.f32 %v3817, %v3961
      %v3963 = vpop.f32.mrb[0].mxu0
      %3964 = vmatprep.mubr.f32.mxu0 %v2896
      %3965 = vmatmul.mubr.f32.gmra.mrb[0].mxu0 %v2895
      %v3966 = vpop.f32.mrb[0].mxu0
      %v3967 = vadd.f32 %v3822, %v3966
      %v3968 = vpop.f32.mrb[0].mxu0
      %3969 = vmatprep.mubr.f32.mxu0 %v2914
      %3970 = vmatmul.mubr.f32.gmra.mrb[0].mxu0 %v2913
      %v3971 = vpop.f32.mrb[0].mxu0
      %v3972 = vadd.f32 %v3827, %v3971
      %v3973 = vpop.f32.mrb[0].mxu0
      %3974 = vmatprep.mubr.f32.mxu0 %v2932
      %3975 = vmatmul.mubr.f32.gmra.mrb[0].mxu0 %v2931
      %v3976 = vpop.f32.mrb[0].mxu0
      %v3977 = vadd.f32 %v3832, %v3976
      %v3978 = vpop.f32.mrb[0].mxu0
      %3979 = vmatprep.mubr.f32.mxu0 %v2950
      %3980 = vmatmul.mubr.f32.gmra.mrb[0].mxu0 %v2949
      %v3981 = vpop.f32.mrb[0].mxu0
      %v3982 = vadd.f32 %v3837, %v3981
      %v3983 = vpop.f32.mrb[0].mxu0
      %3984 = vmatprep.mubr.f32.mxu0 %v2968
      %3985 = vmatmul.mubr.f32.gmra.mrb[0].mxu0 %v2967
      %v3986 = vpop.f32.mrb[0].mxu0
      %v3987 = vadd.f32 %v3842, %v3986
      %v3988 = vpop.f32.mrb[0].mxu0
      %3989 = vdwg.mxu0
      %3990 = vmatprep.subr.mxu0 0.0
      %3991 = vmatpush1.msra.mxu0 %v3137
      %3992 = vmatprep.subr.mxu0 0.0
      %3993 = vmatpush1.msra.mxu0 %v3138
      %3994 = vmatprep.subr.mxu0 0.0
      %3995 = vmatpush1.msra.mxu0 %v3139
      %3996 = vmatprep.subr.mxu0 0.0
      %3997 = vmatpush1.msra.mxu0 %v3140
      %3998 = vmatprep.subr.mxu0 0.0
      %3999 = vmatpush1.msra.mxu0 %v3141
      %4000 = vmatprep.subr.mxu0 0.0
      %4001 = vmatpush1.msra.mxu0 %v3142
      %4002 = vmatprep.subr.mxu0 0.0
      %4003 = vmatpush1.msra.mxu0 %v3143
      %4004 = vmatprep.subr.mxu0 0.0
      %4005 = vmatpush1.msra.mxu0 %v3144
      %4006 = vmatprep.subr.mxu0 0.0
      %4007 = vmatpush1.msra.mxu0 %v3145
      %4008 = vmatprep.subr.mxu0 0.0
      %4009 = vmatpush1.msra.mxu0 %v3146
      %4010 = vmatprep.subr.mxu0 0.0
      %4011 = vmatpush1.msra.mxu0 %v3147
      %4012 = vmatprep.subr.mxu0 0.0
      %4013 = vmatpush1.msra.mxu0 %v3148
      %4014 = vmatprep.subr.mxu0 0.0
      %4015 = vmatpush1.msra.mxu0 %v3149
      %4016 = vmatprep.subr.mxu0 0.0
      %4017 = vmatpush1.msra.mxu0 %v3150
      %4018 = vmatprep.subr.mxu0 0.0
      %4019 = vmatpush1.msra.mxu0 %v3151
      %4020 = vmatprep.subr.mxu0 0.0
      %4021 = vmatpush1.msra.mxu0 %v3152
      %4022 = vmatprep.subr.mxu0 0.0
      %4023 = vmatpush1.msra.mxu0 %v3153
      %4024 = vmatprep.subr.mxu0 0.0
      %4025 = vmatpush1.msra.mxu0 %v3154
      %4026 = vmatprep.subr.mxu0 0.0
      %4027 = vmatpush1.msra.mxu0 %v3155
      %4028 = vmatprep.subr.mxu0 0.0
      %4029 = vmatpush1.msra.mxu0 %v3156
      %4030 = vmatprep.subr.mxu0 0.0
      %4031 = vmatpush1.msra.mxu0 %v3157
      %4032 = vmatprep.subr.mxu0 0.0
      %4033 = vmatpush1.msra.mxu0 %v3158
      %4034 = vmatprep.subr.mxu0 0.0
      %4035 = vmatpush1.msra.mxu0 %v3159
      %4036 = vmatprep.subr.mxu0 0.0
      %4037 = vmatpush1.msra.mxu0 %v3160
      %4038 = vmatprep.subr.mxu0 0.0
      %4039 = vmatpush1.msra.mxu0 %v3161
      %4040 = vmatprep.subr.mxu0 0.0
      %4041 = vmatpush1.msra.mxu0 %v3162
      %4042 = vmatprep.subr.mxu0 0.0
      %4043 = vmatpush1.msra.mxu0 %v3163
      %4044 = vmatprep.subr.mxu0 0.0
      %4045 = vmatpush1.msra.mxu0 %v3164
      %4046 = vmatprep.subr.mxu0 0.0
      %4047 = vmatpush1.msra.mxu0 %v3165
      %4048 = vmatprep.subr.mxu0 0.0
      %4049 = vmatpush1.msra.mxu0 %v3166
      %4050 = vmatprep.subr.mxu0 0.0
      %4051 = vmatpush1.msra.mxu0 %v3167
      %4052 = vmatprep.subr.mxu0 0.0
      %4053 = vmatpush1.msra.mxu0 %v3168
      %4054 = vmatprep.mubr.f32.mxu0 %v2700
      %4055 = vmatmul.mubr.f32.gmra.mrb[0].mxu0 %v2699
      %v4056 = vpop.f32.mrb[0].mxu0
      %v4057 = vadd.f32 %v3912, %v4056
      %v4058 = vpop.f32.mrb[0].mxu0
      %4059 = vmatprep.mubr.f32.mxu0 %v2718
      %4060 = vmatmul.mubr.f32.gmra.mrb[0].mxu0 %v2717
      %v4061 = vpop.f32.mrb[0].mxu0
      %v4062 = vadd.f32 %v3917, %v4061
      %v4063 = vpop.f32.mrb[0].mxu0
      %4064 = vmatprep.mubr.f32.mxu0 %v2736
      %4065 = vmatmul.mubr.f32.gmra.mrb[0].mxu0 %v2735
      %v4066 = vpop.f32.mrb[0].mxu0
      %v4067 = vadd.f32 %v3922, %v4066
      %v4068 = vpop.f32.mrb[0].mxu0
      %4069 = vmatprep.mubr.f32.mxu0 %v2754
      %4070 = vmatmul.mubr.f32.gmra.mrb[0].mxu0 %v2753
      %v4071 = vpop.f32.mrb[0].mxu0
      %v4072 = vadd.f32 %v3927, %v4071
      %v4073 = vpop.f32.mrb[0].mxu0
      %4074 = vmatprep.mubr.f32.mxu0 %v2772
      %4075 = vmatmul.mubr.f32.gmra.mrb[0].mxu0 %v2771
      %v4076 = vpop.f32.mrb[0].mxu0
      %v4077 = vadd.f32 %v3932, %v4076
      %v4078 = vpop.f32.mrb[0].mxu0
      %4079 = vmatprep.mubr.f32.mxu0 %v2790
      %4080 = vmatmul.mubr.f32.gmra.mrb[0].mxu0 %v2789
      %v4081 = vpop.f32.mrb[0].mxu0
      %v4082 = vadd.f32 %v3937, %v4081
      %v4083 = vpop.f32.mrb[0].mxu0
      %4084 = vmatprep.mubr.f32.mxu0 %v2808
      %4085 = vmatmul.mubr.f32.gmra.mrb[0].mxu0 %v2807
      %v4086 = vpop.f32.mrb[0].mxu0
      %v4087 = vadd.f32 %v3942, %v4086
      %v4088 = vpop.f32.mrb[0].mxu0
      %4089 = vmatprep.mubr.f32.mxu0 %v2826
      %4090 = vmatmul.mubr.f32.gmra.mrb[0].mxu0 %v2825
      %v4091 = vpop.f32.mrb[0].mxu0
      %v4092 = vadd.f32 %v3947, %v4091
      %v4093 = vpop.f32.mrb[0].mxu0
      %4094 = vmatprep.mubr.f32.mxu0 %v2844
      %4095 = vmatmul.mubr.f32.gmra.mrb[0].mxu0 %v2843
      %v4096 = vpop.f32.mrb[0].mxu0
      %v4097 = vadd.f32 %v3952, %v4096
      %v4098 = vpop.f32.mrb[0].mxu0
      %4099 = vmatprep.mubr.f32.mxu0 %v2862
      %4100 = vmatmul.mubr.f32.gmra.mrb[0].mxu0 %v2861
      %v4101 = vpop.f32.mrb[0].mxu0
      %v4102 = vadd.f32 %v3957, %v4101
      %v4103 = vpop.f32.mrb[0].mxu0
      %4104 = vmatprep.mubr.f32.mxu0 %v2880
      %4105 = vmatmul.mubr.f32.gmra.mrb[0].mxu0 %v2879
      %v4106 = vpop.f32.mrb[0].mxu0
      %v4107 = vadd.f32 %v3962, %v4106
      %v4108 = vpop.f32.mrb[0].mxu0
      %4109 = vmatprep.mubr.f32.mxu0 %v2898
      %4110 = vmatmul.mubr.f32.gmra.mrb[0].mxu0 %v2897
      %v4111 = vpop.f32.mrb[0].mxu0
      %v4112 = vadd.f32 %v3967, %v4111
      %v4113 = vpop.f32.mrb[0].mxu0
      %4114 = vmatprep.mubr.f32.mxu0 %v2916
      %4115 = vmatmul.mubr.f32.gmra.mrb[0].mxu0 %v2915
      %v4116 = vpop.f32.mrb[0].mxu0
      %v4117 = vadd.f32 %v3972, %v4116
      %v4118 = vpop.f32.mrb[0].mxu0
      %4119 = vmatprep.mubr.f32.mxu0 %v2934
      %4120 = vmatmul.mubr.f32.gmra.mrb[0].mxu0 %v2933
      %v4121 = vpop.f32.mrb[0].mxu0
      %v4122 = vadd.f32 %v3977, %v4121
      %v4123 = vpop.f32.mrb[0].mxu0
      %4124 = vmatprep.mubr.f32.mxu0 %v2952
      %4125 = vmatmul.mubr.f32.gmra.mrb[0].mxu0 %v2951
      %v4126 = vpop.f32.mrb[0].mxu0
      %v4127 = vadd.f32 %v3982, %v4126
      %v4128 = vpop.f32.mrb[0].mxu0
      %4129 = vmatprep.mubr.f32.mxu0 %v2970
      %4130 = vmatmul.mubr.f32.gmra.mrb[0].mxu0 %v2969
      %v4131 = vpop.f32.mrb[0].mxu0
      %v4132 = vadd.f32 %v3987, %v4131
      %v4133 = vpop.f32.mrb[0].mxu0
      %4134 = vdwg.mxu0
      %4135 = vmatprep.subr.mxu0 0.0
      %4136 = vmatpush1.msra.mxu0 %v3169
      %4137 = vmatprep.subr.mxu0 0.0
      %4138 = vmatpush1.msra.mxu0 %v3170
      %4139 = vmatprep.subr.mxu0 0.0
      %4140 = vmatpush1.msra.mxu0 %v3171
      %4141 = vmatprep.subr.mxu0 0.0
      %4142 = vmatpush1.msra.mxu0 %v3172
      %4143 = vmatprep.subr.mxu0 0.0
      %4144 = vmatpush1.msra.mxu0 %v3173
      %4145 = vmatprep.subr.mxu0 0.0
      %4146 = vmatpush1.msra.mxu0 %v3174
      %4147 = vmatprep.subr.mxu0 0.0
      %4148 = vmatpush1.msra.mxu0 %v3175
      %4149 = vmatprep.subr.mxu0 0.0
      %4150 = vmatpush1.msra.mxu0 %v3176
      %4151 = vmatprep.subr.mxu0 0.0
      %4152 = vmatpush1.msra.mxu0 %v3177
      %4153 = vmatprep.subr.mxu0 0.0
      %4154 = vmatpush1.msra.mxu0 %v3178
      %4155 = vmatprep.subr.mxu0 0.0
      %4156 = vmatpush1.msra.mxu0 %v3179
      %4157 = vmatprep.subr.mxu0 0.0
      %4158 = vmatpush1.msra.mxu0 %v3180
      %4159 = vmatprep.subr.mxu0 0.0
      %4160 = vmatpush1.msra.mxu0 %v3181
      %4161 = vmatprep.subr.mxu0 0.0
      %4162 = vmatpush1.msra.mxu0 %v3182
      %4163 = vmatprep.subr.mxu0 0.0
      %4164 = vmatpush1.msra.mxu0 %v3183
      %4165 = vmatprep.subr.mxu0 0.0
      %4166 = vmatpush1.msra.mxu0 %v3184
      %4167 = vmatprep.subr.mxu0 0.0
      %4168 = vmatpush1.msra.mxu0 %v3185
      %4169 = vmatprep.subr.mxu0 0.0
      %4170 = vmatpush1.msra.mxu0 %v3186
      %4171 = vmatprep.subr.mxu0 0.0
      %4172 = vmatpush1.msra.mxu0 %v3187
      %4173 = vmatprep.subr.mxu0 0.0
      %4174 = vmatpush1.msra.mxu0 %v3188
      %4175 = vmatprep.subr.mxu0 0.0
      %4176 = vmatpush1.msra.mxu0 %v3189
      %4177 = vmatprep.subr.mxu0 0.0
      %4178 = vmatpush1.msra.mxu0 %v3190
      %4179 = vmatprep.subr.mxu0 0.0
      %4180 = vmatpush1.msra.mxu0 %v3191
      %4181 = vmatprep.subr.mxu0 0.0
      %4182 = vmatpush1.msra.mxu0 %v3192
      %4183 = vmatprep.subr.mxu0 0.0
      %4184 = vmatpush1.msra.mxu0 %v3193
      %4185 = vmatprep.subr.mxu0 0.0
      %4186 = vmatpush1.msra.mxu0 %v3194
      %4187 = vmatprep.subr.mxu0 0.0
      %4188 = vmatpush1.msra.mxu0 %v3195
      %4189 = vmatprep.subr.mxu0 0.0
      %4190 = vmatpush1.msra.mxu0 %v3196
      %4191 = vmatprep.subr.mxu0 0.0
      %4192 = vmatpush1.msra.mxu0 %v3197
      %4193 = vmatprep.subr.mxu0 0.0
      %4194 = vmatpush1.msra.mxu0 %v3198
      %4195 = vmatprep.subr.mxu0 0.0
      %4196 = vmatpush1.msra.mxu0 %v3199
      %4197 = vmatprep.subr.mxu0 0.0
      %4198 = vmatpush1.msra.mxu0 %v3200
      %4199 = vmatprep.mubr.f32.mxu0 %v2702
      %4200 = vmatmul.mubr.f32.gmra.mrb[0].mxu0 %v2701
      %v4201 = vpop.f32.mrb[0].mxu0
      %v4202 = vadd.f32 %v4057, %v4201
      %v4203 = vpop.f32.mrb[0].mxu0
      %4204 = vmatprep.mubr.f32.mxu0 %v2720
      %4205 = vmatmul.mubr.f32.gmra.mrb[0].mxu0 %v2719
      %v4206 = vpop.f32.mrb[0].mxu0
      %v4207 = vadd.f32 %v4062, %v4206
      %v4208 = vpop.f32.mrb[0].mxu0
      %4209 = vmatprep.mubr.f32.mxu0 %v2738
      %4210 = vmatmul.mubr.f32.gmra.mrb[0].mxu0 %v2737
      %v4211 = vpop.f32.mrb[0].mxu0
      %v4212 = vadd.f32 %v4067, %v4211
      %v4213 = vpop.f32.mrb[0].mxu0
      %4214 = vmatprep.mubr.f32.mxu0 %v2756
      %4215 = vmatmul.mubr.f32.gmra.mrb[0].mxu0 %v2755
      %v4216 = vpop.f32.mrb[0].mxu0
      %v4217 = vadd.f32 %v4072, %v4216
      %v4218 = vpop.f32.mrb[0].mxu0
      %4219 = vmatprep.mubr.f32.mxu0 %v2774
      %4220 = vmatmul.mubr.f32.gmra.mrb[0].mxu0 %v2773
      %v4221 = vpop.f32.mrb[0].mxu0
      %v4222 = vadd.f32 %v4077, %v4221
      %v4223 = vpop.f32.mrb[0].mxu0
      %4224 = vmatprep.mubr.f32.mxu0 %v2792
      %4225 = vmatmul.mubr.f32.gmra.mrb[0].mxu0 %v2791
      %v4226 = vpop.f32.mrb[0].mxu0
      %v4227 = vadd.f32 %v4082, %v4226
      %v4228 = vpop.f32.mrb[0].mxu0
      %4229 = vmatprep.mubr.f32.mxu0 %v2810
      %4230 = vmatmul.mubr.f32.gmra.mrb[0].mxu0 %v2809
      %v4231 = vpop.f32.mrb[0].mxu0
      %v4232 = vadd.f32 %v4087, %v4231
      %v4233 = vpop.f32.mrb[0].mxu0
      %4234 = vmatprep.mubr.f32.mxu0 %v2828
      %4235 = vmatmul.mubr.f32.gmra.mrb[0].mxu0 %v2827
      %v4236 = vpop.f32.mrb[0].mxu0
      %v4237 = vadd.f32 %v4092, %v4236
      %v4238 = vpop.f32.mrb[0].mxu0
      %4239 = vmatprep.mubr.f32.mxu0 %v2846
      %4240 = vmatmul.mubr.f32.gmra.mrb[0].mxu0 %v2845
      %v4241 = vpop.f32.mrb[0].mxu0
      %v4242 = vadd.f32 %v4097, %v4241
      %v4243 = vpop.f32.mrb[0].mxu0
      %4244 = vmatprep.mubr.f32.mxu0 %v2864
      %4245 = vmatmul.mubr.f32.gmra.mrb[0].mxu0 %v2863
      %v4246 = vpop.f32.mrb[0].mxu0
      %v4247 = vadd.f32 %v4102, %v4246
      %v4248 = vpop.f32.mrb[0].mxu0
      %4249 = vmatprep.mubr.f32.mxu0 %v2882
      %4250 = vmatmul.mubr.f32.gmra.mrb[0].mxu0 %v2881
      %v4251 = vpop.f32.mrb[0].mxu0
      %v4252 = vadd.f32 %v4107, %v4251
      %v4253 = vpop.f32.mrb[0].mxu0
      %4254 = vmatprep.mubr.f32.mxu0 %v2900
      %4255 = vmatmul.mubr.f32.gmra.mrb[0].mxu0 %v2899
      %v4256 = vpop.f32.mrb[0].mxu0
      %v4257 = vadd.f32 %v4112, %v4256
      %v4258 = vpop.f32.mrb[0].mxu0
      %4259 = vmatprep.mubr.f32.mxu0 %v2918
      %4260 = vmatmul.mubr.f32.gmra.mrb[0].mxu0 %v2917
      %v4261 = vpop.f32.mrb[0].mxu0
      %v4262 = vadd.f32 %v4117, %v4261
      %v4263 = vpop.f32.mrb[0].mxu0
      %4264 = vmatprep.mubr.f32.mxu0 %v2936
      %4265 = vmatmul.mubr.f32.gmra.mrb[0].mxu0 %v2935
      %v4266 = vpop.f32.mrb[0].mxu0
      %v4267 = vadd.f32 %v4122, %v4266
      %v4268 = vpop.f32.mrb[0].mxu0
      %4269 = vmatprep.mubr.f32.mxu0 %v2954
      %4270 = vmatmul.mubr.f32.gmra.mrb[0].mxu0 %v2953
      %v4271 = vpop.f32.mrb[0].mxu0
      %v4272 = vadd.f32 %v4127, %v4271
      %v4273 = vpop.f32.mrb[0].mxu0
      %4274 = vmatprep.mubr.f32.mxu0 %v2972
      %4275 = vmatmul.mubr.f32.gmra.mrb[0].mxu0 %v2971
      %v4276 = vpop.f32.mrb[0].mxu0
      %v4277 = vadd.f32 %v4132, %v4276
      %v4278 = vpop.f32.mrb[0].mxu0
      %4279 = vdwg.mxu0
      %4280 = vmatprep.subr.mxu0 0.0
      %4281 = vmatpush1.msra.mxu0 %v3201
      %4282 = vmatprep.subr.mxu0 0.0
      %4283 = vmatpush1.msra.mxu0 %v3202
      %4284 = vmatprep.subr.mxu0 0.0
      %4285 = vmatpush1.msra.mxu0 %v3203
      %4286 = vmatprep.subr.mxu0 0.0
      %4287 = vmatpush1.msra.mxu0 %v3204
      %4288 = vmatprep.subr.mxu0 0.0
      %4289 = vmatpush1.msra.mxu0 %v3205
      %4290 = vmatprep.subr.mxu0 0.0
      %4291 = vmatpush1.msra.mxu0 %v3206
      %4292 = vmatprep.subr.mxu0 0.0
      %4293 = vmatpush1.msra.mxu0 %v3207
      %4294 = vmatprep.subr.mxu0 0.0
      %4295 = vmatpush1.msra.mxu0 %v3208
      %4296 = vmatprep.subr.mxu0 0.0
      %4297 = vmatpush1.msra.mxu0 %v3209
      %4298 = vmatprep.subr.mxu0 0.0
      %4299 = vmatpush1.msra.mxu0 %v3210
      %4300 = vmatprep.subr.mxu0 0.0
      %4301 = vmatpush1.msra.mxu0 %v3211
      %4302 = vmatprep.subr.mxu0 0.0
      %4303 = vmatpush1.msra.mxu0 %v3212
      %4304 = vmatprep.subr.mxu0 0.0
      %4305 = vmatpush1.msra.mxu0 %v3213
      %4306 = vmatprep.subr.mxu0 0.0
      %4307 = vmatpush1.msra.mxu0 %v3214
      %4308 = vmatprep.subr.mxu0 0.0
      %4309 = vmatpush1.msra.mxu0 %v3215
      %4310 = vmatprep.subr.mxu0 0.0
      %4311 = vmatpush1.msra.mxu0 %v3216
      %4312 = vmatprep.subr.mxu0 0.0
      %4313 = vmatpush1.msra.mxu0 %v3217
      %4314 = vmatprep.subr.mxu0 0.0
      %4315 = vmatpush1.msra.mxu0 %v3218
      %4316 = vmatprep.subr.mxu0 0.0
      %4317 = vmatpush1.msra.mxu0 %v3219
      %4318 = vmatprep.subr.mxu0 0.0
      %4319 = vmatpush1.msra.mxu0 %v3220
      %4320 = vmatprep.subr.mxu0 0.0
      %4321 = vmatpush1.msra.mxu0 %v3221
      %4322 = vmatprep.subr.mxu0 0.0
      %4323 = vmatpush1.msra.mxu0 %v3222
      %4324 = vmatprep.subr.mxu0 0.0
      %4325 = vmatpush1.msra.mxu0 %v3223
      %4326 = vmatprep.subr.mxu0 0.0
      %4327 = vmatpush1.msra.mxu0 %v3224
      %4328 = vmatprep.subr.mxu0 0.0
      %4329 = vmatpush1.msra.mxu0 %v3225
      %4330 = vmatprep.subr.mxu0 0.0
      %4331 = vmatpush1.msra.mxu0 %v3226
      %4332 = vmatprep.subr.mxu0 0.0
      %4333 = vmatpush1.msra.mxu0 %v3227
      %4334 = vmatprep.subr.mxu0 0.0
      %4335 = vmatpush1.msra.mxu0 %v3228
      %4336 = vmatprep.subr.mxu0 0.0
      %4337 = vmatpush1.msra.mxu0 %v3229
      %4338 = vmatprep.subr.mxu0 0.0
      %4339 = vmatpush1.msra.mxu0 %v3230
      %4340 = vmatprep.subr.mxu0 0.0
      %4341 = vmatpush1.msra.mxu0 %v3231
      %4342 = vmatprep.subr.mxu0 0.0
      %4343 = vmatpush1.msra.mxu0 %v3232
      %4344 = vmatprep.mubr.f32.mxu0 %v2704
      %4345 = vmatmul.mubr.f32.gmra.mrb[0].mxu0 %v2703
      %v4346 = vpop.f32.mrb[0].mxu0
      %v4347 = vadd.f32 %v4202, %v4346
      %v4348 = vpop.f32.mrb[0].mxu0
      %4349 = vmatprep.mubr.f32.mxu0 %v2722
      %4350 = vmatmul.mubr.f32.gmra.mrb[0].mxu0 %v2721
      %v4351 = vpop.f32.mrb[0].mxu0
      %v4352 = vadd.f32 %v4207, %v4351
      %v4353 = vpop.f32.mrb[0].mxu0
      %4354 = vmatprep.mubr.f32.mxu0 %v2740
      %4355 = vmatmul.mubr.f32.gmra.mrb[0].mxu0 %v2739
      %v4356 = vpop.f32.mrb[0].mxu0
      %v4357 = vadd.f32 %v4212, %v4356
      %v4358 = vpop.f32.mrb[0].mxu0
      %4359 = vmatprep.mubr.f32.mxu0 %v2758
      %4360 = vmatmul.mubr.f32.gmra.mrb[0].mxu0 %v2757
      %v4361 = vpop.f32.mrb[0].mxu0
      %v4362 = vadd.f32 %v4217, %v4361
      %v4363 = vpop.f32.mrb[0].mxu0
      %4364 = vmatprep.mubr.f32.mxu0 %v2776
      %4365 = vmatmul.mubr.f32.gmra.mrb[0].mxu0 %v2775
      %v4366 = vpop.f32.mrb[0].mxu0
      %v4367 = vadd.f32 %v4222, %v4366
      %v4368 = vpop.f32.mrb[0].mxu0
      %4369 = vmatprep.mubr.f32.mxu0 %v2794
      %4370 = vmatmul.mubr.f32.gmra.mrb[0].mxu0 %v2793
      %v4371 = vpop.f32.mrb[0].mxu0
      %v4372 = vadd.f32 %v4227, %v4371
      %v4373 = vpop.f32.mrb[0].mxu0
      %4374 = vmatprep.mubr.f32.mxu0 %v2812
      %4375 = vmatmul.mubr.f32.gmra.mrb[0].mxu0 %v2811
      %v4376 = vpop.f32.mrb[0].mxu0
      %v4377 = vadd.f32 %v4232, %v4376
      %v4378 = vpop.f32.mrb[0].mxu0
      %4379 = vmatprep.mubr.f32.mxu0 %v2830
      %4380 = vmatmul.mubr.f32.gmra.mrb[0].mxu0 %v2829
      %v4381 = vpop.f32.mrb[0].mxu0
      %v4382 = vadd.f32 %v4237, %v4381
      %v4383 = vpop.f32.mrb[0].mxu0
      %4384 = vmatprep.mubr.f32.mxu0 %v2848
      %4385 = vmatmul.mubr.f32.gmra.mrb[0].mxu0 %v2847
      %v4386 = vpop.f32.mrb[0].mxu0
      %v4387 = vadd.f32 %v4242, %v4386
      %v4388 = vpop.f32.mrb[0].mxu0
      %4389 = vmatprep.mubr.f32.mxu0 %v2866
      %4390 = vmatmul.mubr.f32.gmra.mrb[0].mxu0 %v2865
      %v4391 = vpop.f32.mrb[0].mxu0
      %v4392 = vadd.f32 %v4247, %v4391
      %v4393 = vpop.f32.mrb[0].mxu0
      %4394 = vmatprep.mubr.f32.mxu0 %v2884
      %4395 = vmatmul.mubr.f32.gmra.mrb[0].mxu0 %v2883
      %v4396 = vpop.f32.mrb[0].mxu0
      %v4397 = vadd.f32 %v4252, %v4396
      %v4398 = vpop.f32.mrb[0].mxu0
      %4399 = vmatprep.mubr.f32.mxu0 %v2902
      %4400 = vmatmul.mubr.f32.gmra.mrb[0].mxu0 %v2901
      %v4401 = vpop.f32.mrb[0].mxu0
      %v4402 = vadd.f32 %v4257, %v4401
      %v4403 = vpop.f32.mrb[0].mxu0
      %4404 = vmatprep.mubr.f32.mxu0 %v2920
      %4405 = vmatmul.mubr.f32.gmra.mrb[0].mxu0 %v2919
      %v4406 = vpop.f32.mrb[0].mxu0
      %v4407 = vadd.f32 %v4262, %v4406
      %v4408 = vpop.f32.mrb[0].mxu0
      %4409 = vmatprep.mubr.f32.mxu0 %v2938
      %4410 = vmatmul.mubr.f32.gmra.mrb[0].mxu0 %v2937
      %v4411 = vpop.f32.mrb[0].mxu0
      %v4412 = vadd.f32 %v4267, %v4411
      %v4413 = vpop.f32.mrb[0].mxu0
      %4414 = vmatprep.mubr.f32.mxu0 %v2956
      %4415 = vmatmul.mubr.f32.gmra.mrb[0].mxu0 %v2955
      %v4416 = vpop.f32.mrb[0].mxu0
      %v4417 = vadd.f32 %v4272, %v4416
      %v4418 = vpop.f32.mrb[0].mxu0
      %4419 = vmatprep.mubr.f32.mxu0 %v2974
      %4420 = vmatmul.mubr.f32.gmra.mrb[0].mxu0 %v2973
      %v4421 = vpop.f32.mrb[0].mxu0
      %v4422 = vadd.f32 %v4277, %v4421
      %v4423 = vpop.f32.mrb[0].mxu0
      %4424 = vdwg.mxu0
      %4425 = vmatprep.subr.mxu0 0.0
      %4426 = vmatpush1.msra.mxu0 %v3233
      %4427 = vmatprep.subr.mxu0 0.0
      %4428 = vmatpush1.msra.mxu0 %v3234
      %4429 = vmatprep.subr.mxu0 0.0
      %4430 = vmatpush1.msra.mxu0 %v3235
      %4431 = vmatprep.subr.mxu0 0.0
      %4432 = vmatpush1.msra.mxu0 %v3236
      %4433 = vmatprep.subr.mxu0 0.0
      %4434 = vmatpush1.msra.mxu0 %v3237
      %4435 = vmatprep.subr.mxu0 0.0
      %4436 = vmatpush1.msra.mxu0 %v3238
      %4437 = vmatprep.subr.mxu0 0.0
      %4438 = vmatpush1.msra.mxu0 %v3239
      %4439 = vmatprep.subr.mxu0 0.0
      %4440 = vmatpush1.msra.mxu0 %v3240
      %4441 = vmatprep.subr.mxu0 0.0
      %4442 = vmatpush1.msra.mxu0 %v3241
      %4443 = vmatprep.subr.mxu0 0.0
      %4444 = vmatpush1.msra.mxu0 %v3242
      %4445 = vmatprep.subr.mxu0 0.0
      %4446 = vmatpush1.msra.mxu0 %v3243
      %4447 = vmatprep.subr.mxu0 0.0
      %4448 = vmatpush1.msra.mxu0 %v3244
      %4449 = vmatprep.subr.mxu0 0.0
      %4450 = vmatpush1.msra.mxu0 %v3245
      %4451 = vmatprep.subr.mxu0 0.0
      %4452 = vmatpush1.msra.mxu0 %v3246
      %4453 = vmatprep.subr.mxu0 0.0
      %4454 = vmatpush1.msra.mxu0 %v3247
      %4455 = vmatprep.subr.mxu0 0.0
      %4456 = vmatpush1.msra.mxu0 %v3248
      %4457 = vmatprep.subr.mxu0 0.0
      %4458 = vmatpush1.msra.mxu0 %v3249
      %4459 = vmatprep.subr.mxu0 0.0
      %4460 = vmatpush1.msra.mxu0 %v3250
      %4461 = vmatprep.subr.mxu0 0.0
      %4462 = vmatpush1.msra.mxu0 %v3251
      %4463 = vmatprep.subr.mxu0 0.0
      %4464 = vmatpush1.msra.mxu0 %v3252
      %4465 = vmatprep.subr.mxu0 0.0
      %4466 = vmatpush1.msra.mxu0 %v3253
      %4467 = vmatprep.subr.mxu0 0.0
      %4468 = vmatpush1.msra.mxu0 %v3254
      %4469 = vmatprep.subr.mxu0 0.0
      %4470 = vmatpush1.msra.mxu0 %v3255
      %4471 = vmatprep.subr.mxu0 0.0
      %4472 = vmatpush1.msra.mxu0 %v3256
      %4473 = vmatprep.subr.mxu0 0.0
      %4474 = vmatpush1.msra.mxu0 %v3257
      %4475 = vmatprep.subr.mxu0 0.0
      %4476 = vmatpush1.msra.mxu0 %v3258
      %4477 = vmatprep.subr.mxu0 0.0
      %4478 = vmatpush1.msra.mxu0 %v3259
      %4479 = vmatprep.subr.mxu0 0.0
      %4480 = vmatpush1.msra.mxu0 %v3260
      %4481 = vmatprep.subr.mxu0 0.0
      %4482 = vmatpush1.msra.mxu0 %v3261
      %4483 = vmatprep.subr.mxu0 0.0
      %4484 = vmatpush1.msra.mxu0 %v3262
      %4485 = vmatprep.subr.mxu0 0.0
      %4486 = vmatpush1.msra.mxu0 %v3263
      %4487 = vmatprep.subr.mxu0 0.0
      %4488 = vmatpush1.msra.mxu0 %v3264
      %4489 = vmatprep.mubr.f32.mxu0 %v2706
      %4490 = vmatmul.mubr.f32.gmra.mrb[0].mxu0 %v2705
      %v4491 = vpop.f32.mrb[0].mxu0
      %v4492 = vadd.f32 %v4347, %v4491
      %v4493 = vpop.f32.mrb[0].mxu0
      %4494 = vmatprep.mubr.f32.mxu0 %v2724
      %4495 = vmatmul.mubr.f32.gmra.mrb[0].mxu0 %v2723
      %v4496 = vpop.f32.mrb[0].mxu0
      %v4497 = vadd.f32 %v4352, %v4496
      %v4498 = vpop.f32.mrb[0].mxu0
      %4499 = vmatprep.mubr.f32.mxu0 %v2742
      %4500 = vmatmul.mubr.f32.gmra.mrb[0].mxu0 %v2741
      %v4501 = vpop.f32.mrb[0].mxu0
      %v4502 = vadd.f32 %v4357, %v4501
      %v4503 = vpop.f32.mrb[0].mxu0
      %4504 = vmatprep.mubr.f32.mxu0 %v2760
      %4505 = vmatmul.mubr.f32.gmra.mrb[0].mxu0 %v2759
      %v4506 = vpop.f32.mrb[0].mxu0
      %v4507 = vadd.f32 %v4362, %v4506
      %v4508 = vpop.f32.mrb[0].mxu0
      %4509 = vmatprep.mubr.f32.mxu0 %v2778
      %4510 = vmatmul.mubr.f32.gmra.mrb[0].mxu0 %v2777
      %v4511 = vpop.f32.mrb[0].mxu0
      %v4512 = vadd.f32 %v4367, %v4511
      %v4513 = vpop.f32.mrb[0].mxu0
      %4514 = vmatprep.mubr.f32.mxu0 %v2796
      %4515 = vmatmul.mubr.f32.gmra.mrb[0].mxu0 %v2795
      %v4516 = vpop.f32.mrb[0].mxu0
      %v4517 = vadd.f32 %v4372, %v4516
      %v4518 = vpop.f32.mrb[0].mxu0
      %4519 = vmatprep.mubr.f32.mxu0 %v2814
      %4520 = vmatmul.mubr.f32.gmra.mrb[0].mxu0 %v2813
      %v4521 = vpop.f32.mrb[0].mxu0
      %v4522 = vadd.f32 %v4377, %v4521
      %v4523 = vpop.f32.mrb[0].mxu0
      %4524 = vmatprep.mubr.f32.mxu0 %v2832
      %4525 = vmatmul.mubr.f32.gmra.mrb[0].mxu0 %v2831
      %v4526 = vpop.f32.mrb[0].mxu0
      %v4527 = vadd.f32 %v4382, %v4526
      %v4528 = vpop.f32.mrb[0].mxu0
      %4529 = vmatprep.mubr.f32.mxu0 %v2850
      %4530 = vmatmul.mubr.f32.gmra.mrb[0].mxu0 %v2849
      %v4531 = vpop.f32.mrb[0].mxu0
      %v4532 = vadd.f32 %v4387, %v4531
      %v4533 = vpop.f32.mrb[0].mxu0
      %4534 = vmatprep.mubr.f32.mxu0 %v2868
      %4535 = vmatmul.mubr.f32.gmra.mrb[0].mxu0 %v2867
      %v4536 = vpop.f32.mrb[0].mxu0
      %v4537 = vadd.f32 %v4392, %v4536
      %v4538 = vpop.f32.mrb[0].mxu0
      %4539 = vmatprep.mubr.f32.mxu0 %v2886
      %4540 = vmatmul.mubr.f32.gmra.mrb[0].mxu0 %v2885
      %v4541 = vpop.f32.mrb[0].mxu0
      %v4542 = vadd.f32 %v4397, %v4541
      %v4543 = vpop.f32.mrb[0].mxu0
      %4544 = vmatprep.mubr.f32.mxu0 %v2904
      %4545 = vmatmul.mubr.f32.gmra.mrb[0].mxu0 %v2903
      %v4546 = vpop.f32.mrb[0].mxu0
      %v4547 = vadd.f32 %v4402, %v4546
      %v4548 = vpop.f32.mrb[0].mxu0
      %4549 = vmatprep.mubr.f32.mxu0 %v2922
      %4550 = vmatmul.mubr.f32.gmra.mrb[0].mxu0 %v2921
      %v4551 = vpop.f32.mrb[0].mxu0
      %v4552 = vadd.f32 %v4407, %v4551
      %v4553 = vpop.f32.mrb[0].mxu0
      %4554 = vmatprep.mubr.f32.mxu0 %v2940
      %4555 = vmatmul.mubr.f32.gmra.mrb[0].mxu0 %v2939
      %v4556 = vpop.f32.mrb[0].mxu0
      %v4557 = vadd.f32 %v4412, %v4556
      %v4558 = vpop.f32.mrb[0].mxu0
      %4559 = vmatprep.mubr.f32.mxu0 %v2958
      %4560 = vmatmul.mubr.f32.gmra.mrb[0].mxu0 %v2957
      %v4561 = vpop.f32.mrb[0].mxu0
      %v4562 = vadd.f32 %v4417, %v4561
      %v4563 = vpop.f32.mrb[0].mxu0
      %4564 = vmatprep.mubr.f32.mxu0 %v2976
      %4565 = vmatmul.mubr.f32.gmra.mrb[0].mxu0 %v2975
      %v4566 = vpop.f32.mrb[0].mxu0
      %v4567 = vadd.f32 %v4422, %v4566
      %v4568 = vpop.f32.mrb[0].mxu0
      %4569 = vdwg.mxu0
      %vm4570 = vcmask 400384
      %v4571 = vsel %vm4570, %v4492, 0.0
      %4572 = vadd.xlane.f32.xlu0 %v4571
      %v4573 = vpop.xlane.xlu0 %4572
      %v4574 = vsel %vm4570, %v4497, 0.0
      %4575 = vadd.xlane.f32.xlu0 %v4574
      %v4576 = vpop.xlane.xlu0 %4575
      %v4577 = vsel %vm4570, %v4502, 0.0
      %4578 = vadd.xlane.f32.xlu0 %v4577
      %v4579 = vpop.xlane.xlu0 %4578
      %v4580 = vsel %vm4570, %v4507, 0.0
      %4581 = vadd.xlane.f32.xlu0 %v4580
      %v4582 = vpop.xlane.xlu0 %4581
      %v4583 = vsel %vm4570, %v4512, 0.0
      %4584 = vadd.xlane.f32.xlu0 %v4583
      %v4585 = vpop.xlane.xlu0 %4584
      %v4586 = vsel %vm4570, %v4517, 0.0
      %4587 = vadd.xlane.f32.xlu0 %v4586
      %v4588 = vpop.xlane.xlu0 %4587
      %v4589 = vsel %vm4570, %v4522, 0.0
      %4590 = vadd.xlane.f32.xlu0 %v4589
      %v4591 = vpop.xlane.xlu0 %4590
      %v4592 = vsel %vm4570, %v4527, 0.0
      %4593 = vadd.xlane.f32.xlu0 %v4592
      %v4594 = vpop.xlane.xlu0 %4593
      %v4595 = vsel %vm4570, %v4532, 0.0
      %4596 = vadd.xlane.f32.xlu0 %v4595
      %v4597 = vpop.xlane.xlu0 %4596
      %v4598 = vsel %vm4570, %v4537, 0.0
      %4599 = vadd.xlane.f32.xlu0 %v4598
      %v4600 = vpop.xlane.xlu0 %4599
      %v4601 = vsel %vm4570, %v4542, 0.0
      %4602 = vadd.xlane.f32.xlu0 %v4601
      %v4603 = vpop.xlane.xlu0 %4602
      %v4604 = vsel %vm4570, %v4547, 0.0
      %4605 = vadd.xlane.f32.xlu0 %v4604
      %v4606 = vpop.xlane.xlu0 %4605
      %v4607 = vsel %vm4570, %v4552, 0.0
      %4608 = vadd.xlane.f32.xlu0 %v4607
      %v4609 = vpop.xlane.xlu0 %4608
      %v4610 = vsel %vm4570, %v4557, 0.0
      %4611 = vadd.xlane.f32.xlu0 %v4610
      %v4612 = vpop.xlane.xlu0 %4611
      %v4613 = vsel %vm4570, %v4562, 0.0
      %4614 = vadd.xlane.f32.xlu0 %v4613
      %v4615 = vpop.xlane.xlu0 %4614
      %v4616 = vsel %vm4570, %v4567, 0.0
      %4617 = vadd.xlane.f32.xlu0 %v4616
      %v4618 = vpop.xlane.xlu0 %4617
      %v4619 = vmul.f32 %v4492, %v4492
      %v4620 = vmul.f32 %v4497, %v4497
      %v4621 = vmul.f32 %v4502, %v4502
      %v4622 = vmul.f32 %v4507, %v4507
      %v4623 = vmul.f32 %v4512, %v4512
      %v4624 = vmul.f32 %v4517, %v4517
      %v4625 = vmul.f32 %v4522, %v4522
      %v4626 = vmul.f32 %v4527, %v4527
      %v4627 = vmul.f32 %v4532, %v4532
      %v4628 = vmul.f32 %v4537, %v4537
      %v4629 = vmul.f32 %v4542, %v4542
      %v4630 = vmul.f32 %v4547, %v4547
      %v4631 = vmul.f32 %v4552, %v4552
      %v4632 = vmul.f32 %v4557, %v4557
      %v4633 = vmul.f32 %v4562, %v4562
      %v4634 = vmul.f32 %v4567, %v4567
      %v4635 = vsel %vm4570, %v4619, 0.0
      %4636 = vadd.xlane.f32.xlu0 %v4635
      %v4637 = vpop.xlane.xlu0 %4636
      %v4638 = vsel %vm4570, %v4620, 0.0
      %4639 = vadd.xlane.f32.xlu0 %v4638
      %v4640 = vpop.xlane.xlu0 %4639
      %v4641 = vsel %vm4570, %v4621, 0.0
      %4642 = vadd.xlane.f32.xlu0 %v4641
      %v4643 = vpop.xlane.xlu0 %4642
      %v4644 = vsel %vm4570, %v4622, 0.0
      %4645 = vadd.xlane.f32.xlu0 %v4644
      %v4646 = vpop.xlane.xlu0 %4645
      %v4647 = vsel %vm4570, %v4623, 0.0
      %4648 = vadd.xlane.f32.xlu0 %v4647
      %v4649 = vpop.xlane.xlu0 %4648
      %v4650 = vsel %vm4570, %v4624, 0.0
      %4651 = vadd.xlane.f32.xlu0 %v4650
      %v4652 = vpop.xlane.xlu0 %4651
      %v4653 = vsel %vm4570, %v4625, 0.0
      %4654 = vadd.xlane.f32.xlu0 %v4653
      %v4655 = vpop.xlane.xlu0 %4654
      %v4656 = vsel %vm4570, %v4626, 0.0
      %4657 = vadd.xlane.f32.xlu0 %v4656
      %v4658 = vpop.xlane.xlu0 %4657
      %v4659 = vsel %vm4570, %v4627, 0.0
      %4660 = vadd.xlane.f32.xlu0 %v4659
      %v4661 = vpop.xlane.xlu0 %4660
      %v4662 = vsel %vm4570, %v4628, 0.0
      %4663 = vadd.xlane.f32.xlu0 %v4662
      %v4664 = vpop.xlane.xlu0 %4663
      %v4665 = vsel %vm4570, %v4629, 0.0
      %4666 = vadd.xlane.f32.xlu0 %v4665
      %v4667 = vpop.xlane.xlu0 %4666
      %v4668 = vsel %vm4570, %v4630, 0.0
      %4669 = vadd.xlane.f32.xlu0 %v4668
      %v4670 = vpop.xlane.xlu0 %4669
      %v4671 = vsel %vm4570, %v4631, 0.0
      %4672 = vadd.xlane.f32.xlu0 %v4671
      %v4673 = vpop.xlane.xlu0 %4672
      %v4674 = vsel %vm4570, %v4632, 0.0
      %4675 = vadd.xlane.f32.xlu0 %v4674
      %v4676 = vpop.xlane.xlu0 %4675
      %v4677 = vsel %vm4570, %v4633, 0.0
      %4678 = vadd.xlane.f32.xlu0 %v4677
      %v4679 = vpop.xlane.xlu0 %4678
      %v4680 = vsel %vm4570, %v4634, 0.0
      %4681 = vadd.xlane.f32.xlu0 %v4680
      %v4682 = vpop.xlane.xlu0 %4681
      %v4683 = vmul.f32 %v4573, 0.020408163
      %v4684 = vmul.f32 %v4576, 0.020408163
      %v4685 = vmul.f32 %v4579, 0.020408163
      %v4686 = vmul.f32 %v4582, 0.020408163
      %v4687 = vmul.f32 %v4585, 0.020408163
      %v4688 = vmul.f32 %v4588, 0.020408163
      %v4689 = vmul.f32 %v4591, 0.020408163
      %v4690 = vmul.f32 %v4594, 0.020408163
      %v4691 = vmul.f32 %v4597, 0.020408163
      %v4692 = vmul.f32 %v4600, 0.020408163
      %v4693 = vmul.f32 %v4603, 0.020408163
      %v4694 = vmul.f32 %v4606, 0.020408163
      %v4695 = vmul.f32 %v4609, 0.020408163
      %v4696 = vmul.f32 %v4612, 0.020408163
      %v4697 = vmul.f32 %v4615, 0.020408163
      %v4698 = vmul.f32 %v4618, 0.020408163
      %v4699 = vmul.f32 %v4637, 0.020408163
      %v4700 = vmul.f32 %v4640, 0.020408163
      %v4701 = vmul.f32 %v4643, 0.020408163
      %v4702 = vmul.f32 %v4646, 0.020408163
      %v4703 = vmul.f32 %v4649, 0.020408163
      %v4704 = vmul.f32 %v4652, 0.020408163
      %v4705 = vmul.f32 %v4655, 0.020408163
      %v4706 = vmul.f32 %v4658, 0.020408163
      %v4707 = vmul.f32 %v4661, 0.020408163
      %v4708 = vmul.f32 %v4664, 0.020408163
      %v4709 = vmul.f32 %v4667, 0.020408163
      %v4710 = vmul.f32 %v4670, 0.020408163
      %v4711 = vmul.f32 %v4673, 0.020408163
      %v4712 = vmul.f32 %v4676, 0.020408163
      %v4713 = vmul.f32 %v4679, 0.020408163
      %v4714 = vmul.f32 %v4682, 0.020408163
      %v4715 = vmul.f32 %v4683, %v4683
      %v4716 = vmul.f32 %v4684, %v4684
      %v4717 = vmul.f32 %v4685, %v4685
      %v4718 = vmul.f32 %v4686, %v4686
      %v4719 = vmul.f32 %v4687, %v4687
      %v4720 = vmul.f32 %v4688, %v4688
      %v4721 = vmul.f32 %v4689, %v4689
      %v4722 = vmul.f32 %v4690, %v4690
      %v4723 = vmul.f32 %v4691, %v4691
      %v4724 = vmul.f32 %v4692, %v4692
      %v4725 = vmul.f32 %v4693, %v4693
      %v4726 = vmul.f32 %v4694, %v4694
      %v4727 = vmul.f32 %v4695, %v4695
      %v4728 = vmul.f32 %v4696, %v4696
      %v4729 = vmul.f32 %v4697, %v4697
      %v4730 = vmul.f32 %v4698, %v4698
      %v4731 = vsub.f32 %v4699, %v4715
      %v4732 = vsub.f32 %v4700, %v4716
      %v4733 = vsub.f32 %v4701, %v4717
      %v4734 = vsub.f32 %v4702, %v4718
      %v4735 = vsub.f32 %v4703, %v4719
      %v4736 = vsub.f32 %v4704, %v4720
      %v4737 = vsub.f32 %v4705, %v4721
      %v4738 = vsub.f32 %v4706, %v4722
      %v4739 = vsub.f32 %v4707, %v4723
      %v4740 = vsub.f32 %v4708, %v4724
      %v4741 = vsub.f32 %v4709, %v4725
      %v4742 = vsub.f32 %v4710, %v4726
      %v4743 = vsub.f32 %v4711, %v4727
      %v4744 = vsub.f32 %v4712, %v4728
      %v4745 = vsub.f32 %v4713, %v4729
      %v4746 = vsub.f32 %v4714, %v4730
      %v4747 = vadd.f32 %v4731, 0.001
      %v4748 = vadd.f32 %v4732, 0.001
      %v4749 = vadd.f32 %v4733, 0.001
      %v4750 = vadd.f32 %v4734, 0.001
      %v4751 = vadd.f32 %v4735, 0.001
      %v4752 = vadd.f32 %v4736, 0.001
      %v4753 = vadd.f32 %v4737, 0.001
      %v4754 = vadd.f32 %v4738, 0.001
      %v4755 = vadd.f32 %v4739, 0.001
      %v4756 = vadd.f32 %v4740, 0.001
      %v4757 = vadd.f32 %v4741, 0.001
      %v4758 = vadd.f32 %v4742, 0.001
      %v4759 = vadd.f32 %v4743, 0.001
      %v4760 = vadd.f32 %v4744, 0.001
      %v4761 = vadd.f32 %v4745, 0.001
      %v4762 = vadd.f32 %v4746, 0.001
      %v4763 = vrsqrt.pop %v4747
      %v4764 = vrsqrt.pop %v4748
      %v4765 = vrsqrt.pop %v4749
      %v4766 = vrsqrt.pop %v4750
      %v4767 = vrsqrt.pop %v4751
      %v4768 = vrsqrt.pop %v4752
      %v4769 = vrsqrt.pop %v4753
      %v4770 = vrsqrt.pop %v4754
      %v4771 = vrsqrt.pop %v4755
      %v4772 = vrsqrt.pop %v4756
      %v4773 = vrsqrt.pop %v4757
      %v4774 = vrsqrt.pop %v4758
      %v4775 = vrsqrt.pop %v4759
      %v4776 = vrsqrt.pop %v4760
      %v4777 = vrsqrt.pop %v4761
      %v4778 = vrsqrt.pop %v4762
      %v4779 = vld [vmem:[%s315] sm:$0xff]
      %v4780 = vld [vmem:[%s315 + $0x8] sm:$0xff]
      %v4781 = vld [vmem:[%s315 + $0x10] sm:$0xff]
      %v4782 = vld [vmem:[%s315 + $0x18] sm:$0xff]
      %v4783 = vld [vmem:[%s315 + $0x20] sm:$0xff]
      %v4784 = vld [vmem:[%s315 + $0x28] sm:$0xff]
      %v4785 = vld [vmem:[%s315 + $0x30] sm:$0xff]
      %v4786 = vld [vmem:[%s315 + $0x38] sm:$0xff]
      %v4787 = vld [vmem:[%s315 + $0x40] sm:$0xff]
      %v4788 = vld [vmem:[%s315 + $0x48] sm:$0xff]
      %v4789 = vld [vmem:[%s315 + $0x50] sm:$0xff]
      %v4790 = vld [vmem:[%s315 + $0x58] sm:$0xff]
      %v4791 = vld [vmem:[%s315 + $0x60] sm:$0xff]
      %v4792 = vld [vmem:[%s315 + $0x68] sm:$0xff]
      %v4793 = vld [vmem:[%s315 + $0x70] sm:$0xff]
      %v4794 = vld [vmem:[%s315 + $0x78] sm:$0xff]
      %v4795 = vmul.f32 %v4763, %v4779
      %v4796 = vmul.f32 %v4764, %v4780
      %v4797 = vmul.f32 %v4765, %v4781
      %v4798 = vmul.f32 %v4766, %v4782
      %v4799 = vmul.f32 %v4767, %v4783
      %v4800 = vmul.f32 %v4768, %v4784
      %v4801 = vmul.f32 %v4769, %v4785
      %v4802 = vmul.f32 %v4770, %v4786
      %v4803 = vmul.f32 %v4771, %v4787
      %v4804 = vmul.f32 %v4772, %v4788
      %v4805 = vmul.f32 %v4773, %v4789
      %v4806 = vmul.f32 %v4774, %v4790
      %v4807 = vmul.f32 %v4775, %v4791
      %v4808 = vmul.f32 %v4776, %v4792
      %v4809 = vmul.f32 %v4777, %v4793
      %v4810 = vmul.f32 %v4778, %v4794
      %v4811 = vld [vmem:[%s321] sm:$0xff]
      %v4812 = vld [vmem:[%s321 + $0x8] sm:$0xff]
      %v4813 = vld [vmem:[%s321 + $0x10] sm:$0xff]
      %v4814 = vld [vmem:[%s321 + $0x18] sm:$0xff]
      %v4815 = vld [vmem:[%s321 + $0x20] sm:$0xff]
      %v4816 = vld [vmem:[%s321 + $0x28] sm:$0xff]
      %v4817 = vld [vmem:[%s321 + $0x30] sm:$0xff]
      %v4818 = vld [vmem:[%s321 + $0x38] sm:$0xff]
      %v4819 = vld [vmem:[%s321 + $0x40] sm:$0xff]
      %v4820 = vld [vmem:[%s321 + $0x48] sm:$0xff]
      %v4821 = vld [vmem:[%s321 + $0x50] sm:$0xff]
      %v4822 = vld [vmem:[%s321 + $0x58] sm:$0xff]
      %v4823 = vld [vmem:[%s321 + $0x60] sm:$0xff]
      %v4824 = vld [vmem:[%s321 + $0x68] sm:$0xff]
      %v4825 = vld [vmem:[%s321 + $0x70] sm:$0xff]
      %v4826 = vld [vmem:[%s321 + $0x78] sm:$0xff]
      %v4827 = vmul.f32 %v4683, %v4795
      %v4828 = vmul.f32 %v4684, %v4796
      %v4829 = vmul.f32 %v4685, %v4797
      %v4830 = vmul.f32 %v4686, %v4798
      %v4831 = vmul.f32 %v4687, %v4799
      %v4832 = vmul.f32 %v4688, %v4800
      %v4833 = vmul.f32 %v4689, %v4801
      %v4834 = vmul.f32 %v4690, %v4802
      %v4835 = vmul.f32 %v4691, %v4803
      %v4836 = vmul.f32 %v4692, %v4804
      %v4837 = vmul.f32 %v4693, %v4805
      %v4838 = vmul.f32 %v4694, %v4806
      %v4839 = vmul.f32 %v4695, %v4807
      %v4840 = vmul.f32 %v4696, %v4808
      %v4841 = vmul.f32 %v4697, %v4809
      %v4842 = vmul.f32 %v4698, %v4810
      %v4843 = vsub.f32 %v4811, %v4827
      %v4844 = vsub.f32 %v4812, %v4828
      %v4845 = vsub.f32 %v4813, %v4829
      %v4846 = vsub.f32 %v4814, %v4830
      %v4847 = vsub.f32 %v4815, %v4831
      %v4848 = vsub.f32 %v4816, %v4832
      %v4849 = vsub.f32 %v4817, %v4833
      %v4850 = vsub.f32 %v4818, %v4834
      %v4851 = vsub.f32 %v4819, %v4835
      %v4852 = vsub.f32 %v4820, %v4836
      %v4853 = vsub.f32 %v4821, %v4837
      %v4854 = vsub.f32 %v4822, %v4838
      %v4855 = vsub.f32 %v4823, %v4839
      %v4856 = vsub.f32 %v4824, %v4840
      %v4857 = vsub.f32 %v4825, %v4841
      %v4858 = vsub.f32 %v4826, %v4842
      %4860 = vset.pattern.permute.xlu0 0
      %4861 = vperm.xlu0 %4860, %v4795
      %v4862 = vpop.permute.xlu0 %4861
      %4865 = vset.pattern.permute.xlu0 0
      %4866 = vperm.xlu0 %4865, %v4796
      %v4867 = vpop.permute.xlu0 %4866
      %4870 = vset.pattern.permute.xlu0 0
      %4871 = vperm.xlu0 %4870, %v4797
      %v4872 = vpop.permute.xlu0 %4871
      %4875 = vset.pattern.permute.xlu0 0
      %4876 = vperm.xlu0 %4875, %v4798
      %v4877 = vpop.permute.xlu0 %4876
      %4880 = vset.pattern.permute.xlu0 0
      %4881 = vperm.xlu0 %4880, %v4799
      %v4882 = vpop.permute.xlu0 %4881
      %4885 = vset.pattern.permute.xlu0 0
      %4886 = vperm.xlu0 %4885, %v4800
      %v4887 = vpop.permute.xlu0 %4886
      %4890 = vset.pattern.permute.xlu0 0
      %4891 = vperm.xlu0 %4890, %v4801
      %v4892 = vpop.permute.xlu0 %4891
      %4895 = vset.pattern.permute.xlu0 0
      %4896 = vperm.xlu0 %4895, %v4802
      %v4897 = vpop.permute.xlu0 %4896
      %4900 = vset.pattern.permute.xlu0 0
      %4901 = vperm.xlu0 %4900, %v4803
      %v4902 = vpop.permute.xlu0 %4901
      %4905 = vset.pattern.permute.xlu0 0
      %4906 = vperm.xlu0 %4905, %v4804
      %v4907 = vpop.permute.xlu0 %4906
      %4910 = vset.pattern.permute.xlu0 0
      %4911 = vperm.xlu0 %4910, %v4805
      %v4912 = vpop.permute.xlu0 %4911
      %4915 = vset.pattern.permute.xlu0 0
      %4916 = vperm.xlu0 %4915, %v4806
      %v4917 = vpop.permute.xlu0 %4916
      %4920 = vset.pattern.permute.xlu0 0
      %4921 = vperm.xlu0 %4920, %v4807
      %v4922 = vpop.permute.xlu0 %4921
      %4925 = vset.pattern.permute.xlu0 0
      %4926 = vperm.xlu0 %4925, %v4808
      %v4927 = vpop.permute.xlu0 %4926
      %4930 = vset.pattern.permute.xlu0 0
      %4931 = vperm.xlu0 %4930, %v4809
      %v4932 = vpop.permute.xlu0 %4931
      %4935 = vset.pattern.permute.xlu0 0
      %4936 = vperm.xlu0 %4935, %v4810
      %v4937 = vpop.permute.xlu0 %4936
      %v4939 = vmul.f32 %v4492, %v4862
      %v4940 = vmul.f32 %v4497, %v4867
      %v4941 = vmul.f32 %v4502, %v4872
      %v4942 = vmul.f32 %v4507, %v4877
      %v4943 = vmul.f32 %v4512, %v4882
      %v4944 = vmul.f32 %v4517, %v4887
      %v4945 = vmul.f32 %v4522, %v4892
      %v4946 = vmul.f32 %v4527, %v4897
      %v4947 = vmul.f32 %v4532, %v4902
      %v4948 = vmul.f32 %v4537, %v4907
      %v4949 = vmul.f32 %v4542, %v4912
      %v4950 = vmul.f32 %v4547, %v4917
      %v4951 = vmul.f32 %v4552, %v4922
      %v4952 = vmul.f32 %v4557, %v4927
      %v4953 = vmul.f32 %v4562, %v4932
      %v4954 = vmul.f32 %v4567, %v4937
      %4956 = vset.pattern.permute.xlu0 0
      %4957 = vperm.xlu0 %4956, %v4843
      %v4958 = vpop.permute.xlu0 %4957
      %4961 = vset.pattern.permute.xlu0 0
      %4962 = vperm.xlu0 %4961, %v4844
      %v4963 = vpop.permute.xlu0 %4962
      %4966 = vset.pattern.permute.xlu0 0
      %4967 = vperm.xlu0 %4966, %v4845
      %v4968 = vpop.permute.xlu0 %4967
      %4971 = vset.pattern.permute.xlu0 0
      %4972 = vperm.xlu0 %4971, %v4846
      %v4973 = vpop.permute.xlu0 %4972
      %4976 = vset.pattern.permute.xlu0 0
      %4977 = vperm.xlu0 %4976, %v4847
      %v4978 = vpop.permute.xlu0 %4977
      %4981 = vset.pattern.permute.xlu0 0
      %4982 = vperm.xlu0 %4981, %v4848
      %v4983 = vpop.permute.xlu0 %4982
      %4986 = vset.pattern.permute.xlu0 0
      %4987 = vperm.xlu0 %4986, %v4849
      %v4988 = vpop.permute.xlu0 %4987
      %4991 = vset.pattern.permute.xlu0 0
      %4992 = vperm.xlu0 %4991, %v4850
      %v4993 = vpop.permute.xlu0 %4992
      %4996 = vset.pattern.permute.xlu0 0
      %4997 = vperm.xlu0 %4996, %v4851
      %v4998 = vpop.permute.xlu0 %4997
      %5001 = vset.pattern.permute.xlu0 0
      %5002 = vperm.xlu0 %5001, %v4852
      %v5003 = vpop.permute.xlu0 %5002
      %5006 = vset.pattern.permute.xlu0 0
      %5007 = vperm.xlu0 %5006, %v4853
      %v5008 = vpop.permute.xlu0 %5007
      %5011 = vset.pattern.permute.xlu0 0
      %5012 = vperm.xlu0 %5011, %v4854
      %v5013 = vpop.permute.xlu0 %5012
      %5016 = vset.pattern.permute.xlu0 0
      %5017 = vperm.xlu0 %5016, %v4855
      %v5018 = vpop.permute.xlu0 %5017
      %5021 = vset.pattern.permute.xlu0 0
      %5022 = vperm.xlu0 %5021, %v4856
      %v5023 = vpop.permute.xlu0 %5022
      %5026 = vset.pattern.permute.xlu0 0
      %5027 = vperm.xlu0 %5026, %v4857
      %v5028 = vpop.permute.xlu0 %5027
      %5031 = vset.pattern.permute.xlu0 0
      %5032 = vperm.xlu0 %5031, %v4858
      %v5033 = vpop.permute.xlu0 %5032
      %v5035 = vadd.f32 %v4939, %v4958
      %v5036 = vadd.f32 %v4940, %v4963
      %v5037 = vadd.f32 %v4941, %v4968
      %v5038 = vadd.f32 %v4942, %v4973
      %v5039 = vadd.f32 %v4943, %v4978
      %v5040 = vadd.f32 %v4944, %v4983
      %v5041 = vadd.f32 %v4945, %v4988
      %v5042 = vadd.f32 %v4946, %v4993
      %v5043 = vadd.f32 %v4947, %v4998
      %v5044 = vadd.f32 %v4948, %v5003
      %v5045 = vadd.f32 %v4949, %v5008
      %v5046 = vadd.f32 %v4950, %v5013
      %v5047 = vadd.f32 %v4951, %v5018
      %v5048 = vadd.f32 %v4952, %v5023
      %v5049 = vadd.f32 %v4953, %v5028
      %v5050 = vadd.f32 %v4954, %v5033
      %5051 = vst.msk [vmem:[%s327] sm:$0xff] %vm4570, %v5035
      %5052 = vst.msk [vmem:[%s327 + $0x8] sm:$0xff] %vm4570, %v5036
      %5053 = vst.msk [vmem:[%s327 + $0x10] sm:$0xff] %vm4570, %v5037
      %5054 = vst.msk [vmem:[%s327 + $0x18] sm:$0xff] %vm4570, %v5038
      %5055 = vst.msk [vmem:[%s327 + $0x20] sm:$0xff] %vm4570, %v5039
      %5056 = vst.msk [vmem:[%s327 + $0x28] sm:$0xff] %vm4570, %v5040
      %5057 = vst.msk [vmem:[%s327 + $0x30] sm:$0xff] %vm4570, %v5041
      %5058 = vst.msk [vmem:[%s327 + $0x38] sm:$0xff] %vm4570, %v5042
      %5059 = vst.msk [vmem:[%s327 + $0x40] sm:$0xff] %vm4570, %v5043
      %5060 = vst.msk [vmem:[%s327 + $0x48] sm:$0xff] %vm4570, %v5044
      %5061 = vst.msk [vmem:[%s327 + $0x50] sm:$0xff] %vm4570, %v5045
      %5062 = vst.msk [vmem:[%s327 + $0x58] sm:$0xff] %vm4570, %v5046
      %5063 = vst.msk [vmem:[%s327 + $0x60] sm:$0xff] %vm4570, %v5047
      %5064 = vst.msk [vmem:[%s327 + $0x68] sm:$0xff] %vm4570, %v5048
      %5065 = vst.msk [vmem:[%s327 + $0x70] sm:$0xff] %vm4570, %v5049
      %5066 = vst.msk [vmem:[%s327 + $0x78] sm:$0xff] %vm4570, %v5050
      %s5067 = smul.u32 16, %s18
      %p5068 = scmp.lt.s32.totalorder %s5067, 47
      %s5069 = scalar_select %p5068, %s5067, 47
      %s5070 = smul.addr %s5069, 8
      %s5071 = scalar_lea.vmem %s7, %s5070
      // Predicated region
      $region49: #{fused_forward.1} parent=47 // pred_check
        %p5072 = pneg %p198
      $region50: #{fused_forward.1} parent=47 // pred_check_branch
        %5074 = sbr.rel (%p5072) target = $region52
      $region51: #{fused_forward.1} parent=47 // pred_region
        %s5075 = smul.u32 16, %s18
      $region52: #{fused_forward.1} parent=47 // pred_fallthru
        _
    $region48: #{fused_forward.1} parent=5 // pred_fallthru
      _
    %p5076 = scmp.le.s32.totalorder 2, %s13
    // Predicated region
    $region53: #{fused_forward.1} parent=5 // pred_check
      %p5077 = pneg %p5076
    $region54: #{fused_forward.1} parent=5 // pred_check_branch
      %5079 = sbr.rel (%p5077) target = $region56
    $region55: #{fused_forward.1} parent=5 // pred_region
      %s5080 = ssub.s32 %s13, 2
      // Predicated region
      $region57: #{fused_forward.1} parent=55 // pred_check
        %p5081 = pneg %p204
      $region58: #{fused_forward.1} parent=55 // pred_check_branch
        %5083 = sbr.rel (%p5081) target = $region60
      $region59: #{fused_forward.1} parent=55 // pred_region
        %s5084 = smul.u32 16, %s19
        %p5085 = scmp.lt.s32.totalorder %s5084, 47
        %s5086 = scalar_select %p5085, %s5084, 47
        %s5087 = smul.addr %s5086, 8
        %s5088 = scalar_lea.vmem %s7, %s5087
      $region60: #{fused_forward.1} parent=55 // pred_fallthru
        _
    $region56: #{fused_forward.1} parent=5 // pred_fallthru
      _
  $region6: #{fused_forward.1} parent=0 // loop_footer
    %s17 = sadd.s32 1, %s13
  $region7: #{fused_forward.1} parent=0 // loop_footer_branch
    %12 = sbr.rel target = $region3
  $region8: #{fused_forward.1} parent=0 // loop_exit
    _

</llo_original>
